<compile_context>
chip_gen: v5e
topology: v5e:2x2
jax: 0.10.0
libtpu: 0.0.40
codegen_flags: <defaults>
</compile_context>

<pallas_src>
import jax
import jax.numpy as jnp
from jax import lax
from jax.experimental import pallas as pl
from jax.experimental.pallas import tpu as pltpu


LANE = 128            # TPU lane width; K and Cout padded to multiples of this
MAX_TILE_ROWS = 512   # output-row tile (M of the MXU dot)


def _round_up(x, m):
    return (x + m - 1) // m * m


# ---------------------------------------------------------------------------
# Pallas kernel: one (rows, K) x (K, tile_co) MXU dot + bias + ReLU
# ---------------------------------------------------------------------------
def _matmul_bias_relu_kernel(x_ref, w_ref, b_ref, o_ref):
    # x_ref: (1, tile_rows, K_p)      bf16 im2col rows (taps packed along K)
    # w_ref: (K_p, tile_co)           bf16 packed conv weights
    # b_ref: (1, tile_co)             f32 bias
    # o_ref: (1, tile_rows, tile_co)  lane-dense output tile
    acc = jnp.dot(x_ref[0], w_ref[...], preferred_element_type=jnp.float32)
    acc = acc + b_ref[...]                                  # (1, tile_co) broadcast
    o_ref[0] = jnp.maximum(acc, 0.0).astype(o_ref.dtype)    # lane-dense store


def conv3x3_s2_relu(x_nhwc, w_packed, b_packed):
    """3x3 conv, stride 2, padding 1, + bias + ReLU.

    x_nhwc:   (N, H, W, Cin)  activations, compute dtype, unpadded channels
    w_packed: (K_p, Cout_p)   weights packed as K-index = kh*3*Cin + kw*Cin + c,
                              zero padded to lane multiples, compute dtype
    b_packed: (1, Cout_p)     float32 bias (zero padded)
    returns:  (N, Ho, Wo, Cout_p)  compute dtype, channel padded
    """
    n, h, wd, cin = x_nhwc.shape
    k_p, cout_p = w_packed.shape
    ho = (h - 1) // 2 + 1
    wo = (wd - 1) // 2 + 1
    rows = ho * wo

    # Stride-2 tap gather (im2col), taps packed along K in (kh, kw, c) order to
    # match the packed weights.  Pure XLA slicing; one pass over the activation.
    xpad = jnp.pad(x_nhwc, ((0, 0), (1, 1), (1, 1), (0, 0)))
    cols = jnp.concatenate(
        [xpad[:, kh::2, kw::2, :][:, :ho, :wo, :]
         for kh in range(3) for kw in range(3)],
        axis=-1)
    cols = cols.reshape(n, rows, 9 * cin)

    # Remainder-safe padding: rows up to the row tile, K up to the packed
    # weight's contraction dim (zeros there contribute nothing).
    tile_rows = min(MAX_TILE_ROWS, _round_up(rows, 8))
    rows_p = _round_up(rows, tile_rows)
    cols = jnp.pad(cols, ((0, 0), (0, rows_p - rows), (0, k_p - 9 * cin)))

    tile_co = 256 if cout_p % 256 == 0 else 128   # fill the 256-wide MXU when possible
    n_co = cout_p // tile_co
    n_rows = rows_p // tile_rows

    itemsize = cols.dtype.itemsize
    flops = 2 * n * rows_p * k_p * cout_p
    bytes_accessed = (cols.size * itemsize + w_packed.size * itemsize
                      + b_packed.size * 4 + n * rows_p * cout_p * itemsize)

    out = pl.pallas_call(
        _matmul_bias_relu_kernel,
        out_shape=jax.ShapeDtypeStruct((n, rows_p, cout_p), x_nhwc.dtype),
        grid_spec=pltpu.PrefetchScalarGridSpec(
            num_scalar_prefetch=0,
            grid=(n, n_co, n_rows),               # batch / cout tile / row tile
            in_specs=[
                # row-tiled input block: VMEM use independent of image size
                pl.BlockSpec((1, tile_rows, k_p), lambda b, j, i: (b, i, 0)),
                # weight slab resident across the (innermost) row-tile axis
                pl.BlockSpec((k_p, tile_co), lambda b, j, i: (0, j)),
                pl.BlockSpec((1, tile_co), lambda b, j, i: (0, j)),
            ],
            out_specs=pl.BlockSpec((1, tile_rows, tile_co),
                                   lambda b, j, i: (b, i, j)),
        ),
        compiler_params=pltpu.CompilerParams(
            dimension_semantics=("parallel", "parallel", "parallel"),
            vmem_limit_bytes=64 * 1024 * 1024),
        cost_estimate=pl.CostEstimate(flops=flops, transcendentals=0,
                                      bytes_accessed=bytes_accessed),
    )(cols, w_packed, b_packed)

    return out[:, :rows, :].reshape(n, ho, wo, cout_p)


# ---------------------------------------------------------------------------
# Synthetic "TimmFeatureExtractor"
# ---------------------------------------------------------------------------
class TimmFeatureExtractorPallas:
    """Mimics TimmFeatureExtractor.forward: dict of multi-scale CNN features.

    Each requested layer halves the spatial resolution and doubles the channel
    count (resnet-style stages: 64/128/256 channels).  Eval / no-grad
    semantics are implicit (pure functional forward).
    """

    def __init__(self, backbone="synthetic_resnet_tiny",
                 layers=("layer1", "layer2", "layer3"),
                 in_channels=3, base_width=64,
                 pre_trained=True, requires_grad=False,
                 compute_dtype=jnp.bfloat16, key=None):
        del pre_trained  # TODO(synk): pretrained timm checkpoints cannot be loaded here.
        self.backbone = backbone
        self.layers = list(layers)
        self.requires_grad = requires_grad   # no-op: JAX forward is pure
        self.in_channels = in_channels
        self.compute_dtype = compute_dtype

        if key is None:
            key = jax.random.PRNGKey(0)

        self.params = []          # unpadded f32 (w, b): reference math
        self.packed_params = []   # (K_p, Cout_p) bf16 weights + (1, Cout_p) f32 bias
        self.out_dims = []
        cin, cout = in_channels, base_width
        for _ in self.layers:
            key, k_w, k_b = jax.random.split(key, 3)
            fan_in = 9 * cin
            w = (jax.random.normal(k_w, (3, 3, cin, cout), jnp.float32)
                 * (2.0 / fan_in) ** 0.5)
            b = jax.random.normal(k_b, (cout,), jnp.float32) * 0.01
            self.params.append((w, b))
            self.out_dims.append(cout)

            k_p = _round_up(9 * cin, LANE)
            cout_p = _round_up(cout, LANE)
            w_flat = w.reshape(9 * cin, cout)            # (kh, kw, c) packed K
            w_packed = (jnp.zeros((k_p, cout_p), jnp.float32)
                        .at[:9 * cin, :cout].set(w_flat)
                        .astype(compute_dtype))
            b_packed = jnp.zeros((1, cout_p), jnp.float32).at[0, :cout].set(b)
            self.packed_params.append((w_packed, b_packed))

            cin, cout = cout, cout * 2

    def __call__(self, inputs_nchw):
        # NCHW (torch convention) -> NHWC once; stages stay NHWC bf16; NCHW
        # transpose + channel un-pad + f32 cast only on the returned dict.
        x = jnp.transpose(inputs_nchw, (0, 2, 3, 1)).astype(self.compute_dtype)
        features = {}
        for name, (w_p, b_p), cout in zip(self.layers, self.packed_params,
                                          self.out_dims):
            y = conv3x3_s2_relu(x, w_p, b_p)       # (N, Ho, Wo, Cout_p)
            x = y[..., :cout]                      # drop channel padding for next stage
            features[name] = jnp.transpose(x, (0, 3, 1, 2)).astype(jnp.float32)
        return features


# ---------------------------------------------------------------------------
# Reference (plain JAX) for correctness check — mirrors the bf16 pipeline
# ---------------------------------------------------------------------------
def _ref_forward(model, x_nchw):
    dt = model.compute_dtype
    x = jnp.transpose(x_nchw, (0, 2, 3, 1)).astype(dt)
    out = {}
    for name, (w, b) in zip(model.layers, model.params):
        y = lax.conv_general_dilated(
            x, w.astype(dt), window_strides=(2, 2), padding=((1, 1), (1, 1)),
            dimension_numbers=("NHWC", "HWIO", "NHWC"),
            preferred_element_type=jnp.float32)
        y = jnp.maximum(y + b, 0.0)
        x = y.astype(dt)
        out[name] = jnp.transpose(x, (0, 3, 1, 2)).astype(jnp.float32)
    return out


if __name__ == "__main__":
    x = jax.random.normal(jax.random.PRNGKey(0), (2, 3, 64, 64), jnp.float32)  # NCHW

    model = TimmFeatureExtractorPallas(
        backbone="synthetic_resnet_tiny",
        layers=["layer1", "layer2", "layer3"],
        in_channels=3, base_width=64,
        key=jax.random.PRNGKey(0),
    )

    forward = jax.jit(lambda inp: model(inp))
    features = forward(x)
    features = jax.tree_util.tree_map(jax.block_until_ready, features)

    # sanity: multi-scale CNN contract (halving spatial, doubling channels)
    expected_shapes = {
        "layer1": (2, 64, 32, 32),
        "layer2": (2, 128, 16, 16),
        "layer3": (2, 256, 8, 8),
    }
    for name in model.layers:
        assert features[name].shape == expected_shapes[name], (
            name, features[name].shape)
        assert features[name].dtype == jnp.float32

    # numerical check against a pure-JAX reference following the same bf16
    # operand / f32 accumulation pipeline (tolerance covers bf16 rounding).
    ref = _ref_forward(model, x)
    for name in model.layers:
        err = jnp.max(jnp.abs(features[name] - ref[name]))
        assert jnp.allclose(features[name], ref[name], atol=3e-2, rtol=3e-2), (
            name, float(err))

    print("KERNEL_OK")
</pallas_src>

<mosaic_0001>
module attributes {stable_mosaic.version = 11 : i64} {
  func.func @_matmul_bias_relu_kernel(%arg0: i32, %arg1: i32, %arg2: i32, %arg3: memref<1x512x128xbf16, #tpu.memory_space<vmem>>, %arg4: memref<128x128xbf16, #tpu.memory_space<vmem>>, %arg5: memref<1x128xf32, #tpu.memory_space<vmem>>, %arg6: memref<1x512x128xbf16, #tpu.memory_space<vmem>>) attributes {dimension_semantics = [#tpu.dimension_semantics<parallel>, #tpu.dimension_semantics<parallel>, #tpu.dimension_semantics<parallel>], iteration_bounds = array<i64: 2, 1, 2>, scalar_prefetch = 0 : i64, scratch_operands = 0 : i64, tpu.core_type = #tpu.core_type<tc>, window_params = [{transform_indices = @transform_0, window_bounds = array<i64: 1, 512, 128>}, {transform_indices = @transform_1, window_bounds = array<i64: 128, 128>}, {transform_indices = @transform_2, window_bounds = array<i64: 1, 128>}, {transform_indices = @transform_3, window_bounds = array<i64: 1, 512, 128>}]} {
    %c0 = arith.constant 0 : index
    %c0_0 = arith.constant 0 : index
    %c0_1 = arith.constant 0 : index
    %0 = vector.load %arg3[%c0, %c0_0, %c0_1] : memref<1x512x128xbf16, #tpu.memory_space<vmem>>, vector<1x512x128xbf16>
    %1 = vector.shape_cast %0 : vector<1x512x128xbf16> to vector<512x128xbf16>
    %c0_2 = arith.constant 0 : index
    %c0_3 = arith.constant 0 : index
    %2 = vector.load %arg4[%c0_2, %c0_3] : memref<128x128xbf16, #tpu.memory_space<vmem>>, vector<128x128xbf16>
    %cst = arith.constant dense<0.000000e+00> : vector<512x128xf32>
    %3 = tpu.matmul %1, %2, %cst {dimension_numbers = #tpu.dot_dimension_numbers<[1], [0], [0], [1], [0, 0, 1, 1], [], []>} : vector<512x128xbf16>, vector<128x128xbf16>, vector<512x128xf32> -> vector<512x128xf32>
    %c0_4 = arith.constant 0 : index
    %c0_5 = arith.constant 0 : index
    %4 = vector.load %arg5[%c0_4, %c0_5] : memref<1x128xf32, #tpu.memory_space<vmem>>, vector<1x128xf32>
    %5 = vector.broadcast %4 : vector<1x128xf32> to vector<512x128xf32>
    %6 = arith.addf %3, %5 : vector<512x128xf32>
    %cst_6 = arith.constant 0.000000e+00 : f32
    %7 = vector.broadcast %cst_6 : f32 to vector<512x128xf32>
    %8 = arith.maximumf %6, %7 : vector<512x128xf32>
    %9 = arith.truncf %8 : vector<512x128xf32> to vector<512x128xbf16>
    %c0_7 = arith.constant 0 : index
    %c0_8 = arith.constant 0 : index
    %c0_9 = arith.constant 0 : index
    %10 = vector.load %arg6[%c0_7, %c0_8, %c0_9] : memref<1x512x128xbf16, #tpu.memory_space<vmem>>, vector<1x512x128xbf16>
    %11 = vector.shape_cast %10 : vector<1x512x128xbf16> to vector<512x128xbf16>
    %12 = vector.shape_cast %9 : vector<512x128xbf16> to vector<1x512x128xbf16>
    tpu.vector_store %arg6[%c0_7, %c0_8, %c0_9], %12 {strides = array<i32>} : memref<1x512x128xbf16, #tpu.memory_space<vmem>>, vector<1x512x128xbf16>,
    return
  }
  func.func @transform_0(%arg0: i32, %arg1: i32, %arg2: i32) -> (i32, i32, i32) {
    %c0_i32 = arith.constant 0 : i32
    %c0_i32_0 = arith.constant 0 : i32
    return %arg0, %arg2, %c0_i32 : i32, i32, i32
  }
  func.func @transform_1(%arg0: i32, %arg1: i32, %arg2: i32) -> (i32, i32) {
    %c0_i32 = arith.constant 0 : i32
    %c0_i32_0 = arith.constant 0 : i32
    return %c0_i32, %arg1 : i32, i32
  }
  func.func @transform_2(%arg0: i32, %arg1: i32, %arg2: i32) -> (i32, i32) {
    %c0_i32 = arith.constant 0 : i32
    %c0_i32_0 = arith.constant 0 : i32
    return %c0_i32, %arg1 : i32, i32
  }
  func.func @transform_3(%arg0: i32, %arg1: i32, %arg2: i32) -> (i32, i32, i32) {
    %c0_i32 = arith.constant 0 : i32
    return %arg0, %arg2, %arg1 : i32, i32, i32
  }
}

module attributes {stable_mosaic.version = 11 : i64} {
  func.func @_matmul_bias_relu_kernel(%arg0: i32, %arg1: i32, %arg2: i32, %arg3: memref<1x256x640xbf16, #tpu.memory_space<vmem>>, %arg4: memref<640x128xbf16, #tpu.memory_space<vmem>>, %arg5: memref<1x128xf32, #tpu.memory_space<vmem>>, %arg6: memref<1x256x128xbf16, #tpu.memory_space<vmem>>) attributes {dimension_semantics = [#tpu.dimension_semantics<parallel>, #tpu.dimension_semantics<parallel>, #tpu.dimension_semantics<parallel>], iteration_bounds = array<i64: 2, 1, 1>, scalar_prefetch = 0 : i64, scratch_operands = 0 : i64, tpu.core_type = #tpu.core_type<tc>, window_params = [{transform_indices = @transform_0, window_bounds = array<i64: 1, 256, 640>}, {transform_indices = @transform_1, window_bounds = array<i64: 640, 128>}, {transform_indices = @transform_2, window_bounds = array<i64: 1, 128>}, {transform_indices = @transform_3, window_bounds = array<i64: 1, 256, 128>}]} {
    %c0 = arith.constant 0 : index
    %c0_0 = arith.constant 0 : index
    %c0_1 = arith.constant 0 : index
    %0 = vector.load %arg3[%c0, %c0_0, %c0_1] : memref<1x256x640xbf16, #tpu.memory_space<vmem>>, vector<1x256x640xbf16>
    %1 = vector.shape_cast %0 : vector<1x256x640xbf16> to vector<256x640xbf16>
    %c0_2 = arith.constant 0 : index
    %c0_3 = arith.constant 0 : index
    %2 = vector.load %arg4[%c0_2, %c0_3] : memref<640x128xbf16, #tpu.memory_space<vmem>>, vector<640x128xbf16>
    %cst = arith.constant dense<0.000000e+00> : vector<256x128xf32>
    %3 = tpu.matmul %1, %2, %cst {dimension_numbers = #tpu.dot_dimension_numbers<[1], [0], [0], [1], [0, 0, 1, 1], [], []>} : vector<256x640xbf16>, vector<640x128xbf16>, vector<256x128xf32> -> vector<256x128xf32>
    %c0_4 = arith.constant 0 : index
    %c0_5 = arith.constant 0 : index
    %4 = vector.load %arg5[%c0_4, %c0_5] : memref<1x128xf32, #tpu.memory_space<vmem>>, vector<1x128xf32>
    %5 = vector.broadcast %4 : vector<1x128xf32> to vector<256x128xf32>
    %6 = arith.addf %3, %5 : vector<256x128xf32>
    %cst_6 = arith.constant 0.000000e+00 : f32
    %7 = vector.broadcast %cst_6 : f32 to vector<256x128xf32>
    %8 = arith.maximumf %6, %7 : vector<256x128xf32>
    %9 = arith.truncf %8 : vector<256x128xf32> to vector<256x128xbf16>
    %c0_7 = arith.constant 0 : index
    %c0_8 = arith.constant 0 : index
    %c0_9 = arith.constant 0 : index
    %10 = vector.load %arg6[%c0_7, %c0_8, %c0_9] : memref<1x256x128xbf16, #tpu.memory_space<vmem>>, vector<1x256x128xbf16>
    %11 = vector.shape_cast %10 : vector<1x256x128xbf16> to vector<256x128xbf16>
    %12 = vector.shape_cast %9 : vector<256x128xbf16> to vector<1x256x128xbf16>
    tpu.vector_store %arg6[%c0_7, %c0_8, %c0_9], %12 {strides = array<i32>} : memref<1x256x128xbf16, #tpu.memory_space<vmem>>, vector<1x256x128xbf16>,
    return
  }
  func.func @transform_0(%arg0: i32, %arg1: i32, %arg2: i32) -> (i32, i32, i32) {
    %c0_i32 = arith.constant 0 : i32
    %c0_i32_0 = arith.constant 0 : i32
    return %arg0, %arg2, %c0_i32 : i32, i32, i32
  }
  func.func @transform_1(%arg0: i32, %arg1: i32, %arg2: i32) -> (i32, i32) {
    %c0_i32 = arith.constant 0 : i32
    %c0_i32_0 = arith.constant 0 : i32
    return %c0_i32, %arg1 : i32, i32
  }
  func.func @transform_2(%arg0: i32, %arg1: i32, %arg2: i32) -> (i32, i32) {
    %c0_i32 = arith.constant 0 : i32
    %c0_i32_0 = arith.constant 0 : i32
    return %c0_i32, %arg1 : i32, i32
  }
  func.func @transform_3(%arg0: i32, %arg1: i32, %arg2: i32) -> (i32, i32, i32) {
    %c0_i32 = arith.constant 0 : i32
    return %arg0, %arg2, %arg1 : i32, i32, i32
  }
}

module attributes {stable_mosaic.version = 11 : i64} {
  func.func @_matmul_bias_relu_kernel(%arg0: i32, %arg1: i32, %arg2: i32, %arg3: memref<1x64x1152xbf16, #tpu.memory_space<vmem>>, %arg4: memref<1152x256xbf16, #tpu.memory_space<vmem>>, %arg5: memref<1x256xf32, #tpu.memory_space<vmem>>, %arg6: memref<1x64x256xbf16, #tpu.memory_space<vmem>>) attributes {dimension_semantics = [#tpu.dimension_semantics<parallel>, #tpu.dimension_semantics<parallel>, #tpu.dimension_semantics<parallel>], iteration_bounds = array<i64: 2, 1, 1>, scalar_prefetch = 0 : i64, scratch_operands = 0 : i64, tpu.core_type = #tpu.core_type<tc>, window_params = [{transform_indices = @transform_0, window_bounds = array<i64: 1, 64, 1152>}, {transform_indices = @transform_1, window_bounds = array<i64: 1152, 256>}, {transform_indices = @transform_2, window_bounds = array<i64: 1, 256>}, {transform_indices = @transform_3, window_bounds = array<i64: 1, 64, 256>}]} {
    %c0 = arith.constant 0 : index
    %c0_0 = arith.constant 0 : index
    %c0_1 = arith.constant 0 : index
    %0 = vector.load %arg3[%c0, %c0_0, %c0_1] : memref<1x64x1152xbf16, #tpu.memory_space<vmem>>, vector<1x64x1152xbf16>
    %1 = vector.shape_cast %0 : vector<1x64x1152xbf16> to vector<64x1152xbf16>
    %c0_2 = arith.constant 0 : index
    %c0_3 = arith.constant 0 : index
    %2 = vector.load %arg4[%c0_2, %c0_3] : memref<1152x256xbf16, #tpu.memory_space<vmem>>, vector<1152x256xbf16>
    %cst = arith.constant dense<0.000000e+00> : vector<64x256xf32>
    %3 = tpu.matmul %1, %2, %cst {dimension_numbers = #tpu.dot_dimension_numbers<[1], [0], [0], [1], [0, 0, 1, 1], [], []>} : vector<64x1152xbf16>, vector<1152x256xbf16>, vector<64x256xf32> -> vector<64x256xf32>
    %c0_4 = arith.constant 0 : index
    %c0_5 = arith.constant 0 : index
    %4 = vector.load %arg5[%c0_4, %c0_5] : memref<1x256xf32, #tpu.memory_space<vmem>>, vector<1x256xf32>
    %5 = vector.broadcast %4 : vector<1x256xf32> to vector<64x256xf32>
    %6 = arith.addf %3, %5 : vector<64x256xf32>
    %cst_6 = arith.constant 0.000000e+00 : f32
    %7 = vector.broadcast %cst_6 : f32 to vector<64x256xf32>
    %8 = arith.maximumf %6, %7 : vector<64x256xf32>
    %9 = arith.truncf %8 : vector<64x256xf32> to vector<64x256xbf16>
    %c0_7 = arith.constant 0 : index
    %c0_8 = arith.constant 0 : index
    %c0_9 = arith.constant 0 : index
    %10 = vector.load %arg6[%c0_7, %c0_8, %c0_9] : memref<1x64x256xbf16, #tpu.memory_space<vmem>>, vector<1x64x256xbf16>
    %11 = vector.shape_cast %10 : vector<1x64x256xbf16> to vector<64x256xbf16>
    %12 = vector.shape_cast %9 : vector<64x256xbf16> to vector<1x64x256xbf16>
    tpu.vector_store %arg6[%c0_7, %c0_8, %c0_9], %12 {strides = array<i32>} : memref<1x64x256xbf16, #tpu.memory_space<vmem>>, vector<1x64x256xbf16>,
    return
  }
  func.func @transform_0(%arg0: i32, %arg1: i32, %arg2: i32) -> (i32, i32, i32) {
    %c0_i32 = arith.constant 0 : i32
    %c0_i32_0 = arith.constant 0 : i32
    return %arg0, %arg2, %c0_i32 : i32, i32, i32
  }
  func.func @transform_1(%arg0: i32, %arg1: i32, %arg2: i32) -> (i32, i32) {
    %c0_i32 = arith.constant 0 : i32
    %c0_i32_0 = arith.constant 0 : i32
    return %c0_i32, %arg1 : i32, i32
  }
  func.func @transform_2(%arg0: i32, %arg1: i32, %arg2: i32) -> (i32, i32) {
    %c0_i32 = arith.constant 0 : i32
    %c0_i32_0 = arith.constant 0 : i32
    return %c0_i32, %arg1 : i32, i32
  }
  func.func @transform_3(%arg0: i32, %arg1: i32, %arg2: i32) -> (i32, i32, i32) {
    %c0_i32 = arith.constant 0 : i32
    return %arg0, %arg2, %arg1 : i32, i32, i32
  }
}

</mosaic_0001>

<llo_original>
// kernel: _lambda_.3
$region0: #{_lambda_.3}
  #allocation0 [shape = 'u32[]', space=smem, size = 0x4, offset = 0x4, fixed_abs, tag = 'smem constant byte address 0x4 - core index']
  #allocation1 [shape = 'u32[72,128]{1,0:T(1,128)}', space=vmem, size = 0x9000, scoped, tag = 'internal scratch']
  %s0 = inlined_call_operand.vmem [shape: bf16[2,1024,128], index: 0, kind: input, shape index: {}]
  %s1 = inlined_call_operand.vmem [shape: bf16[128,128], index: 1, kind: input, shape index: {}]
  %s2 = inlined_call_operand.vmem [shape: f32[1,128], index: 2, kind: input, shape index: {}]
  %s3 = inlined_call_operand.vmem [shape: bf16[2,1024,128], index: 3, kind: output, shape index: {}]
  %s4 = sld [smem:[#allocation0]]
  $region45: #{_lambda_.3} parent=0
    _
  %s6 = ssub.s32 1, %s4
  %s7 = scalar_select 0, %s6, %s4
  loop: start=0, step=1, limit=6
  $region2: #{_lambda_.3} parent=0 // loop_pre_header
    _
  $region3: #{_lambda_.3} parent=0 // loop_header
    %s9 = sphi 0, %s13
    %p10 = scmp.ge.s32.totalorder %s9, 6
    %s16 = sphi 0, %s35
    %s17 = sphi 0, %s31
    %s18 = sphi 0, %s27
    %s19 = sphi 0, %s16
    %s20 = sphi 0, %s17
    %s21 = sphi 0, %s18
    %s22 = sphi 0, %s19
    %s23 = sphi 0, %s20
    %s24 = sphi 0, %s21
    %s40 = sphi 0, %s42
    %s43 = sphi 0, %s40
    %s44 = sphi 0, %s43
    %s60 = sphi 0, %s44
    %s66 = sphi 0, %s68
    %s69 = sphi 0, %s66
    %s70 = sphi 0, %s69
    %s86 = sphi 0, %s70
    %s92 = sphi 0, %s94
    %s95 = sphi 0, %s92
    %s96 = sphi 0, %s95
    %s112 = sphi 0, %s96
    %s122 = sphi 0, %s124
    %s125 = sphi 0, %s122
    %s126 = sphi 0, %s125
    %s142 = sphi 0, %s126
  $region4: #{_lambda_.3} parent=0 // loop_header_branch
    %12 = sbr.rel (%p10) target = $region8
  $region5: #{_lambda_.3} parent=0 // loop_body
    %s14 = ssub.s32 %s9, 1
    %s15 = ssub.s32 %s9, 2
    %s25 = sadd.s32 1, %s18
    %p26 = scmp.ge.s32.totalorder %s25, 2
    %s27 = scalar_select %p26, 0, %s25
    %s28 = sadd.s32 1, %s17
    %s29 = scalar_select %p26, %s28, %s17
    %p30 = scmp.ge.s32.totalorder %s29, 1
    %s31 = scalar_select %p30, 0, %s29
    %s32 = sadd.s32 1, %s16
    %s33 = scalar_select %p30, %s32, %s16
    %p34 = scmp.ge.s32.totalorder %s33, 2
    %s35 = scalar_select %p34, 0, %s33
    %s36 = ssub.s32 %s16, %s35
    %s37 = ssub.s32 %s18, %s27
    %s38 = sor.u32 %s36, %s37
    %p39 = scmp.eq.s32.totalorder %s38, 0
    %s41 = sadd.s32 %s40, 1
    %s42 = scalar_select %p39, %s40, %s41
    %p45 = pneg %p39
    %p46 = scmp.eq.s32.totalorder %s9, 3
    %p47 = por %p45, %p46
    %p48 = scmp.ne.s32.totalorder %s40, %s43
    %p49 = scmp.eq.s32.totalorder %s9, 0
    %p50 = por %p48, %p49
    %p51 = scmp.ne.s32.totalorder %s40, %s43
    %p52 = scmp.eq.s32.totalorder %s14, 3
    %p53 = por %p51, %p52
    %p54 = scmp.ne.s32.totalorder %s43, %s44
    %p55 = scmp.eq.s32.totalorder %s14, 0
    %p56 = por %p54, %p55
    %p57 = scmp.ne.s32.totalorder %s43, %s44
    %p58 = scmp.eq.s32.totalorder %s15, 3
    %p59 = por %p57, %p58
    %p61 = scmp.ne.s32.totalorder %s44, %s60
    %p62 = scmp.eq.s32.totalorder %s15, 0
    %p63 = por %p61, %p62
    %s64 = ssub.s32 %s17, %s31
    %p65 = scmp.eq.s32.totalorder %s64, 0
    %s67 = sadd.s32 %s66, 1
    %s68 = scalar_select %p65, %s66, %s67
    %p71 = pneg %p65
    %p72 = scmp.eq.s32.totalorder %s9, 3
    %p73 = por %p71, %p72
    %p74 = scmp.ne.s32.totalorder %s66, %s69
    %p75 = scmp.eq.s32.totalorder %s9, 0
    %p76 = por %p74, %p75
    %p77 = scmp.ne.s32.totalorder %s66, %s69
    %p78 = scmp.eq.s32.totalorder %s14, 3
    %p79 = por %p77, %p78
    %p80 = scmp.ne.s32.totalorder %s69, %s70
    %p81 = scmp.eq.s32.totalorder %s14, 0
    %p82 = por %p80, %p81
    %p83 = scmp.ne.s32.totalorder %s69, %s70
    %p84 = scmp.eq.s32.totalorder %s15, 3
    %p85 = por %p83, %p84
    %p87 = scmp.ne.s32.totalorder %s70, %s86
    %p88 = scmp.eq.s32.totalorder %s15, 0
    %p89 = por %p87, %p88
    %s90 = ssub.s32 %s17, %s31
    %p91 = scmp.eq.s32.totalorder %s90, 0
    %s93 = sadd.s32 %s92, 1
    %s94 = scalar_select %p91, %s92, %s93
    %p97 = pneg %p91
    %p98 = scmp.eq.s32.totalorder %s9, 3
    %p99 = por %p97, %p98
    %p100 = scmp.ne.s32.totalorder %s92, %s95
    %p101 = scmp.eq.s32.totalorder %s9, 0
    %p102 = por %p100, %p101
    %p103 = scmp.ne.s32.totalorder %s92, %s95
    %p104 = scmp.eq.s32.totalorder %s14, 3
    %p105 = por %p103, %p104
    %p106 = scmp.ne.s32.totalorder %s95, %s96
    %p107 = scmp.eq.s32.totalorder %s14, 0
    %p108 = por %p106, %p107
    %p109 = scmp.ne.s32.totalorder %s95, %s96
    %p110 = scmp.eq.s32.totalorder %s15, 3
    %p111 = por %p109, %p110
    %p113 = scmp.ne.s32.totalorder %s96, %s112
    %p114 = scmp.eq.s32.totalorder %s15, 0
    %p115 = por %p113, %p114
    %s116 = ssub.s32 %s16, %s35
    %s117 = ssub.s32 %s18, %s27
    %s118 = sor.u32 %s116, %s117
    %s119 = ssub.s32 %s17, %s31
    %s120 = sor.u32 %s118, %s119
    %p121 = scmp.eq.s32.totalorder %s120, 0
    %s123 = sadd.s32 %s122, 1
    %s124 = scalar_select %p121, %s122, %s123
    %p127 = pneg %p121
    %p128 = scmp.eq.s32.totalorder %s9, 3
    %p129 = por %p127, %p128
    %p130 = scmp.ne.s32.totalorder %s122, %s125
    %p131 = scmp.eq.s32.totalorder %s9, 0
    %p132 = por %p130, %p131
    %p133 = scmp.ne.s32.totalorder %s122, %s125
    %p134 = scmp.eq.s32.totalorder %s14, 3
    %p135 = por %p133, %p134
    %p136 = scmp.ne.s32.totalorder %s125, %s126
    %p137 = scmp.eq.s32.totalorder %s14, 0
    %p138 = por %p136, %p137
    %p139 = scmp.ne.s32.totalorder %s125, %s126
    %p140 = scmp.eq.s32.totalorder %s15, 3
    %p141 = por %p139, %p140
    %p143 = scmp.ne.s32.totalorder %s126, %s142
    %p144 = scmp.eq.s32.totalorder %s15, 0
    %p145 = por %p143, %p144
    %p146 = scmp.le.s32.totalorder 1, %s9
    %p147 = scmp.lt.s32.totalorder %s9, 5
    %p148 = pnand %p146, %p147
    %p149 = pneg %p148
    // Predicated region
    $region9: #{_lambda_.3} parent=5 // pred_check
      _
    $region10: #{_lambda_.3} parent=5 // pred_check_branch
      %151 = sbr.rel (%p148) target = $region12
    $region11: #{_lambda_.3} parent=5 // pred_region
      %s152 = ssub.s32 %s9, 1
      // Predicated region
      $region13: #{_lambda_.3} parent=11 // pred_check
        %p153 = pneg %p82
      $region14: #{_lambda_.3} parent=11 // pred_check_branch
        %155 = sbr.rel (%p153) target = $region16
      $region15: #{_lambda_.3} parent=11 // pred_region
        %p156 = scmp.lt.s32.totalorder %s20, 0
        %s157 = scalar_select %p156, %s20, 0
        %s158 = smul.addr %s157, 4
        %s159 = scalar_lea.vmem %s1, %s158
      $region16: #{_lambda_.3} parent=11 // pred_fallthru
        _
      // Predicated region
      $region17: #{_lambda_.3} parent=11 // pred_check
        %p160 = pneg %p108
      $region18: #{_lambda_.3} parent=11 // pred_check_branch
        %162 = sbr.rel (%p160) target = $region20
      $region19: #{_lambda_.3} parent=11 // pred_region
        %p163 = scmp.lt.s32.totalorder %s20, 0
        %s164 = scalar_select %p163, %s20, 0
        %s165 = scalar_lea.vmem %s2, %s164
      $region20: #{_lambda_.3} parent=11 // pred_fallthru
        _
    $region12: #{_lambda_.3} parent=5 // pred_fallthru
      _
    %p166 = scmp.lt.s32.totalorder %s9, 4
    // Predicated region
    $region21: #{_lambda_.3} parent=5 // pred_check
      %p167 = pneg %p166
    $region22: #{_lambda_.3} parent=5 // pred_check_branch
      %169 = sbr.rel (%p167) target = $region24
    $region23: #{_lambda_.3} parent=5 // pred_region
      // Predicated region
      $region25: #{_lambda_.3} parent=23 // pred_check
        %p170 = pneg %p50
      $region26: #{_lambda_.3} parent=23 // pred_check_branch
        %172 = sbr.rel (%p170) target = $region28
      $region27: #{_lambda_.3} parent=23 // pred_region
        %s173 = smul.u32 64, %s18
        %p174 = scmp.lt.s32.totalorder %s16, 1
        %s175 = scalar_select %p174, %s16, 1
        %p176 = scmp.lt.s32.totalorder %s173, 127
        %s177 = scalar_select %p176, %s173, 127
        %s178 = smul.addr %s175, 128
        %s179 = sadd.s32 %s177, %s178
        %s180 = smul.addr %s179, 4
        %s181 = scalar_lea.vmem %s0, %s180
        %s182 = smul.u32 64, %s18
      $region28: #{_lambda_.3} parent=23 // pred_fallthru
        _
    $region24: #{_lambda_.3} parent=5 // pred_fallthru
      _
    %p183 = scmp.le.s32.totalorder 1, %s9
    %p184 = scmp.lt.s32.totalorder %s9, 5
    %p185 = pnand %p183, %p184
    %p186 = pneg %p185
    // Predicated region
    $region29: #{_lambda_.3} parent=5 // pred_check
      _
    $region30: #{_lambda_.3} parent=5 // pred_check_branch
      %188 = sbr.rel (%p185) target = $region32
    $region31: #{_lambda_.3} parent=5 // pred_region
      %s189 = ssub.s32 %s9, 1
      %s190 = smul.u32 64, %s21
      %p191 = scmp.lt.s32.totalorder %s19, 1
      %s192 = scalar_select %p191, %s19, 1
      %p193 = scmp.lt.s32.totalorder %s190, 127
      %s194 = scalar_select %p193, %s190, 127
      %s195 = smul.addr %s192, 128
      %s196 = sadd.s32 %s194, %s195
      %s197 = smul.addr %s196, 4
      %s198 = scalar_lea.vmem %s0, %s197
      %p199 = pneg %p56
      %p200 = pneg %p53
      %p201 = scmp.lt.s32.totalorder %s20, 0
      %s202 = scalar_select %p201, %s20, 0
      %s203 = smul.addr %s202, 4
      %s204 = scalar_lea.vmem %s1, %s203
      %p205 = pneg %p82
      %p206 = pneg %p79
      %p207 = scmp.lt.s32.totalorder %s20, 0
      %s208 = scalar_select %p207, %s20, 0
      %s209 = scalar_lea.vmem %s2, %s208
      %p210 = pneg %p108
      %p211 = pneg %p105
      %p212 = pneg %p138
      %p213 = pneg %p135
      %s214 = smul.u32 64, %s21
      %p215 = scmp.lt.s32.totalorder %s19, 1
      %s216 = scalar_select %p215, %s19, 1
      %p217 = scmp.lt.s32.totalorder %s214, 127
      %s218 = scalar_select %p217, %s214, 127
      %p219 = scmp.lt.s32.totalorder %s20, 0
      %s220 = scalar_select %p219, %s20, 0
      %s221 = sadd.s32 %s220, %s218
      %s222 = smul.addr %s216, 128
      %s223 = sadd.s32 %s221, %s222
      %s224 = smul.addr %s223, 4
      %s225 = scalar_lea.vmem %s3, %s224
      %s226 = smul.u32 64, %s21
      %p227 = scmp.lt.s32.totalorder %s19, 1
      %s228 = scalar_select %p227, %s19, 1
      %p229 = scmp.lt.s32.totalorder %s226, 127
      %s230 = scalar_select %p229, %s226, 127
      %s231 = smul.addr %s228, 128
      %s232 = sadd.s32 %s230, %s231
      %s233 = smul.addr %s232, 4
      %s234 = scalar_lea.vmem %s0, %s233
      %s235 = smul.u32 64, %s21
      %p236 = scmp.lt.s32.totalorder %s20, 0
      %s237 = scalar_select %p236, %s20, 0
      %s238 = smul.addr %s237, 4
      %s239 = scalar_lea.vmem %s1, %s238
      %p240 = scmp.lt.s32.totalorder %s20, 0
      %s241 = scalar_select %p240, %s20, 0
      %s242 = scalar_lea.vmem %s2, %s241
      %s243 = smul.u32 64, %s21
      %p244 = scmp.lt.s32.totalorder %s19, 1
      %s245 = scalar_select %p244, %s19, 1
      %p246 = scmp.lt.s32.totalorder %s243, 127
      %s247 = scalar_select %p246, %s243, 127
      %p248 = scmp.lt.s32.totalorder %s20, 0
      %s249 = scalar_select %p248, %s20, 0
      %s250 = sadd.s32 %s249, %s247
      %s251 = smul.addr %s245, 128
      %s252 = sadd.s32 %s250, %s251
      %s253 = smul.addr %s252, 4
      %s254 = scalar_lea.vmem %s3, %s253
      %s255 = smul.u32 64, %s21
      %v256 = vld [vmem:[%s234] sm:$0xf]
      %v257 = vld [vmem:[%s234 + $0x4] sm:$0xf]
      %v258 = vld [vmem:[%s234 + $0x8] sm:$0xf]
      %v259 = vld [vmem:[%s234 + $0xc] sm:$0xf]
      %v260 = vld [vmem:[%s234 + $0x10] sm:$0xf]
      %v261 = vld [vmem:[%s234 + $0x14] sm:$0xf]
      %v262 = vld [vmem:[%s234 + $0x18] sm:$0xf]
      %v263 = vld [vmem:[%s234 + $0x1c] sm:$0xf]
      %v264 = vld [vmem:[%s234 + $0x20] sm:$0xf]
      %v265 = vld [vmem:[%s234 + $0x24] sm:$0xf]
      %v266 = vld [vmem:[%s234 + $0x28] sm:$0xf]
      %v267 = vld [vmem:[%s234 + $0x2c] sm:$0xf]
      %v268 = vld [vmem:[%s234 + $0x30] sm:$0xf]
      %v269 = vld [vmem:[%s234 + $0x34] sm:$0xf]
      %v270 = vld [vmem:[%s234 + $0x38] sm:$0xf]
      %v271 = vld [vmem:[%s234 + $0x3c] sm:$0xf]
      %v272 = vld [vmem:[%s234 + $0x40] sm:$0xf]
      %v273 = vld [vmem:[%s234 + $0x44] sm:$0xf]
      %v274 = vld [vmem:[%s234 + $0x48] sm:$0xf]
      %v275 = vld [vmem:[%s234 + $0x4c] sm:$0xf]
      %v276 = vld [vmem:[%s234 + $0x50] sm:$0xf]
      %v277 = vld [vmem:[%s234 + $0x54] sm:$0xf]
      %v278 = vld [vmem:[%s234 + $0x58] sm:$0xf]
      %v279 = vld [vmem:[%s234 + $0x5c] sm:$0xf]
      %v280 = vld [vmem:[%s234 + $0x60] sm:$0xf]
      %v281 = vld [vmem:[%s234 + $0x64] sm:$0xf]
      %v282 = vld [vmem:[%s234 + $0x68] sm:$0xf]
      %v283 = vld [vmem:[%s234 + $0x6c] sm:$0xf]
      %v284 = vld [vmem:[%s234 + $0x70] sm:$0xf]
      %v285 = vld [vmem:[%s234 + $0x74] sm:$0xf]
      %v286 = vld [vmem:[%s234 + $0x78] sm:$0xf]
      %v287 = vld [vmem:[%s234 + $0x7c] sm:$0xf]
      %v288 = vld [vmem:[%s234 + $0x80] sm:$0xf]
      %v289 = vld [vmem:[%s234 + $0x84] sm:$0xf]
      %v290 = vld [vmem:[%s234 + $0x88] sm:$0xf]
      %v291 = vld [vmem:[%s234 + $0x8c] sm:$0xf]
      %v292 = vld [vmem:[%s234 + $0x90] sm:$0xf]
      %v293 = vld [vmem:[%s234 + $0x94] sm:$0xf]
      %v294 = vld [vmem:[%s234 + $0x98] sm:$0xf]
      %v295 = vld [vmem:[%s234 + $0x9c] sm:$0xf]
      %v296 = vld [vmem:[%s234 + $0xa0] sm:$0xf]
      %v297 = vld [vmem:[%s234 + $0xa4] sm:$0xf]
      %v298 = vld [vmem:[%s234 + $0xa8] sm:$0xf]
      %v299 = vld [vmem:[%s234 + $0xac] sm:$0xf]
      %v300 = vld [vmem:[%s234 + $0xb0] sm:$0xf]
      %v301 = vld [vmem:[%s234 + $0xb4] sm:$0xf]
      %v302 = vld [vmem:[%s234 + $0xb8] sm:$0xf]
      %v303 = vld [vmem:[%s234 + $0xbc] sm:$0xf]
      %v304 = vld [vmem:[%s234 + $0xc0] sm:$0xf]
      %v305 = vld [vmem:[%s234 + $0xc4] sm:$0xf]
      %v306 = vld [vmem:[%s234 + $0xc8] sm:$0xf]
      %v307 = vld [vmem:[%s234 + $0xcc] sm:$0xf]
      %v308 = vld [vmem:[%s234 + $0xd0] sm:$0xf]
      %v309 = vld [vmem:[%s234 + $0xd4] sm:$0xf]
      %v310 = vld [vmem:[%s234 + $0xd8] sm:$0xf]
      %v311 = vld [vmem:[%s234 + $0xdc] sm:$0xf]
      %v312 = vld [vmem:[%s234 + $0xe0] sm:$0xf]
      %v313 = vld [vmem:[%s234 + $0xe4] sm:$0xf]
      %v314 = vld [vmem:[%s234 + $0xe8] sm:$0xf]
      %v315 = vld [vmem:[%s234 + $0xec] sm:$0xf]
      %v316 = vld [vmem:[%s234 + $0xf0] sm:$0xf]
      %v317 = vld [vmem:[%s234 + $0xf4] sm:$0xf]
      %v318 = vld [vmem:[%s234 + $0xf8] sm:$0xf]
      %v319 = vld [vmem:[%s234 + $0xfc] sm:$0xf]
      %v320 = vld [vmem:[%s239] sm:$0xf]
      %v321 = vld [vmem:[%s239 + $0x4] sm:$0xf]
      %v322 = vld [vmem:[%s239 + $0x8] sm:$0xf]
      %v323 = vld [vmem:[%s239 + $0xc] sm:$0xf]
      %v324 = vld [vmem:[%s239 + $0x10] sm:$0xf]
      %v325 = vld [vmem:[%s239 + $0x14] sm:$0xf]
      %v326 = vld [vmem:[%s239 + $0x18] sm:$0xf]
      %v327 = vld [vmem:[%s239 + $0x1c] sm:$0xf]
      %v328 = vld [vmem:[%s239 + $0x20] sm:$0xf]
      %v329 = vld [vmem:[%s239 + $0x24] sm:$0xf]
      %v330 = vld [vmem:[%s239 + $0x28] sm:$0xf]
      %v331 = vld [vmem:[%s239 + $0x2c] sm:$0xf]
      %v332 = vld [vmem:[%s239 + $0x30] sm:$0xf]
      %v333 = vld [vmem:[%s239 + $0x34] sm:$0xf]
      %v334 = vld [vmem:[%s239 + $0x38] sm:$0xf]
      %v335 = vld [vmem:[%s239 + $0x3c] sm:$0xf]
      %v336 = vld [vmem:[%s242] sm:$0x1]
      %v338 = vperm.slane %v336, 0
      %v404 = vunpack.c.l.b16 %v256
      %v405 = vunpack.c.l.b16 %v257
      %v406 = vunpack.c.l.b16 %v258
      %v407 = vunpack.c.l.b16 %v259
      %v408 = vunpack.c.l.b16 %v260
      %v409 = vunpack.c.l.b16 %v261
      %v410 = vunpack.c.l.b16 %v262
      %v411 = vunpack.c.l.b16 %v263
      %v412 = vunpack.c.l.b16 %v264
      %v413 = vunpack.c.l.b16 %v265
      %v414 = vunpack.c.l.b16 %v266
      %v415 = vunpack.c.l.b16 %v267
      %v416 = vunpack.c.l.b16 %v268
      %v417 = vunpack.c.l.b16 %v269
      %v418 = vunpack.c.l.b16 %v270
      %v419 = vunpack.c.l.b16 %v271
      %v420 = vunpack.c.l.b16 %v272
      %v421 = vunpack.c.l.b16 %v273
      %v422 = vunpack.c.l.b16 %v274
      %v423 = vunpack.c.l.b16 %v275
      %v424 = vunpack.c.l.b16 %v276
      %v425 = vunpack.c.l.b16 %v277
      %v426 = vunpack.c.l.b16 %v278
      %v427 = vunpack.c.l.b16 %v279
      %v428 = vunpack.c.l.b16 %v280
      %v429 = vunpack.c.l.b16 %v281
      %v430 = vunpack.c.l.b16 %v282
      %v431 = vunpack.c.l.b16 %v283
      %v432 = vunpack.c.l.b16 %v284
      %v433 = vunpack.c.l.b16 %v285
      %v434 = vunpack.c.l.b16 %v286
      %v435 = vunpack.c.l.b16 %v287
      %v436 = vunpack.c.l.b16 %v288
      %v437 = vunpack.c.l.b16 %v289
      %v438 = vunpack.c.l.b16 %v290
      %v439 = vunpack.c.l.b16 %v291
      %v440 = vunpack.c.l.b16 %v292
      %v441 = vunpack.c.l.b16 %v293
      %v442 = vunpack.c.l.b16 %v294
      %v443 = vunpack.c.l.b16 %v295
      %v444 = vunpack.c.l.b16 %v296
      %v445 = vunpack.c.l.b16 %v297
      %v446 = vunpack.c.l.b16 %v298
      %v447 = vunpack.c.l.b16 %v299
      %v448 = vunpack.c.l.b16 %v300
      %v449 = vunpack.c.l.b16 %v301
      %v450 = vunpack.c.l.b16 %v302
      %v451 = vunpack.c.l.b16 %v303
      %v452 = vunpack.c.l.b16 %v304
      %v453 = vunpack.c.l.b16 %v305
      %v454 = vunpack.c.l.b16 %v306
      %v455 = vunpack.c.l.b16 %v307
      %v456 = vunpack.c.l.b16 %v308
      %v457 = vunpack.c.l.b16 %v309
      %v458 = vunpack.c.l.b16 %v310
      %v459 = vunpack.c.l.b16 %v311
      %v460 = vunpack.c.l.b16 %v312
      %v461 = vunpack.c.l.b16 %v313
      %v462 = vunpack.c.l.b16 %v314
      %v463 = vunpack.c.l.b16 %v315
      %v464 = vunpack.c.l.b16 %v316
      %v465 = vunpack.c.l.b16 %v317
      %v466 = vunpack.c.l.b16 %v318
      %v467 = vunpack.c.l.b16 %v319
      %v468 = vpack.c.b16 %v405, %v404
      %v469 = vpack.c.b16 %v407, %v406
      %v470 = vpack.c.b16 %v409, %v408
      %v471 = vpack.c.b16 %v411, %v410
      %v472 = vpack.c.b16 %v413, %v412
      %v473 = vpack.c.b16 %v415, %v414
      %v474 = vpack.c.b16 %v417, %v416
      %v475 = vpack.c.b16 %v419, %v418
      %v476 = vpack.c.b16 %v421, %v420
      %v477 = vpack.c.b16 %v423, %v422
      %v478 = vpack.c.b16 %v425, %v424
      %v479 = vpack.c.b16 %v427, %v426
      %v480 = vpack.c.b16 %v429, %v428
      %v481 = vpack.c.b16 %v431, %v430
      %v482 = vpack.c.b16 %v433, %v432
      %v483 = vpack.c.b16 %v435, %v434
      %v484 = vpack.c.b16 %v437, %v436
      %v485 = vpack.c.b16 %v439, %v438
      %v486 = vpack.c.b16 %v441, %v440
      %v487 = vpack.c.b16 %v443, %v442
      %v488 = vpack.c.b16 %v445, %v444
      %v489 = vpack.c.b16 %v447, %v446
      %v490 = vpack.c.b16 %v449, %v448
      %v491 = vpack.c.b16 %v451, %v450
      %v492 = vpack.c.b16 %v453, %v452
      %v493 = vpack.c.b16 %v455, %v454
      %v494 = vpack.c.b16 %v457, %v456
      %v495 = vpack.c.b16 %v459, %v458
      %v496 = vpack.c.b16 %v461, %v460
      %v497 = vpack.c.b16 %v463, %v462
      %v498 = vpack.c.b16 %v465, %v464
      %v499 = vpack.c.b16 %v467, %v466
      %v548 = vunpack.c.l.b16 %v320
      %v549 = vunpack.c.l.b16 %v321
      %v550 = vunpack.c.l.b16 %v322
      %v551 = vunpack.c.l.b16 %v323
      %v552 = vunpack.c.l.b16 %v324
      %v553 = vunpack.c.l.b16 %v325
      %v554 = vunpack.c.l.b16 %v326
      %v555 = vunpack.c.l.b16 %v327
      %v556 = vunpack.c.l.b16 %v328
      %v557 = vunpack.c.l.b16 %v329
      %v558 = vunpack.c.l.b16 %v330
      %v559 = vunpack.c.l.b16 %v331
      %v560 = vunpack.c.l.b16 %v332
      %v561 = vunpack.c.l.b16 %v333
      %v562 = vunpack.c.l.b16 %v334
      %v563 = vunpack.c.l.b16 %v335
      %v564 = vpack.c.b16 %v549, %v548
      %v565 = vpack.c.b16 %v551, %v550
      %v566 = vpack.c.b16 %v553, %v552
      %v567 = vpack.c.b16 %v555, %v554
      %v568 = vpack.c.b16 %v557, %v556
      %v569 = vpack.c.b16 %v559, %v558
      %v570 = vpack.c.b16 %v561, %v560
      %v571 = vpack.c.b16 %v563, %v562
      %580 = vmatpush.bf16.msra.mxu0 %v571
      %581 = vmatpush.bf16.msra.mxu0 %v570
      %582 = vmatpush.bf16.msra.mxu0 %v569
      %583 = vmatpush.bf16.msra.mxu0 %v568
      %584 = vmatpush.bf16.msra.mxu0 %v567
      %585 = vmatpush.bf16.msra.mxu0 %v566
      %586 = vmatpush.bf16.msra.mxu0 %v565
      %587 = vmatpush.bf16.msra.mxu0 %v564
      %588 = vmatmul.bf16.gmra.mxu0 %v468
      %v589 = vpop.f32.mrf.mxu0
      %v590 = vadd.f32 %v338, %v589
      %v591 = vpop.f32.mrf.mxu0
      %v592 = vadd.f32 %v338, %v591
      %593 = vmatmul.bf16.gmra.mxu0 %v469
      %v594 = vpop.f32.mrf.mxu0
      %v595 = vadd.f32 %v338, %v594
      %v596 = vpop.f32.mrf.mxu0
      %v597 = vadd.f32 %v338, %v596
      %598 = vmatmul.bf16.gmra.mxu0 %v470
      %v599 = vpop.f32.mrf.mxu0
      %v600 = vadd.f32 %v338, %v599
      %v601 = vpop.f32.mrf.mxu0
      %v602 = vadd.f32 %v338, %v601
      %603 = vmatmul.bf16.gmra.mxu0 %v471
      %v604 = vpop.f32.mrf.mxu0
      %v605 = vadd.f32 %v338, %v604
      %v606 = vpop.f32.mrf.mxu0
      %v607 = vadd.f32 %v338, %v606
      %608 = vmatmul.bf16.gmra.mxu0 %v472
      %v609 = vpop.f32.mrf.mxu0
      %v610 = vadd.f32 %v338, %v609
      %v611 = vpop.f32.mrf.mxu0
      %v612 = vadd.f32 %v338, %v611
      %613 = vmatmul.bf16.gmra.mxu0 %v473
      %v614 = vpop.f32.mrf.mxu0
      %v615 = vadd.f32 %v338, %v614
      %v616 = vpop.f32.mrf.mxu0
      %v617 = vadd.f32 %v338, %v616
      %618 = vmatmul.bf16.gmra.mxu0 %v474
      %v619 = vpop.f32.mrf.mxu0
      %v620 = vadd.f32 %v338, %v619
      %v621 = vpop.f32.mrf.mxu0
      %v622 = vadd.f32 %v338, %v621
      %623 = vmatmul.bf16.gmra.mxu0 %v475
      %v624 = vpop.f32.mrf.mxu0
      %v625 = vadd.f32 %v338, %v624
      %v626 = vpop.f32.mrf.mxu0
      %v627 = vadd.f32 %v338, %v626
      %628 = vmatmul.bf16.gmra.mxu0 %v476
      %v629 = vpop.f32.mrf.mxu0
      %v630 = vadd.f32 %v338, %v629
      %v631 = vpop.f32.mrf.mxu0
      %v632 = vadd.f32 %v338, %v631
      %633 = vmatmul.bf16.gmra.mxu0 %v477
      %v634 = vpop.f32.mrf.mxu0
      %v635 = vadd.f32 %v338, %v634
      %v636 = vpop.f32.mrf.mxu0
      %v637 = vadd.f32 %v338, %v636
      %638 = vmatmul.bf16.gmra.mxu0 %v478
      %v639 = vpop.f32.mrf.mxu0
      %v640 = vadd.f32 %v338, %v639
      %v641 = vpop.f32.mrf.mxu0
      %v642 = vadd.f32 %v338, %v641
      %643 = vmatmul.bf16.gmra.mxu0 %v479
      %v644 = vpop.f32.mrf.mxu0
      %v645 = vadd.f32 %v338, %v644
      %v646 = vpop.f32.mrf.mxu0
      %v647 = vadd.f32 %v338, %v646
      %648 = vmatmul.bf16.gmra.mxu0 %v480
      %v649 = vpop.f32.mrf.mxu0
      %v650 = vadd.f32 %v338, %v649
      %v651 = vpop.f32.mrf.mxu0
      %v652 = vadd.f32 %v338, %v651
      %653 = vmatmul.bf16.gmra.mxu0 %v481
      %v654 = vpop.f32.mrf.mxu0
      %v655 = vadd.f32 %v338, %v654
      %v656 = vpop.f32.mrf.mxu0
      %v657 = vadd.f32 %v338, %v656
      %658 = vmatmul.bf16.gmra.mxu0 %v482
      %v659 = vpop.f32.mrf.mxu0
      %v660 = vadd.f32 %v338, %v659
      %v661 = vpop.f32.mrf.mxu0
      %v662 = vadd.f32 %v338, %v661
      %663 = vmatmul.bf16.gmra.mxu0 %v483
      %v664 = vpop.f32.mrf.mxu0
      %v665 = vadd.f32 %v338, %v664
      %v666 = vpop.f32.mrf.mxu0
      %v667 = vadd.f32 %v338, %v666
      %668 = vmatmul.bf16.gmra.mxu0 %v484
      %v669 = vpop.f32.mrf.mxu0
      %v670 = vadd.f32 %v338, %v669
      %v671 = vpop.f32.mrf.mxu0
      %v672 = vadd.f32 %v338, %v671
      %673 = vmatmul.bf16.gmra.mxu0 %v485
      %v674 = vpop.f32.mrf.mxu0
      %v675 = vadd.f32 %v338, %v674
      %v676 = vpop.f32.mrf.mxu0
      %v677 = vadd.f32 %v338, %v676
      %678 = vmatmul.bf16.gmra.mxu0 %v486
      %v679 = vpop.f32.mrf.mxu0
      %v680 = vadd.f32 %v338, %v679
      %v681 = vpop.f32.mrf.mxu0
      %v682 = vadd.f32 %v338, %v681
      %683 = vmatmul.bf16.gmra.mxu0 %v487
      %v684 = vpop.f32.mrf.mxu0
      %v685 = vadd.f32 %v338, %v684
      %v686 = vpop.f32.mrf.mxu0
      %v687 = vadd.f32 %v338, %v686
      %688 = vmatmul.bf16.gmra.mxu0 %v488
      %v689 = vpop.f32.mrf.mxu0
      %v690 = vadd.f32 %v338, %v689
      %v691 = vpop.f32.mrf.mxu0
      %v692 = vadd.f32 %v338, %v691
      %693 = vmatmul.bf16.gmra.mxu0 %v489
      %v694 = vpop.f32.mrf.mxu0
      %v695 = vadd.f32 %v338, %v694
      %v696 = vpop.f32.mrf.mxu0
      %v697 = vadd.f32 %v338, %v696
      %698 = vmatmul.bf16.gmra.mxu0 %v490
      %v699 = vpop.f32.mrf.mxu0
      %v700 = vadd.f32 %v338, %v699
      %v701 = vpop.f32.mrf.mxu0
      %v702 = vadd.f32 %v338, %v701
      %703 = vmatmul.bf16.gmra.mxu0 %v491
      %v704 = vpop.f32.mrf.mxu0
      %v705 = vadd.f32 %v338, %v704
      %v706 = vpop.f32.mrf.mxu0
      %v707 = vadd.f32 %v338, %v706
      %708 = vmatmul.bf16.gmra.mxu0 %v492
      %v709 = vpop.f32.mrf.mxu0
      %v710 = vadd.f32 %v338, %v709
      %v711 = vpop.f32.mrf.mxu0
      %v712 = vadd.f32 %v338, %v711
      %713 = vmatmul.bf16.gmra.mxu0 %v493
      %v714 = vpop.f32.mrf.mxu0
      %v715 = vadd.f32 %v338, %v714
      %v716 = vpop.f32.mrf.mxu0
      %v717 = vadd.f32 %v338, %v716
      %718 = vmatmul.bf16.gmra.mxu0 %v494
      %v719 = vpop.f32.mrf.mxu0
      %v720 = vadd.f32 %v338, %v719
      %v721 = vpop.f32.mrf.mxu0
      %v722 = vadd.f32 %v338, %v721
      %723 = vmatmul.bf16.gmra.mxu0 %v495
      %v724 = vpop.f32.mrf.mxu0
      %v725 = vadd.f32 %v338, %v724
      %v726 = vpop.f32.mrf.mxu0
      %v727 = vadd.f32 %v338, %v726
      %728 = vmatmul.bf16.gmra.mxu0 %v496
      %v729 = vpop.f32.mrf.mxu0
      %v730 = vadd.f32 %v338, %v729
      %v731 = vpop.f32.mrf.mxu0
      %v732 = vadd.f32 %v338, %v731
      %733 = vmatmul.bf16.gmra.mxu0 %v497
      %v734 = vpop.f32.mrf.mxu0
      %v735 = vadd.f32 %v338, %v734
      %v736 = vpop.f32.mrf.mxu0
      %v737 = vadd.f32 %v338, %v736
      %738 = vmatmul.bf16.gmra.mxu0 %v498
      %v739 = vpop.f32.mrf.mxu0
      %v740 = vadd.f32 %v338, %v739
      %v741 = vpop.f32.mrf.mxu0
      %v742 = vadd.f32 %v338, %v741
      %743 = vmatmul.bf16.gmra.mxu0 %v499
      %v744 = vpop.f32.mrf.mxu0
      %v745 = vadd.f32 %v338, %v744
      %v746 = vpop.f32.mrf.mxu0
      %v747 = vadd.f32 %v338, %v746
      %748 = vdwg.mxu0
      %v749 = vmax.f32 %v590, 0.0
      %v750 = vmax.f32 %v592, 0.0
      %v751 = vmax.f32 %v595, 0.0
      %v752 = vmax.f32 %v597, 0.0
      %v753 = vmax.f32 %v600, 0.0
      %v754 = vmax.f32 %v602, 0.0
      %v755 = vmax.f32 %v605, 0.0
      %v756 = vmax.f32 %v607, 0.0
      %v757 = vmax.f32 %v610, 0.0
      %v758 = vmax.f32 %v612, 0.0
      %v759 = vmax.f32 %v615, 0.0
      %v760 = vmax.f32 %v617, 0.0
      %v761 = vmax.f32 %v620, 0.0
      %v762 = vmax.f32 %v622, 0.0
      %v763 = vmax.f32 %v625, 0.0
      %v764 = vmax.f32 %v627, 0.0
      %v765 = vmax.f32 %v630, 0.0
      %v766 = vmax.f32 %v632, 0.0
      %v767 = vmax.f32 %v635, 0.0
      %v768 = vmax.f32 %v637, 0.0
      %v769 = vmax.f32 %v640, 0.0
      %v770 = vmax.f32 %v642, 0.0
      %v771 = vmax.f32 %v645, 0.0
      %v772 = vmax.f32 %v647, 0.0
      %v773 = vmax.f32 %v650, 0.0
      %v774 = vmax.f32 %v652, 0.0
      %v775 = vmax.f32 %v655, 0.0
      %v776 = vmax.f32 %v657, 0.0
      %v777 = vmax.f32 %v660, 0.0
      %v778 = vmax.f32 %v662, 0.0
      %v779 = vmax.f32 %v665, 0.0
      %v780 = vmax.f32 %v667, 0.0
      %v781 = vmax.f32 %v670, 0.0
      %v782 = vmax.f32 %v672, 0.0
      %v783 = vmax.f32 %v675, 0.0
      %v784 = vmax.f32 %v677, 0.0
      %v785 = vmax.f32 %v680, 0.0
      %v786 = vmax.f32 %v682, 0.0
      %v787 = vmax.f32 %v685, 0.0
      %v788 = vmax.f32 %v687, 0.0
      %v789 = vmax.f32 %v690, 0.0
      %v790 = vmax.f32 %v692, 0.0
      %v791 = vmax.f32 %v695, 0.0
      %v792 = vmax.f32 %v697, 0.0
      %v793 = vmax.f32 %v700, 0.0
      %v794 = vmax.f32 %v702, 0.0
      %v795 = vmax.f32 %v705, 0.0
      %v796 = vmax.f32 %v707, 0.0
      %v797 = vmax.f32 %v710, 0.0
      %v798 = vmax.f32 %v712, 0.0
      %v799 = vmax.f32 %v715, 0.0
      %v800 = vmax.f32 %v717, 0.0
      %v801 = vmax.f32 %v720, 0.0
      %v802 = vmax.f32 %v722, 0.0
      %v803 = vmax.f32 %v725, 0.0
      %v804 = vmax.f32 %v727, 0.0
      %v805 = vmax.f32 %v730, 0.0
      %v806 = vmax.f32 %v732, 0.0
      %v807 = vmax.f32 %v735, 0.0
      %v808 = vmax.f32 %v737, 0.0
      %v809 = vmax.f32 %v740, 0.0
      %v810 = vmax.f32 %v742, 0.0
      %v811 = vmax.f32 %v745, 0.0
      %v812 = vmax.f32 %v747, 0.0
      %v813 = vpack.c.bf16 %v749, %v749
      %v814 = vpack.c.bf16 %v750, %v750
      %v815 = vpack.c.bf16 %v751, %v751
      %v816 = vpack.c.bf16 %v752, %v752
      %v817 = vpack.c.bf16 %v753, %v753
      %v818 = vpack.c.bf16 %v754, %v754
      %v819 = vpack.c.bf16 %v755, %v755
      %v820 = vpack.c.bf16 %v756, %v756
      %v821 = vpack.c.bf16 %v757, %v757
      %v822 = vpack.c.bf16 %v758, %v758
      %v823 = vpack.c.bf16 %v759, %v759
      %v824 = vpack.c.bf16 %v760, %v760
      %v825 = vpack.c.bf16 %v761, %v761
      %v826 = vpack.c.bf16 %v762, %v762
      %v827 = vpack.c.bf16 %v763, %v763
      %v828 = vpack.c.bf16 %v764, %v764
      %v829 = vpack.c.bf16 %v765, %v765
      %v830 = vpack.c.bf16 %v766, %v766
      %v831 = vpack.c.bf16 %v767, %v767
      %v832 = vpack.c.bf16 %v768, %v768
      %v833 = vpack.c.bf16 %v769, %v769
      %v834 = vpack.c.bf16 %v770, %v770
      %v835 = vpack.c.bf16 %v771, %v771
      %v836 = vpack.c.bf16 %v772, %v772
      %v837 = vpack.c.bf16 %v773, %v773
      %v838 = vpack.c.bf16 %v774, %v774
      %v839 = vpack.c.bf16 %v775, %v775
      %v840 = vpack.c.bf16 %v776, %v776
      %v841 = vpack.c.bf16 %v777, %v777
      %v842 = vpack.c.bf16 %v778, %v778
      %v843 = vpack.c.bf16 %v779, %v779
      %v844 = vpack.c.bf16 %v780, %v780
      %v845 = vpack.c.bf16 %v781, %v781
      %v846 = vpack.c.bf16 %v782, %v782
      %v847 = vpack.c.bf16 %v783, %v783
      %v848 = vpack.c.bf16 %v784, %v784
      %v849 = vpack.c.bf16 %v785, %v785
      %v850 = vpack.c.bf16 %v786, %v786
      %v851 = vpack.c.bf16 %v787, %v787
      %v852 = vpack.c.bf16 %v788, %v788
      %v853 = vpack.c.bf16 %v789, %v789
      %v854 = vpack.c.bf16 %v790, %v790
      %v855 = vpack.c.bf16 %v791, %v791
      %v856 = vpack.c.bf16 %v792, %v792
      %v857 = vpack.c.bf16 %v793, %v793
      %v858 = vpack.c.bf16 %v794, %v794
      %v859 = vpack.c.bf16 %v795, %v795
      %v860 = vpack.c.bf16 %v796, %v796
      %v861 = vpack.c.bf16 %v797, %v797
      %v862 = vpack.c.bf16 %v798, %v798
      %v863 = vpack.c.bf16 %v799, %v799
      %v864 = vpack.c.bf16 %v800, %v800
      %v865 = vpack.c.bf16 %v801, %v801
      %v866 = vpack.c.bf16 %v802, %v802
      %v867 = vpack.c.bf16 %v803, %v803
      %v868 = vpack.c.bf16 %v804, %v804
      %v869 = vpack.c.bf16 %v805, %v805
      %v870 = vpack.c.bf16 %v806, %v806
      %v871 = vpack.c.bf16 %v807, %v807
      %v872 = vpack.c.bf16 %v808, %v808
      %v873 = vpack.c.bf16 %v809, %v809
      %v874 = vpack.c.bf16 %v810, %v810
      %v875 = vpack.c.bf16 %v811, %v811
      %v876 = vpack.c.bf16 %v812, %v812
      %877 = vst [vmem:[%s254] sm:$0xf] %v813
      %878 = vst [vmem:[%s254 + $0x4] sm:$0xf] %v814
      %879 = vst [vmem:[%s254 + $0x8] sm:$0xf] %v815
      %880 = vst [vmem:[%s254 + $0xc] sm:$0xf] %v816
      %881 = vst [vmem:[%s254 + $0x10] sm:$0xf] %v817
      %882 = vst [vmem:[%s254 + $0x14] sm:$0xf] %v818
      %883 = vst [vmem:[%s254 + $0x18] sm:$0xf] %v819
      %884 = vst [vmem:[%s254 + $0x1c] sm:$0xf] %v820
      %885 = vst [vmem:[%s254 + $0x20] sm:$0xf] %v821
      %886 = vst [vmem:[%s254 + $0x24] sm:$0xf] %v822
      %887 = vst [vmem:[%s254 + $0x28] sm:$0xf] %v823
      %888 = vst [vmem:[%s254 + $0x2c] sm:$0xf] %v824
      %889 = vst [vmem:[%s254 + $0x30] sm:$0xf] %v825
      %890 = vst [vmem:[%s254 + $0x34] sm:$0xf] %v826
      %891 = vst [vmem:[%s254 + $0x38] sm:$0xf] %v827
      %892 = vst [vmem:[%s254 + $0x3c] sm:$0xf] %v828
      %893 = vst [vmem:[%s254 + $0x40] sm:$0xf] %v829
      %894 = vst [vmem:[%s254 + $0x44] sm:$0xf] %v830
      %895 = vst [vmem:[%s254 + $0x48] sm:$0xf] %v831
      %896 = vst [vmem:[%s254 + $0x4c] sm:$0xf] %v832
      %897 = vst [vmem:[%s254 + $0x50] sm:$0xf] %v833
      %898 = vst [vmem:[%s254 + $0x54] sm:$0xf] %v834
      %899 = vst [vmem:[%s254 + $0x58] sm:$0xf] %v835
      %900 = vst [vmem:[%s254 + $0x5c] sm:$0xf] %v836
      %901 = vst [vmem:[%s254 + $0x60] sm:$0xf] %v837
      %902 = vst [vmem:[%s254 + $0x64] sm:$0xf] %v838
      %903 = vst [vmem:[%s254 + $0x68] sm:$0xf] %v839
      %904 = vst [vmem:[%s254 + $0x6c] sm:$0xf] %v840
      %905 = vst [vmem:[%s254 + $0x70] sm:$0xf] %v841
      %906 = vst [vmem:[%s254 + $0x74] sm:$0xf] %v842
      %907 = vst [vmem:[%s254 + $0x78] sm:$0xf] %v843
      %908 = vst [vmem:[%s254 + $0x7c] sm:$0xf] %v844
      %909 = vst [vmem:[%s254 + $0x80] sm:$0xf] %v845
      %910 = vst [vmem:[%s254 + $0x84] sm:$0xf] %v846
      %911 = vst [vmem:[%s254 + $0x88] sm:$0xf] %v847
      %912 = vst [vmem:[%s254 + $0x8c] sm:$0xf] %v848
      %913 = vst [vmem:[%s254 + $0x90] sm:$0xf] %v849
      %914 = vst [vmem:[%s254 + $0x94] sm:$0xf] %v850
      %915 = vst [vmem:[%s254 + $0x98] sm:$0xf] %v851
      %916 = vst [vmem:[%s254 + $0x9c] sm:$0xf] %v852
      %917 = vst [vmem:[%s254 + $0xa0] sm:$0xf] %v853
      %918 = vst [vmem:[%s254 + $0xa4] sm:$0xf] %v854
      %919 = vst [vmem:[%s254 + $0xa8] sm:$0xf] %v855
      %920 = vst [vmem:[%s254 + $0xac] sm:$0xf] %v856
      %921 = vst [vmem:[%s254 + $0xb0] sm:$0xf] %v857
      %922 = vst [vmem:[%s254 + $0xb4] sm:$0xf] %v858
      %923 = vst [vmem:[%s254 + $0xb8] sm:$0xf] %v859
      %924 = vst [vmem:[%s254 + $0xbc] sm:$0xf] %v860
      %925 = vst [vmem:[%s254 + $0xc0] sm:$0xf] %v861
      %926 = vst [vmem:[%s254 + $0xc4] sm:$0xf] %v862
      %927 = vst [vmem:[%s254 + $0xc8] sm:$0xf] %v863
      %928 = vst [vmem:[%s254 + $0xcc] sm:$0xf] %v864
      %929 = vst [vmem:[%s254 + $0xd0] sm:$0xf] %v865
      %930 = vst [vmem:[%s254 + $0xd4] sm:$0xf] %v866
      %931 = vst [vmem:[%s254 + $0xd8] sm:$0xf] %v867
      %932 = vst [vmem:[%s254 + $0xdc] sm:$0xf] %v868
      %933 = vst [vmem:[%s254 + $0xe0] sm:$0xf] %v869
      %934 = vst [vmem:[%s254 + $0xe4] sm:$0xf] %v870
      %935 = vst [vmem:[%s254 + $0xe8] sm:$0xf] %v871
      %936 = vst [vmem:[%s254 + $0xec] sm:$0xf] %v872
      %937 = vst [vmem:[%s254 + $0xf0] sm:$0xf] %v873
      %938 = vst [vmem:[%s254 + $0xf4] sm:$0xf] %v874
      %939 = vst [vmem:[%s254 + $0xf8] sm:$0xf] %v875
      %940 = vst [vmem:[%s254 + $0xfc] sm:$0xf] %v876
      %s941 = smul.u32 64, %s21
      %p942 = scmp.lt.s32.totalorder %s19, 1
      %s943 = scalar_select %p942, %s19, 1
      %p944 = scmp.lt.s32.totalorder %s941, 127
      %s945 = scalar_select %p944, %s941, 127
      %p946 = scmp.lt.s32.totalorder %s20, 0
      %s947 = scalar_select %p946, %s20, 0
      %s948 = sadd.s32 %s947, %s945
      %s949 = smul.addr %s943, 128
      %s950 = sadd.s32 %s948, %s949
      %s951 = smul.addr %s950, 4
      %s952 = scalar_lea.vmem %s3, %s951
      // Predicated region
      $region33: #{_lambda_.3} parent=31 // pred_check
        %p953 = pneg %p135
      $region34: #{_lambda_.3} parent=31 // pred_check_branch
        %955 = sbr.rel (%p953) target = $region36
      $region35: #{_lambda_.3} parent=31 // pred_region
        %s956 = smul.u32 64, %s21
      $region36: #{_lambda_.3} parent=31 // pred_fallthru
        _
    $region32: #{_lambda_.3} parent=5 // pred_fallthru
      _
    %p957 = scmp.le.s32.totalorder 2, %s9
    // Predicated region
    $region37: #{_lambda_.3} parent=5 // pred_check
      %p958 = pneg %p957
    $region38: #{_lambda_.3} parent=5 // pred_check_branch
      %960 = sbr.rel (%p958) target = $region40
    $region39: #{_lambda_.3} parent=5 // pred_region
      %s961 = ssub.s32 %s9, 2
      // Predicated region
      $region41: #{_lambda_.3} parent=39 // pred_check
        %p962 = pneg %p141
      $region42: #{_lambda_.3} parent=39 // pred_check_branch
        %964 = sbr.rel (%p962) target = $region44
      $region43: #{_lambda_.3} parent=39 // pred_region
        %s965 = smul.u32 64, %s24
        %p966 = scmp.lt.s32.totalorder %s22, 1
        %s967 = scalar_select %p966, %s22, 1
        %p968 = scmp.lt.s32.totalorder %s965, 127
        %s969 = scalar_select %p968, %s965, 127
        %p970 = scmp.lt.s32.totalorder %s23, 0
        %s971 = scalar_select %p970, %s23, 0
        %s972 = sadd.s32 %s971, %s969
        %s973 = smul.addr %s967, 128
        %s974 = sadd.s32 %s972, %s973
        %s975 = smul.addr %s974, 4
        %s976 = scalar_lea.vmem %s3, %s975
      $region44: #{_lambda_.3} parent=39 // pred_fallthru
        _
    $region40: #{_lambda_.3} parent=5 // pred_fallthru
      _
  $region6: #{_lambda_.3} parent=0 // loop_footer
    %s13 = sadd.s32 1, %s9
  $region7: #{_lambda_.3} parent=0 // loop_footer_branch
    %8 = sbr.rel target = $region3
  $region8: #{_lambda_.3} parent=0 // loop_exit
    _

// kernel: _lambda_.4
$region0: #{_lambda_.4}
  #allocation0 [shape = 'u32[]', space=smem, size = 0x4, offset = 0x4, fixed_abs, tag = 'smem constant byte address 0x4 - core index']
  #allocation1 [shape = 'u32[72,128]{1,0:T(1,128)}', space=vmem, size = 0x9000, scoped, tag = 'internal scratch']
  %s0 = inlined_call_operand.vmem [shape: bf16[2,256,640], index: 0, kind: input, shape index: {}]
  %s1 = inlined_call_operand.vmem [shape: bf16[640,128], index: 1, kind: input, shape index: {}]
  %s2 = inlined_call_operand.vmem [shape: f32[1,128], index: 2, kind: input, shape index: {}]
  %s3 = inlined_call_operand.vmem [shape: bf16[2,256,128], index: 3, kind: output, shape index: {}]
  %s4 = sld [smem:[#allocation0]]
  $region45: #{_lambda_.4} parent=0
    _
  %s6 = ssub.s32 1, %s4
  %s7 = scalar_select 0, %s6, %s4
  loop: start=0, step=1, limit=4
  $region2: #{_lambda_.4} parent=0 // loop_pre_header
    _
  $region3: #{_lambda_.4} parent=0 // loop_header
    %s9 = sphi 0, %s13
    %p10 = scmp.ge.s32.totalorder %s9, 4
    %s16 = sphi 0, %s35
    %s17 = sphi 0, %s31
    %s18 = sphi 0, %s27
    %s19 = sphi 0, %s16
    %s20 = sphi 0, %s17
    %s21 = sphi 0, %s18
    %s22 = sphi 0, %s19
    %s23 = sphi 0, %s20
    %s24 = sphi 0, %s21
    %s40 = sphi 0, %s42
    %s43 = sphi 0, %s40
    %s44 = sphi 0, %s43
    %s60 = sphi 0, %s44
    %s66 = sphi 0, %s68
    %s69 = sphi 0, %s66
    %s70 = sphi 0, %s69
    %s86 = sphi 0, %s70
    %s92 = sphi 0, %s94
    %s95 = sphi 0, %s92
    %s96 = sphi 0, %s95
    %s112 = sphi 0, %s96
    %s122 = sphi 0, %s124
    %s125 = sphi 0, %s122
    %s126 = sphi 0, %s125
    %s142 = sphi 0, %s126
  $region4: #{_lambda_.4} parent=0 // loop_header_branch
    %12 = sbr.rel (%p10) target = $region8
  $region5: #{_lambda_.4} parent=0 // loop_body
    %s14 = ssub.s32 %s9, 1
    %s15 = ssub.s32 %s9, 2
    %s25 = sadd.s32 1, %s18
    %p26 = scmp.ge.s32.totalorder %s25, 1
    %s27 = scalar_select %p26, 0, %s25
    %s28 = sadd.s32 1, %s17
    %s29 = scalar_select %p26, %s28, %s17
    %p30 = scmp.ge.s32.totalorder %s29, 1
    %s31 = scalar_select %p30, 0, %s29
    %s32 = sadd.s32 1, %s16
    %s33 = scalar_select %p30, %s32, %s16
    %p34 = scmp.ge.s32.totalorder %s33, 2
    %s35 = scalar_select %p34, 0, %s33
    %s36 = ssub.s32 %s16, %s35
    %s37 = ssub.s32 %s18, %s27
    %s38 = sor.u32 %s36, %s37
    %p39 = scmp.eq.s32.totalorder %s38, 0
    %s41 = sadd.s32 %s40, 1
    %s42 = scalar_select %p39, %s40, %s41
    %p45 = pneg %p39
    %p46 = scmp.eq.s32.totalorder %s9, 1
    %p47 = por %p45, %p46
    %p48 = scmp.ne.s32.totalorder %s40, %s43
    %p49 = scmp.eq.s32.totalorder %s9, 0
    %p50 = por %p48, %p49
    %p51 = scmp.ne.s32.totalorder %s40, %s43
    %p52 = scmp.eq.s32.totalorder %s14, 1
    %p53 = por %p51, %p52
    %p54 = scmp.ne.s32.totalorder %s43, %s44
    %p55 = scmp.eq.s32.totalorder %s14, 0
    %p56 = por %p54, %p55
    %p57 = scmp.ne.s32.totalorder %s43, %s44
    %p58 = scmp.eq.s32.totalorder %s15, 1
    %p59 = por %p57, %p58
    %p61 = scmp.ne.s32.totalorder %s44, %s60
    %p62 = scmp.eq.s32.totalorder %s15, 0
    %p63 = por %p61, %p62
    %s64 = ssub.s32 %s17, %s31
    %p65 = scmp.eq.s32.totalorder %s64, 0
    %s67 = sadd.s32 %s66, 1
    %s68 = scalar_select %p65, %s66, %s67
    %p71 = pneg %p65
    %p72 = scmp.eq.s32.totalorder %s9, 1
    %p73 = por %p71, %p72
    %p74 = scmp.ne.s32.totalorder %s66, %s69
    %p75 = scmp.eq.s32.totalorder %s9, 0
    %p76 = por %p74, %p75
    %p77 = scmp.ne.s32.totalorder %s66, %s69
    %p78 = scmp.eq.s32.totalorder %s14, 1
    %p79 = por %p77, %p78
    %p80 = scmp.ne.s32.totalorder %s69, %s70
    %p81 = scmp.eq.s32.totalorder %s14, 0
    %p82 = por %p80, %p81
    %p83 = scmp.ne.s32.totalorder %s69, %s70
    %p84 = scmp.eq.s32.totalorder %s15, 1
    %p85 = por %p83, %p84
    %p87 = scmp.ne.s32.totalorder %s70, %s86
    %p88 = scmp.eq.s32.totalorder %s15, 0
    %p89 = por %p87, %p88
    %s90 = ssub.s32 %s17, %s31
    %p91 = scmp.eq.s32.totalorder %s90, 0
    %s93 = sadd.s32 %s92, 1
    %s94 = scalar_select %p91, %s92, %s93
    %p97 = pneg %p91
    %p98 = scmp.eq.s32.totalorder %s9, 1
    %p99 = por %p97, %p98
    %p100 = scmp.ne.s32.totalorder %s92, %s95
    %p101 = scmp.eq.s32.totalorder %s9, 0
    %p102 = por %p100, %p101
    %p103 = scmp.ne.s32.totalorder %s92, %s95
    %p104 = scmp.eq.s32.totalorder %s14, 1
    %p105 = por %p103, %p104
    %p106 = scmp.ne.s32.totalorder %s95, %s96
    %p107 = scmp.eq.s32.totalorder %s14, 0
    %p108 = por %p106, %p107
    %p109 = scmp.ne.s32.totalorder %s95, %s96
    %p110 = scmp.eq.s32.totalorder %s15, 1
    %p111 = por %p109, %p110
    %p113 = scmp.ne.s32.totalorder %s96, %s112
    %p114 = scmp.eq.s32.totalorder %s15, 0
    %p115 = por %p113, %p114
    %s116 = ssub.s32 %s16, %s35
    %s117 = ssub.s32 %s18, %s27
    %s118 = sor.u32 %s116, %s117
    %s119 = ssub.s32 %s17, %s31
    %s120 = sor.u32 %s118, %s119
    %p121 = scmp.eq.s32.totalorder %s120, 0
    %s123 = sadd.s32 %s122, 1
    %s124 = scalar_select %p121, %s122, %s123
    %p127 = pneg %p121
    %p128 = scmp.eq.s32.totalorder %s9, 1
    %p129 = por %p127, %p128
    %p130 = scmp.ne.s32.totalorder %s122, %s125
    %p131 = scmp.eq.s32.totalorder %s9, 0
    %p132 = por %p130, %p131
    %p133 = scmp.ne.s32.totalorder %s122, %s125
    %p134 = scmp.eq.s32.totalorder %s14, 1
    %p135 = por %p133, %p134
    %p136 = scmp.ne.s32.totalorder %s125, %s126
    %p137 = scmp.eq.s32.totalorder %s14, 0
    %p138 = por %p136, %p137
    %p139 = scmp.ne.s32.totalorder %s125, %s126
    %p140 = scmp.eq.s32.totalorder %s15, 1
    %p141 = por %p139, %p140
    %p143 = scmp.ne.s32.totalorder %s126, %s142
    %p144 = scmp.eq.s32.totalorder %s15, 0
    %p145 = por %p143, %p144
    %p146 = scmp.le.s32.totalorder 1, %s9
    %p147 = scmp.lt.s32.totalorder %s9, 3
    %p148 = pnand %p146, %p147
    %p149 = pneg %p148
    // Predicated region
    $region9: #{_lambda_.4} parent=5 // pred_check
      _
    $region10: #{_lambda_.4} parent=5 // pred_check_branch
      %151 = sbr.rel (%p148) target = $region12
    $region11: #{_lambda_.4} parent=5 // pred_region
      %s152 = ssub.s32 %s9, 1
      // Predicated region
      $region13: #{_lambda_.4} parent=11 // pred_check
        %p153 = pneg %p82
      $region14: #{_lambda_.4} parent=11 // pred_check_branch
        %155 = sbr.rel (%p153) target = $region16
      $region15: #{_lambda_.4} parent=11 // pred_region
        %p156 = scmp.lt.s32.totalorder %s20, 0
        %s157 = scalar_select %p156, %s20, 0
        %s158 = smul.addr %s157, 4
        %s159 = scalar_lea.vmem %s1, %s158
      $region16: #{_lambda_.4} parent=11 // pred_fallthru
        _
      // Predicated region
      $region17: #{_lambda_.4} parent=11 // pred_check
        %p160 = pneg %p108
      $region18: #{_lambda_.4} parent=11 // pred_check_branch
        %162 = sbr.rel (%p160) target = $region20
      $region19: #{_lambda_.4} parent=11 // pred_region
        %p163 = scmp.lt.s32.totalorder %s20, 0
        %s164 = scalar_select %p163, %s20, 0
        %s165 = scalar_lea.vmem %s2, %s164
      $region20: #{_lambda_.4} parent=11 // pred_fallthru
        _
    $region12: #{_lambda_.4} parent=5 // pred_fallthru
      _
    %p166 = scmp.lt.s32.totalorder %s9, 2
    // Predicated region
    $region21: #{_lambda_.4} parent=5 // pred_check
      %p167 = pneg %p166
    $region22: #{_lambda_.4} parent=5 // pred_check_branch
      %169 = sbr.rel (%p167) target = $region24
    $region23: #{_lambda_.4} parent=5 // pred_region
      // Predicated region
      $region25: #{_lambda_.4} parent=23 // pred_check
        %p170 = pneg %p50
      $region26: #{_lambda_.4} parent=23 // pred_check_branch
        %172 = sbr.rel (%p170) target = $region28
      $region27: #{_lambda_.4} parent=23 // pred_region
        %s173 = smul.u32 32, %s18
        %p174 = scmp.lt.s32.totalorder %s16, 1
        %s175 = scalar_select %p174, %s16, 1
        %p176 = scmp.lt.s32.totalorder %s173, 31
        %s177 = scalar_select %p176, %s173, 31
        %s178 = smul.addr %s177, 5
        %s179 = smul.addr %s175, 160
        %s180 = sadd.s32 %s178, %s179
        %s181 = smul.addr %s180, 4
        %s182 = scalar_lea.vmem %s0, %s181
        %s183 = smul.u32 32, %s18
      $region28: #{_lambda_.4} parent=23 // pred_fallthru
        _
    $region24: #{_lambda_.4} parent=5 // pred_fallthru
      _
    %p184 = scmp.le.s32.totalorder 1, %s9
    %p185 = scmp.lt.s32.totalorder %s9, 3
    %p186 = pnand %p184, %p185
    %p187 = pneg %p186
    // Predicated region
    $region29: #{_lambda_.4} parent=5 // pred_check
      _
    $region30: #{_lambda_.4} parent=5 // pred_check_branch
      %189 = sbr.rel (%p186) target = $region32
    $region31: #{_lambda_.4} parent=5 // pred_region
      %s190 = ssub.s32 %s9, 1
      %s191 = smul.u32 32, %s21
      %p192 = scmp.lt.s32.totalorder %s19, 1
      %s193 = scalar_select %p192, %s19, 1
      %p194 = scmp.lt.s32.totalorder %s191, 31
      %s195 = scalar_select %p194, %s191, 31
      %s196 = smul.addr %s195, 5
      %s197 = smul.addr %s193, 160
      %s198 = sadd.s32 %s196, %s197
      %s199 = smul.addr %s198, 4
      %s200 = scalar_lea.vmem %s0, %s199
      %p201 = pneg %p56
      %p202 = pneg %p53
      %p203 = scmp.lt.s32.totalorder %s20, 0
      %s204 = scalar_select %p203, %s20, 0
      %s205 = smul.addr %s204, 4
      %s206 = scalar_lea.vmem %s1, %s205
      %p207 = pneg %p82
      %p208 = pneg %p79
      %p209 = scmp.lt.s32.totalorder %s20, 0
      %s210 = scalar_select %p209, %s20, 0
      %s211 = scalar_lea.vmem %s2, %s210
      %p212 = pneg %p108
      %p213 = pneg %p105
      %p214 = pneg %p138
      %p215 = pneg %p135
      %s216 = smul.u32 32, %s21
      %p217 = scmp.lt.s32.totalorder %s19, 1
      %s218 = scalar_select %p217, %s19, 1
      %p219 = scmp.lt.s32.totalorder %s216, 31
      %s220 = scalar_select %p219, %s216, 31
      %p221 = scmp.lt.s32.totalorder %s20, 0
      %s222 = scalar_select %p221, %s20, 0
      %s223 = sadd.s32 %s222, %s220
      %s224 = smul.addr %s218, 32
      %s225 = sadd.s32 %s223, %s224
      %s226 = smul.addr %s225, 4
      %s227 = scalar_lea.vmem %s3, %s226
      %s228 = smul.u32 32, %s21
      %p229 = scmp.lt.s32.totalorder %s19, 1
      %s230 = scalar_select %p229, %s19, 1
      %p231 = scmp.lt.s32.totalorder %s228, 31
      %s232 = scalar_select %p231, %s228, 31
      %s233 = smul.addr %s232, 5
      %s234 = smul.addr %s230, 160
      %s235 = sadd.s32 %s233, %s234
      %s236 = smul.addr %s235, 4
      %s237 = scalar_lea.vmem %s0, %s236
      %s238 = smul.u32 32, %s21
      %p239 = scmp.lt.s32.totalorder %s20, 0
      %s240 = scalar_select %p239, %s20, 0
      %s241 = smul.addr %s240, 4
      %s242 = scalar_lea.vmem %s1, %s241
      %p243 = scmp.lt.s32.totalorder %s20, 0
      %s244 = scalar_select %p243, %s20, 0
      %s245 = scalar_lea.vmem %s2, %s244
      %s246 = smul.u32 32, %s21
      %p247 = scmp.lt.s32.totalorder %s19, 1
      %s248 = scalar_select %p247, %s19, 1
      %p249 = scmp.lt.s32.totalorder %s246, 31
      %s250 = scalar_select %p249, %s246, 31
      %p251 = scmp.lt.s32.totalorder %s20, 0
      %s252 = scalar_select %p251, %s20, 0
      %s253 = sadd.s32 %s252, %s250
      %s254 = smul.addr %s248, 32
      %s255 = sadd.s32 %s253, %s254
      %s256 = smul.addr %s255, 4
      %s257 = scalar_lea.vmem %s3, %s256
      %s258 = smul.u32 32, %s21
      %v259 = vld [vmem:[%s237] sm:$0xff]
      %v260 = vld [vmem:[%s237 + $0x8] sm:$0xff]
      %v261 = vld [vmem:[%s237 + $0x10] sm:$0xf]
      %v262 = vld [vmem:[%s237 + $0x14] sm:$0xff]
      %v263 = vld [vmem:[%s237 + $0x1c] sm:$0xff]
      %v264 = vld [vmem:[%s237 + $0x24] sm:$0xf]
      %v265 = vld [vmem:[%s237 + $0x28] sm:$0xff]
      %v266 = vld [vmem:[%s237 + $0x30] sm:$0xff]
      %v267 = vld [vmem:[%s237 + $0x38] sm:$0xf]
      %v268 = vld [vmem:[%s237 + $0x3c] sm:$0xff]
      %v269 = vld [vmem:[%s237 + $0x44] sm:$0xff]
      %v270 = vld [vmem:[%s237 + $0x4c] sm:$0xf]
      %v271 = vld [vmem:[%s237 + $0x50] sm:$0xff]
      %v272 = vld [vmem:[%s237 + $0x58] sm:$0xff]
      %v273 = vld [vmem:[%s237 + $0x60] sm:$0xf]
      %v274 = vld [vmem:[%s237 + $0x64] sm:$0xff]
      %v275 = vld [vmem:[%s237 + $0x6c] sm:$0xff]
      %v276 = vld [vmem:[%s237 + $0x74] sm:$0xf]
      %v277 = vld [vmem:[%s237 + $0x78] sm:$0xff]
      %v278 = vld [vmem:[%s237 + $0x80] sm:$0xff]
      %v279 = vld [vmem:[%s237 + $0x88] sm:$0xf]
      %v280 = vld [vmem:[%s237 + $0x8c] sm:$0xff]
      %v281 = vld [vmem:[%s237 + $0x94] sm:$0xff]
      %v282 = vld [vmem:[%s237 + $0x9c] sm:$0xf]
      %v283 = vld [vmem:[%s237 + $0xa0] sm:$0xff]
      %v284 = vld [vmem:[%s237 + $0xa8] sm:$0xff]
      %v285 = vld [vmem:[%s237 + $0xb0] sm:$0xf]
      %v286 = vld [vmem:[%s237 + $0xb4] sm:$0xff]
      %v287 = vld [vmem:[%s237 + $0xbc] sm:$0xff]
      %v288 = vld [vmem:[%s237 + $0xc4] sm:$0xf]
      %v289 = vld [vmem:[%s237 + $0xc8] sm:$0xff]
      %v290 = vld [vmem:[%s237 + $0xd0] sm:$0xff]
      %v291 = vld [vmem:[%s237 + $0xd8] sm:$0xf]
      %v292 = vld [vmem:[%s237 + $0xdc] sm:$0xff]
      %v293 = vld [vmem:[%s237 + $0xe4] sm:$0xff]
      %v294 = vld [vmem:[%s237 + $0xec] sm:$0xf]
      %v295 = vld [vmem:[%s237 + $0xf0] sm:$0xff]
      %v296 = vld [vmem:[%s237 + $0xf8] sm:$0xff]
      %v297 = vld [vmem:[%s237 + $0x100] sm:$0xf]
      %v298 = vld [vmem:[%s237 + $0x104] sm:$0xff]
      %v299 = vld [vmem:[%s237 + $0x10c] sm:$0xff]
      %v300 = vld [vmem:[%s237 + $0x114] sm:$0xf]
      %v301 = vld [vmem:[%s237 + $0x118] sm:$0xff]
      %v302 = vld [vmem:[%s237 + $0x120] sm:$0xff]
      %v303 = vld [vmem:[%s237 + $0x128] sm:$0xf]
      %v304 = vld [vmem:[%s237 + $0x12c] sm:$0xff]
      %v305 = vld [vmem:[%s237 + $0x134] sm:$0xff]
      %v306 = vld [vmem:[%s237 + $0x13c] sm:$0xf]
      %v307 = vld [vmem:[%s237 + $0x140] sm:$0xff]
      %v308 = vld [vmem:[%s237 + $0x148] sm:$0xff]
      %v309 = vld [vmem:[%s237 + $0x150] sm:$0xf]
      %v310 = vld [vmem:[%s237 + $0x154] sm:$0xff]
      %v311 = vld [vmem:[%s237 + $0x15c] sm:$0xff]
      %v312 = vld [vmem:[%s237 + $0x164] sm:$0xf]
      %v313 = vld [vmem:[%s237 + $0x168] sm:$0xff]
      %v314 = vld [vmem:[%s237 + $0x170] sm:$0xff]
      %v315 = vld [vmem:[%s237 + $0x178] sm:$0xf]
      %v316 = vld [vmem:[%s237 + $0x17c] sm:$0xff]
      %v317 = vld [vmem:[%s237 + $0x184] sm:$0xff]
      %v318 = vld [vmem:[%s237 + $0x18c] sm:$0xf]
      %v319 = vld [vmem:[%s237 + $0x190] sm:$0xff]
      %v320 = vld [vmem:[%s237 + $0x198] sm:$0xff]
      %v321 = vld [vmem:[%s237 + $0x1a0] sm:$0xf]
      %v322 = vld [vmem:[%s237 + $0x1a4] sm:$0xff]
      %v323 = vld [vmem:[%s237 + $0x1ac] sm:$0xff]
      %v324 = vld [vmem:[%s237 + $0x1b4] sm:$0xf]
      %v325 = vld [vmem:[%s237 + $0x1b8] sm:$0xff]
      %v326 = vld [vmem:[%s237 + $0x1c0] sm:$0xff]
      %v327 = vld [vmem:[%s237 + $0x1c8] sm:$0xf]
      %v328 = vld [vmem:[%s237 + $0x1cc] sm:$0xff]
      %v329 = vld [vmem:[%s237 + $0x1d4] sm:$0xff]
      %v330 = vld [vmem:[%s237 + $0x1dc] sm:$0xf]
      %v331 = vld [vmem:[%s237 + $0x1e0] sm:$0xff]
      %v332 = vld [vmem:[%s237 + $0x1e8] sm:$0xff]
      %v333 = vld [vmem:[%s237 + $0x1f0] sm:$0xf]
      %v334 = vld [vmem:[%s237 + $0x1f4] sm:$0xff]
      %v335 = vld [vmem:[%s237 + $0x1fc] sm:$0xff]
      %v336 = vld [vmem:[%s237 + $0x204] sm:$0xf]
      %v337 = vld [vmem:[%s237 + $0x208] sm:$0xff]
      %v338 = vld [vmem:[%s237 + $0x210] sm:$0xff]
      %v339 = vld [vmem:[%s237 + $0x218] sm:$0xf]
      %v340 = vld [vmem:[%s237 + $0x21c] sm:$0xff]
      %v341 = vld [vmem:[%s237 + $0x224] sm:$0xff]
      %v342 = vld [vmem:[%s237 + $0x22c] sm:$0xf]
      %v343 = vld [vmem:[%s237 + $0x230] sm:$0xff]
      %v344 = vld [vmem:[%s237 + $0x238] sm:$0xff]
      %v345 = vld [vmem:[%s237 + $0x240] sm:$0xf]
      %v346 = vld [vmem:[%s237 + $0x244] sm:$0xff]
      %v347 = vld [vmem:[%s237 + $0x24c] sm:$0xff]
      %v348 = vld [vmem:[%s237 + $0x254] sm:$0xf]
      %v349 = vld [vmem:[%s237 + $0x258] sm:$0xff]
      %v350 = vld [vmem:[%s237 + $0x260] sm:$0xff]
      %v351 = vld [vmem:[%s237 + $0x268] sm:$0xf]
      %v352 = vld [vmem:[%s237 + $0x26c] sm:$0xff]
      %v353 = vld [vmem:[%s237 + $0x274] sm:$0xff]
      %v354 = vld [vmem:[%s237 + $0x27c] sm:$0xf]
      %v355 = vld [vmem:[%s242] sm:$0xf]
      %v356 = vld [vmem:[%s242 + $0x4] sm:$0xf]
      %v357 = vld [vmem:[%s242 + $0x8] sm:$0xf]
      %v358 = vld [vmem:[%s242 + $0xc] sm:$0xf]
      %v359 = vld [vmem:[%s242 + $0x10] sm:$0xf]
      %v360 = vld [vmem:[%s242 + $0x14] sm:$0xf]
      %v361 = vld [vmem:[%s242 + $0x18] sm:$0xf]
      %v362 = vld [vmem:[%s242 + $0x1c] sm:$0xf]
      %v363 = vld [vmem:[%s242 + $0x20] sm:$0xf]
      %v364 = vld [vmem:[%s242 + $0x24] sm:$0xf]
      %v365 = vld [vmem:[%s242 + $0x28] sm:$0xf]
      %v366 = vld [vmem:[%s242 + $0x2c] sm:$0xf]
      %v367 = vld [vmem:[%s242 + $0x30] sm:$0xf]
      %v368 = vld [vmem:[%s242 + $0x34] sm:$0xf]
      %v369 = vld [vmem:[%s242 + $0x38] sm:$0xf]
      %v370 = vld [vmem:[%s242 + $0x3c] sm:$0xf]
      %v371 = vld [vmem:[%s242 + $0x40] sm:$0xf]
      %v372 = vld [vmem:[%s242 + $0x44] sm:$0xf]
      %v373 = vld [vmem:[%s242 + $0x48] sm:$0xf]
      %v374 = vld [vmem:[%s242 + $0x4c] sm:$0xf]
      %v375 = vld [vmem:[%s242 + $0x50] sm:$0xf]
      %v376 = vld [vmem:[%s242 + $0x54] sm:$0xf]
      %v377 = vld [vmem:[%s242 + $0x58] sm:$0xf]
      %v378 = vld [vmem:[%s242 + $0x5c] sm:$0xf]
      %v379 = vld [vmem:[%s242 + $0x60] sm:$0xf]
      %v380 = vld [vmem:[%s242 + $0x64] sm:$0xf]
      %v381 = vld [vmem:[%s242 + $0x68] sm:$0xf]
      %v382 = vld [vmem:[%s242 + $0x6c] sm:$0xf]
      %v383 = vld [vmem:[%s242 + $0x70] sm:$0xf]
      %v384 = vld [vmem:[%s242 + $0x74] sm:$0xf]
      %v385 = vld [vmem:[%s242 + $0x78] sm:$0xf]
      %v386 = vld [vmem:[%s242 + $0x7c] sm:$0xf]
      %v387 = vld [vmem:[%s242 + $0x80] sm:$0xf]
      %v388 = vld [vmem:[%s242 + $0x84] sm:$0xf]
      %v389 = vld [vmem:[%s242 + $0x88] sm:$0xf]
      %v390 = vld [vmem:[%s242 + $0x8c] sm:$0xf]
      %v391 = vld [vmem:[%s242 + $0x90] sm:$0xf]
      %v392 = vld [vmem:[%s242 + $0x94] sm:$0xf]
      %v393 = vld [vmem:[%s242 + $0x98] sm:$0xf]
      %v394 = vld [vmem:[%s242 + $0x9c] sm:$0xf]
      %v395 = vld [vmem:[%s242 + $0xa0] sm:$0xf]
      %v396 = vld [vmem:[%s242 + $0xa4] sm:$0xf]
      %v397 = vld [vmem:[%s242 + $0xa8] sm:$0xf]
      %v398 = vld [vmem:[%s242 + $0xac] sm:$0xf]
      %v399 = vld [vmem:[%s242 + $0xb0] sm:$0xf]
      %v400 = vld [vmem:[%s242 + $0xb4] sm:$0xf]
      %v401 = vld [vmem:[%s242 + $0xb8] sm:$0xf]
      %v402 = vld [vmem:[%s242 + $0xbc] sm:$0xf]
      %v403 = vld [vmem:[%s242 + $0xc0] sm:$0xf]
      %v404 = vld [vmem:[%s242 + $0xc4] sm:$0xf]
      %v405 = vld [vmem:[%s242 + $0xc8] sm:$0xf]
      %v406 = vld [vmem:[%s242 + $0xcc] sm:$0xf]
      %v407 = vld [vmem:[%s242 + $0xd0] sm:$0xf]
      %v408 = vld [vmem:[%s242 + $0xd4] sm:$0xf]
      %v409 = vld [vmem:[%s242 + $0xd8] sm:$0xf]
      %v410 = vld [vmem:[%s242 + $0xdc] sm:$0xf]
      %v411 = vld [vmem:[%s242 + $0xe0] sm:$0xf]
      %v412 = vld [vmem:[%s242 + $0xe4] sm:$0xf]
      %v413 = vld [vmem:[%s242 + $0xe8] sm:$0xf]
      %v414 = vld [vmem:[%s242 + $0xec] sm:$0xf]
      %v415 = vld [vmem:[%s242 + $0xf0] sm:$0xf]
      %v416 = vld [vmem:[%s242 + $0xf4] sm:$0xf]
      %v417 = vld [vmem:[%s242 + $0xf8] sm:$0xf]
      %v418 = vld [vmem:[%s242 + $0xfc] sm:$0xf]
      %v419 = vld [vmem:[%s242 + $0x100] sm:$0xf]
      %v420 = vld [vmem:[%s242 + $0x104] sm:$0xf]
      %v421 = vld [vmem:[%s242 + $0x108] sm:$0xf]
      %v422 = vld [vmem:[%s242 + $0x10c] sm:$0xf]
      %v423 = vld [vmem:[%s242 + $0x110] sm:$0xf]
      %v424 = vld [vmem:[%s242 + $0x114] sm:$0xf]
      %v425 = vld [vmem:[%s242 + $0x118] sm:$0xf]
      %v426 = vld [vmem:[%s242 + $0x11c] sm:$0xf]
      %v427 = vld [vmem:[%s242 + $0x120] sm:$0xf]
      %v428 = vld [vmem:[%s242 + $0x124] sm:$0xf]
      %v429 = vld [vmem:[%s242 + $0x128] sm:$0xf]
      %v430 = vld [vmem:[%s242 + $0x12c] sm:$0xf]
      %v431 = vld [vmem:[%s242 + $0x130] sm:$0xf]
      %v432 = vld [vmem:[%s242 + $0x134] sm:$0xf]
      %v433 = vld [vmem:[%s242 + $0x138] sm:$0xf]
      %v434 = vld [vmem:[%s242 + $0x13c] sm:$0xf]
      %v435 = vld [vmem:[%s245] sm:$0x1]
      %v437 = vperm.slane %v435, 0
      %v535 = vunpack.c.l.b16 %v259
      %v536 = vunpack.c.h.b16 %v259
      %v537 = vunpack.c.l.b16 %v260
      %v538 = vunpack.c.h.b16 %v260
      %v539 = vunpack.c.l.b16 %v261
      %v540 = vunpack.c.l.b16 %v262
      %v541 = vunpack.c.h.b16 %v262
      %v542 = vunpack.c.l.b16 %v263
      %v543 = vunpack.c.h.b16 %v263
      %v544 = vunpack.c.l.b16 %v264
      %v545 = vunpack.c.l.b16 %v265
      %v546 = vunpack.c.h.b16 %v265
      %v547 = vunpack.c.l.b16 %v266
      %v548 = vunpack.c.h.b16 %v266
      %v549 = vunpack.c.l.b16 %v267
      %v550 = vunpack.c.l.b16 %v268
      %v551 = vunpack.c.h.b16 %v268
      %v552 = vunpack.c.l.b16 %v269
      %v553 = vunpack.c.h.b16 %v269
      %v554 = vunpack.c.l.b16 %v270
      %v555 = vunpack.c.l.b16 %v271
      %v556 = vunpack.c.h.b16 %v271
      %v557 = vunpack.c.l.b16 %v272
      %v558 = vunpack.c.h.b16 %v272
      %v559 = vunpack.c.l.b16 %v273
      %v560 = vunpack.c.l.b16 %v274
      %v561 = vunpack.c.h.b16 %v274
      %v562 = vunpack.c.l.b16 %v275
      %v563 = vunpack.c.h.b16 %v275
      %v564 = vunpack.c.l.b16 %v276
      %v565 = vunpack.c.l.b16 %v277
      %v566 = vunpack.c.h.b16 %v277
      %v567 = vunpack.c.l.b16 %v278
      %v568 = vunpack.c.h.b16 %v278
      %v569 = vunpack.c.l.b16 %v279
      %v570 = vunpack.c.l.b16 %v280
      %v571 = vunpack.c.h.b16 %v280
      %v572 = vunpack.c.l.b16 %v281
      %v573 = vunpack.c.h.b16 %v281
      %v574 = vunpack.c.l.b16 %v282
      %v575 = vunpack.c.l.b16 %v283
      %v576 = vunpack.c.h.b16 %v283
      %v577 = vunpack.c.l.b16 %v284
      %v578 = vunpack.c.h.b16 %v284
      %v579 = vunpack.c.l.b16 %v285
      %v580 = vunpack.c.l.b16 %v286
      %v581 = vunpack.c.h.b16 %v286
      %v582 = vunpack.c.l.b16 %v287
      %v583 = vunpack.c.h.b16 %v287
      %v584 = vunpack.c.l.b16 %v288
      %v585 = vunpack.c.l.b16 %v289
      %v586 = vunpack.c.h.b16 %v289
      %v587 = vunpack.c.l.b16 %v290
      %v588 = vunpack.c.h.b16 %v290
      %v589 = vunpack.c.l.b16 %v291
      %v590 = vunpack.c.l.b16 %v292
      %v591 = vunpack.c.h.b16 %v292
      %v592 = vunpack.c.l.b16 %v293
      %v593 = vunpack.c.h.b16 %v293
      %v594 = vunpack.c.l.b16 %v294
      %v595 = vunpack.c.l.b16 %v295
      %v596 = vunpack.c.h.b16 %v295
      %v597 = vunpack.c.l.b16 %v296
      %v598 = vunpack.c.h.b16 %v296
      %v599 = vunpack.c.l.b16 %v297
      %v600 = vunpack.c.l.b16 %v298
      %v601 = vunpack.c.h.b16 %v298
      %v602 = vunpack.c.l.b16 %v299
      %v603 = vunpack.c.h.b16 %v299
      %v604 = vunpack.c.l.b16 %v300
      %v605 = vunpack.c.l.b16 %v301
      %v606 = vunpack.c.h.b16 %v301
      %v607 = vunpack.c.l.b16 %v302
      %v608 = vunpack.c.h.b16 %v302
      %v609 = vunpack.c.l.b16 %v303
      %v610 = vunpack.c.l.b16 %v304
      %v611 = vunpack.c.h.b16 %v304
      %v612 = vunpack.c.l.b16 %v305
      %v613 = vunpack.c.h.b16 %v305
      %v614 = vunpack.c.l.b16 %v306
      %v615 = vunpack.c.l.b16 %v307
      %v616 = vunpack.c.h.b16 %v307
      %v617 = vunpack.c.l.b16 %v308
      %v618 = vunpack.c.h.b16 %v308
      %v619 = vunpack.c.l.b16 %v309
      %v620 = vunpack.c.l.b16 %v310
      %v621 = vunpack.c.h.b16 %v310
      %v622 = vunpack.c.l.b16 %v311
      %v623 = vunpack.c.h.b16 %v311
      %v624 = vunpack.c.l.b16 %v312
      %v625 = vunpack.c.l.b16 %v313
      %v626 = vunpack.c.h.b16 %v313
      %v627 = vunpack.c.l.b16 %v314
      %v628 = vunpack.c.h.b16 %v314
      %v629 = vunpack.c.l.b16 %v315
      %v630 = vunpack.c.l.b16 %v316
      %v631 = vunpack.c.h.b16 %v316
      %v632 = vunpack.c.l.b16 %v317
      %v633 = vunpack.c.h.b16 %v317
      %v634 = vunpack.c.l.b16 %v318
      %v635 = vunpack.c.l.b16 %v319
      %v636 = vunpack.c.h.b16 %v319
      %v637 = vunpack.c.l.b16 %v320
      %v638 = vunpack.c.h.b16 %v320
      %v639 = vunpack.c.l.b16 %v321
      %v640 = vunpack.c.l.b16 %v322
      %v641 = vunpack.c.h.b16 %v322
      %v642 = vunpack.c.l.b16 %v323
      %v643 = vunpack.c.h.b16 %v323
      %v644 = vunpack.c.l.b16 %v324
      %v645 = vunpack.c.l.b16 %v325
      %v646 = vunpack.c.h.b16 %v325
      %v647 = vunpack.c.l.b16 %v326
      %v648 = vunpack.c.h.b16 %v326
      %v649 = vunpack.c.l.b16 %v327
      %v650 = vunpack.c.l.b16 %v328
      %v651 = vunpack.c.h.b16 %v328
      %v652 = vunpack.c.l.b16 %v329
      %v653 = vunpack.c.h.b16 %v329
      %v654 = vunpack.c.l.b16 %v330
      %v655 = vunpack.c.l.b16 %v331
      %v656 = vunpack.c.h.b16 %v331
      %v657 = vunpack.c.l.b16 %v332
      %v658 = vunpack.c.h.b16 %v332
      %v659 = vunpack.c.l.b16 %v333
      %v660 = vunpack.c.l.b16 %v334
      %v661 = vunpack.c.h.b16 %v334
      %v662 = vunpack.c.l.b16 %v335
      %v663 = vunpack.c.h.b16 %v335
      %v664 = vunpack.c.l.b16 %v336
      %v665 = vunpack.c.l.b16 %v337
      %v666 = vunpack.c.h.b16 %v337
      %v667 = vunpack.c.l.b16 %v338
      %v668 = vunpack.c.h.b16 %v338
      %v669 = vunpack.c.l.b16 %v339
      %v670 = vunpack.c.l.b16 %v340
      %v671 = vunpack.c.h.b16 %v340
      %v672 = vunpack.c.l.b16 %v341
      %v673 = vunpack.c.h.b16 %v341
      %v674 = vunpack.c.l.b16 %v342
      %v675 = vunpack.c.l.b16 %v343
      %v676 = vunpack.c.h.b16 %v343
      %v677 = vunpack.c.l.b16 %v344
      %v678 = vunpack.c.h.b16 %v344
      %v679 = vunpack.c.l.b16 %v345
      %v680 = vunpack.c.l.b16 %v346
      %v681 = vunpack.c.h.b16 %v346
      %v682 = vunpack.c.l.b16 %v347
      %v683 = vunpack.c.h.b16 %v347
      %v684 = vunpack.c.l.b16 %v348
      %v685 = vunpack.c.l.b16 %v349
      %v686 = vunpack.c.h.b16 %v349
      %v687 = vunpack.c.l.b16 %v350
      %v688 = vunpack.c.h.b16 %v350
      %v689 = vunpack.c.l.b16 %v351
      %v690 = vunpack.c.l.b16 %v352
      %v691 = vunpack.c.h.b16 %v352
      %v692 = vunpack.c.l.b16 %v353
      %v693 = vunpack.c.h.b16 %v353
      %v694 = vunpack.c.l.b16 %v354
      %v695 = vpack.c.b16 %v540, %v535
      %v696 = vpack.c.b16 %v541, %v536
      %v697 = vpack.c.b16 %v542, %v537
      %v698 = vpack.c.b16 %v543, %v538
      %v699 = vpack.c.b16 %v544, %v539
      %v700 = vpack.c.b16 %v550, %v545
      %v701 = vpack.c.b16 %v551, %v546
      %v702 = vpack.c.b16 %v552, %v547
      %v703 = vpack.c.b16 %v553, %v548
      %v704 = vpack.c.b16 %v554, %v549
      %v705 = vpack.c.b16 %v560, %v555
      %v706 = vpack.c.b16 %v561, %v556
      %v707 = vpack.c.b16 %v562, %v557
      %v708 = vpack.c.b16 %v563, %v558
      %v709 = vpack.c.b16 %v564, %v559
      %v710 = vpack.c.b16 %v570, %v565
      %v711 = vpack.c.b16 %v571, %v566
      %v712 = vpack.c.b16 %v572, %v567
      %v713 = vpack.c.b16 %v573, %v568
      %v714 = vpack.c.b16 %v574, %v569
      %v715 = vpack.c.b16 %v580, %v575
      %v716 = vpack.c.b16 %v581, %v576
      %v717 = vpack.c.b16 %v582, %v577
      %v718 = vpack.c.b16 %v583, %v578
      %v719 = vpack.c.b16 %v584, %v579
      %v720 = vpack.c.b16 %v590, %v585
      %v721 = vpack.c.b16 %v591, %v586
      %v722 = vpack.c.b16 %v592, %v587
      %v723 = vpack.c.b16 %v593, %v588
      %v724 = vpack.c.b16 %v594, %v589
      %v725 = vpack.c.b16 %v600, %v595
      %v726 = vpack.c.b16 %v601, %v596
      %v727 = vpack.c.b16 %v602, %v597
      %v728 = vpack.c.b16 %v603, %v598
      %v729 = vpack.c.b16 %v604, %v599
      %v730 = vpack.c.b16 %v610, %v605
      %v731 = vpack.c.b16 %v611, %v606
      %v732 = vpack.c.b16 %v612, %v607
      %v733 = vpack.c.b16 %v613, %v608
      %v734 = vpack.c.b16 %v614, %v609
      %v735 = vpack.c.b16 %v620, %v615
      %v736 = vpack.c.b16 %v621, %v616
      %v737 = vpack.c.b16 %v622, %v617
      %v738 = vpack.c.b16 %v623, %v618
      %v739 = vpack.c.b16 %v624, %v619
      %v740 = vpack.c.b16 %v630, %v625
      %v741 = vpack.c.b16 %v631, %v626
      %v742 = vpack.c.b16 %v632, %v627
      %v743 = vpack.c.b16 %v633, %v628
      %v744 = vpack.c.b16 %v634, %v629
      %v745 = vpack.c.b16 %v640, %v635
      %v746 = vpack.c.b16 %v641, %v636
      %v747 = vpack.c.b16 %v642, %v637
      %v748 = vpack.c.b16 %v643, %v638
      %v749 = vpack.c.b16 %v644, %v639
      %v750 = vpack.c.b16 %v650, %v645
      %v751 = vpack.c.b16 %v651, %v646
      %v752 = vpack.c.b16 %v652, %v647
      %v753 = vpack.c.b16 %v653, %v648
      %v754 = vpack.c.b16 %v654, %v649
      %v755 = vpack.c.b16 %v660, %v655
      %v756 = vpack.c.b16 %v661, %v656
      %v757 = vpack.c.b16 %v662, %v657
      %v758 = vpack.c.b16 %v663, %v658
      %v759 = vpack.c.b16 %v664, %v659
      %v760 = vpack.c.b16 %v670, %v665
      %v761 = vpack.c.b16 %v671, %v666
      %v762 = vpack.c.b16 %v672, %v667
      %v763 = vpack.c.b16 %v673, %v668
      %v764 = vpack.c.b16 %v674, %v669
      %v765 = vpack.c.b16 %v680, %v675
      %v766 = vpack.c.b16 %v681, %v676
      %v767 = vpack.c.b16 %v682, %v677
      %v768 = vpack.c.b16 %v683, %v678
      %v769 = vpack.c.b16 %v684, %v679
      %v770 = vpack.c.b16 %v690, %v685
      %v771 = vpack.c.b16 %v691, %v686
      %v772 = vpack.c.b16 %v692, %v687
      %v773 = vpack.c.b16 %v693, %v688
      %v774 = vpack.c.b16 %v694, %v689
      %v935 = vunpack.c.l.b16 %v355
      %v936 = vunpack.c.l.b16 %v356
      %v937 = vunpack.c.l.b16 %v357
      %v938 = vunpack.c.l.b16 %v358
      %v939 = vunpack.c.l.b16 %v359
      %v940 = vunpack.c.l.b16 %v360
      %v941 = vunpack.c.l.b16 %v361
      %v942 = vunpack.c.l.b16 %v362
      %v943 = vunpack.c.l.b16 %v363
      %v944 = vunpack.c.l.b16 %v364
      %v945 = vunpack.c.l.b16 %v365
      %v946 = vunpack.c.l.b16 %v366
      %v947 = vunpack.c.l.b16 %v367
      %v948 = vunpack.c.l.b16 %v368
      %v949 = vunpack.c.l.b16 %v369
      %v950 = vunpack.c.l.b16 %v370
      %v951 = vunpack.c.l.b16 %v371
      %v952 = vunpack.c.l.b16 %v372
      %v953 = vunpack.c.l.b16 %v373
      %v954 = vunpack.c.l.b16 %v374
      %v955 = vunpack.c.l.b16 %v375
      %v956 = vunpack.c.l.b16 %v376
      %v957 = vunpack.c.l.b16 %v377
      %v958 = vunpack.c.l.b16 %v378
      %v959 = vunpack.c.l.b16 %v379
      %v960 = vunpack.c.l.b16 %v380
      %v961 = vunpack.c.l.b16 %v381
      %v962 = vunpack.c.l.b16 %v382
      %v963 = vunpack.c.l.b16 %v383
      %v964 = vunpack.c.l.b16 %v384
      %v965 = vunpack.c.l.b16 %v385
      %v966 = vunpack.c.l.b16 %v386
      %v967 = vunpack.c.l.b16 %v387
      %v968 = vunpack.c.l.b16 %v388
      %v969 = vunpack.c.l.b16 %v389
      %v970 = vunpack.c.l.b16 %v390
      %v971 = vunpack.c.l.b16 %v391
      %v972 = vunpack.c.l.b16 %v392
      %v973 = vunpack.c.l.b16 %v393
      %v974 = vunpack.c.l.b16 %v394
      %v975 = vunpack.c.l.b16 %v395
      %v976 = vunpack.c.l.b16 %v396
      %v977 = vunpack.c.l.b16 %v397
      %v978 = vunpack.c.l.b16 %v398
      %v979 = vunpack.c.l.b16 %v399
      %v980 = vunpack.c.l.b16 %v400
      %v981 = vunpack.c.l.b16 %v401
      %v982 = vunpack.c.l.b16 %v402
      %v983 = vunpack.c.l.b16 %v403
      %v984 = vunpack.c.l.b16 %v404
      %v985 = vunpack.c.l.b16 %v405
      %v986 = vunpack.c.l.b16 %v406
      %v987 = vunpack.c.l.b16 %v407
      %v988 = vunpack.c.l.b16 %v408
      %v989 = vunpack.c.l.b16 %v409
      %v990 = vunpack.c.l.b16 %v410
      %v991 = vunpack.c.l.b16 %v411
      %v992 = vunpack.c.l.b16 %v412
      %v993 = vunpack.c.l.b16 %v413
      %v994 = vunpack.c.l.b16 %v414
      %v995 = vunpack.c.l.b16 %v415
      %v996 = vunpack.c.l.b16 %v416
      %v997 = vunpack.c.l.b16 %v417
      %v998 = vunpack.c.l.b16 %v418
      %v999 = vunpack.c.l.b16 %v419
      %v1000 = vunpack.c.l.b16 %v420
      %v1001 = vunpack.c.l.b16 %v421
      %v1002 = vunpack.c.l.b16 %v422
      %v1003 = vunpack.c.l.b16 %v423
      %v1004 = vunpack.c.l.b16 %v424
      %v1005 = vunpack.c.l.b16 %v425
      %v1006 = vunpack.c.l.b16 %v426
      %v1007 = vunpack.c.l.b16 %v427
      %v1008 = vunpack.c.l.b16 %v428
      %v1009 = vunpack.c.l.b16 %v429
      %v1010 = vunpack.c.l.b16 %v430
      %v1011 = vunpack.c.l.b16 %v431
      %v1012 = vunpack.c.l.b16 %v432
      %v1013 = vunpack.c.l.b16 %v433
      %v1014 = vunpack.c.l.b16 %v434
      %v1015 = vpack.c.b16 %v936, %v935
      %v1016 = vpack.c.b16 %v938, %v937
      %v1017 = vpack.c.b16 %v940, %v939
      %v1018 = vpack.c.b16 %v942, %v941
      %v1019 = vpack.c.b16 %v944, %v943
      %v1020 = vpack.c.b16 %v946, %v945
      %v1021 = vpack.c.b16 %v948, %v947
      %v1022 = vpack.c.b16 %v950, %v949
      %v1023 = vpack.c.b16 %v952, %v951
      %v1024 = vpack.c.b16 %v954, %v953
      %v1025 = vpack.c.b16 %v956, %v955
      %v1026 = vpack.c.b16 %v958, %v957
      %v1027 = vpack.c.b16 %v960, %v959
      %v1028 = vpack.c.b16 %v962, %v961
      %v1029 = vpack.c.b16 %v964, %v963
      %v1030 = vpack.c.b16 %v966, %v965
      %v1031 = vpack.c.b16 %v968, %v967
      %v1032 = vpack.c.b16 %v970, %v969
      %v1033 = vpack.c.b16 %v972, %v971
      %v1034 = vpack.c.b16 %v974, %v973
      %v1035 = vpack.c.b16 %v976, %v975
      %v1036 = vpack.c.b16 %v978, %v977
      %v1037 = vpack.c.b16 %v980, %v979
      %v1038 = vpack.c.b16 %v982, %v981
      %v1039 = vpack.c.b16 %v984, %v983
      %v1040 = vpack.c.b16 %v986, %v985
      %v1041 = vpack.c.b16 %v988, %v987
      %v1042 = vpack.c.b16 %v990, %v989
      %v1043 = vpack.c.b16 %v992, %v991
      %v1044 = vpack.c.b16 %v994, %v993
      %v1045 = vpack.c.b16 %v996, %v995
      %v1046 = vpack.c.b16 %v998, %v997
      %v1047 = vpack.c.b16 %v1000, %v999
      %v1048 = vpack.c.b16 %v1002, %v1001
      %v1049 = vpack.c.b16 %v1004, %v1003
      %v1050 = vpack.c.b16 %v1006, %v1005
      %v1051 = vpack.c.b16 %v1008, %v1007
      %v1052 = vpack.c.b16 %v1010, %v1009
      %v1053 = vpack.c.b16 %v1012, %v1011
      %v1054 = vpack.c.b16 %v1014, %v1013
      %1095 = vmatpush.bf16.msra.mxu0 %v1022
      %1096 = vmatpush.bf16.msra.mxu0 %v1021
      %1097 = vmatpush.bf16.msra.mxu0 %v1020
      %1098 = vmatpush.bf16.msra.mxu0 %v1019
      %1099 = vmatpush.bf16.msra.mxu0 %v1018
      %1100 = vmatpush.bf16.msra.mxu0 %v1017
      %1101 = vmatpush.bf16.msra.mxu0 %v1016
      %1102 = vmatpush.bf16.msra.mxu0 %v1015
      %1103 = vmatmul.bf16.gmra.mxu0 %v695
      %v1104 = vpop.f32.mrf.mxu0
      %v1105 = vadd.f32 %v437, %v1104
      %v1106 = vpop.f32.mrf.mxu0
      %v1107 = vadd.f32 %v437, %v1106
      %1108 = vmatmul.bf16.gmra.mxu0 %v700
      %v1109 = vpop.f32.mrf.mxu0
      %v1110 = vadd.f32 %v437, %v1109
      %v1111 = vpop.f32.mrf.mxu0
      %v1112 = vadd.f32 %v437, %v1111
      %1113 = vmatmul.bf16.gmra.mxu0 %v705
      %v1114 = vpop.f32.mrf.mxu0
      %v1115 = vadd.f32 %v437, %v1114
      %v1116 = vpop.f32.mrf.mxu0
      %v1117 = vadd.f32 %v437, %v1116
      %1118 = vmatmul.bf16.gmra.mxu0 %v710
      %v1119 = vpop.f32.mrf.mxu0
      %v1120 = vadd.f32 %v437, %v1119
      %v1121 = vpop.f32.mrf.mxu0
      %v1122 = vadd.f32 %v437, %v1121
      %1123 = vmatmul.bf16.gmra.mxu0 %v715
      %v1124 = vpop.f32.mrf.mxu0
      %v1125 = vadd.f32 %v437, %v1124
      %v1126 = vpop.f32.mrf.mxu0
      %v1127 = vadd.f32 %v437, %v1126
      %1128 = vmatmul.bf16.gmra.mxu0 %v720
      %v1129 = vpop.f32.mrf.mxu0
      %v1130 = vadd.f32 %v437, %v1129
      %v1131 = vpop.f32.mrf.mxu0
      %v1132 = vadd.f32 %v437, %v1131
      %1133 = vmatmul.bf16.gmra.mxu0 %v725
      %v1134 = vpop.f32.mrf.mxu0
      %v1135 = vadd.f32 %v437, %v1134
      %v1136 = vpop.f32.mrf.mxu0
      %v1137 = vadd.f32 %v437, %v1136
      %1138 = vmatmul.bf16.gmra.mxu0 %v730
      %v1139 = vpop.f32.mrf.mxu0
      %v1140 = vadd.f32 %v437, %v1139
      %v1141 = vpop.f32.mrf.mxu0
      %v1142 = vadd.f32 %v437, %v1141
      %1143 = vmatmul.bf16.gmra.mxu0 %v735
      %v1144 = vpop.f32.mrf.mxu0
      %v1145 = vadd.f32 %v437, %v1144
      %v1146 = vpop.f32.mrf.mxu0
      %v1147 = vadd.f32 %v437, %v1146
      %1148 = vmatmul.bf16.gmra.mxu0 %v740
      %v1149 = vpop.f32.mrf.mxu0
      %v1150 = vadd.f32 %v437, %v1149
      %v1151 = vpop.f32.mrf.mxu0
      %v1152 = vadd.f32 %v437, %v1151
      %1153 = vmatmul.bf16.gmra.mxu0 %v745
      %v1154 = vpop.f32.mrf.mxu0
      %v1155 = vadd.f32 %v437, %v1154
      %v1156 = vpop.f32.mrf.mxu0
      %v1157 = vadd.f32 %v437, %v1156
      %1158 = vmatmul.bf16.gmra.mxu0 %v750
      %v1159 = vpop.f32.mrf.mxu0
      %v1160 = vadd.f32 %v437, %v1159
      %v1161 = vpop.f32.mrf.mxu0
      %v1162 = vadd.f32 %v437, %v1161
      %1163 = vmatmul.bf16.gmra.mxu0 %v755
      %v1164 = vpop.f32.mrf.mxu0
      %v1165 = vadd.f32 %v437, %v1164
      %v1166 = vpop.f32.mrf.mxu0
      %v1167 = vadd.f32 %v437, %v1166
      %1168 = vmatmul.bf16.gmra.mxu0 %v760
      %v1169 = vpop.f32.mrf.mxu0
      %v1170 = vadd.f32 %v437, %v1169
      %v1171 = vpop.f32.mrf.mxu0
      %v1172 = vadd.f32 %v437, %v1171
      %1173 = vmatmul.bf16.gmra.mxu0 %v765
      %v1174 = vpop.f32.mrf.mxu0
      %v1175 = vadd.f32 %v437, %v1174
      %v1176 = vpop.f32.mrf.mxu0
      %v1177 = vadd.f32 %v437, %v1176
      %1178 = vmatmul.bf16.gmra.mxu0 %v770
      %v1179 = vpop.f32.mrf.mxu0
      %v1180 = vadd.f32 %v437, %v1179
      %v1181 = vpop.f32.mrf.mxu0
      %v1182 = vadd.f32 %v437, %v1181
      %1183 = vdwg.mxu0
      %1184 = vmatpush.bf16.msra.mxu0 %v1030
      %1185 = vmatpush.bf16.msra.mxu0 %v1029
      %1186 = vmatpush.bf16.msra.mxu0 %v1028
      %1187 = vmatpush.bf16.msra.mxu0 %v1027
      %1188 = vmatpush.bf16.msra.mxu0 %v1026
      %1189 = vmatpush.bf16.msra.mxu0 %v1025
      %1190 = vmatpush.bf16.msra.mxu0 %v1024
      %1191 = vmatpush.bf16.msra.mxu0 %v1023
      %1192 = vmatmul.bf16.gmra.mxu0 %v696
      %v1193 = vpop.f32.mrf.mxu0
      %v1194 = vadd.f32 %v1105, %v1193
      %v1195 = vpop.f32.mrf.mxu0
      %v1196 = vadd.f32 %v1107, %v1195
      %1197 = vmatmul.bf16.gmra.mxu0 %v701
      %v1198 = vpop.f32.mrf.mxu0
      %v1199 = vadd.f32 %v1110, %v1198
      %v1200 = vpop.f32.mrf.mxu0
      %v1201 = vadd.f32 %v1112, %v1200
      %1202 = vmatmul.bf16.gmra.mxu0 %v706
      %v1203 = vpop.f32.mrf.mxu0
      %v1204 = vadd.f32 %v1115, %v1203
      %v1205 = vpop.f32.mrf.mxu0
      %v1206 = vadd.f32 %v1117, %v1205
      %1207 = vmatmul.bf16.gmra.mxu0 %v711
      %v1208 = vpop.f32.mrf.mxu0
      %v1209 = vadd.f32 %v1120, %v1208
      %v1210 = vpop.f32.mrf.mxu0
      %v1211 = vadd.f32 %v1122, %v1210
      %1212 = vmatmul.bf16.gmra.mxu0 %v716
      %v1213 = vpop.f32.mrf.mxu0
      %v1214 = vadd.f32 %v1125, %v1213
      %v1215 = vpop.f32.mrf.mxu0
      %v1216 = vadd.f32 %v1127, %v1215
      %1217 = vmatmul.bf16.gmra.mxu0 %v721
      %v1218 = vpop.f32.mrf.mxu0
      %v1219 = vadd.f32 %v1130, %v1218
      %v1220 = vpop.f32.mrf.mxu0
      %v1221 = vadd.f32 %v1132, %v1220
      %1222 = vmatmul.bf16.gmra.mxu0 %v726
      %v1223 = vpop.f32.mrf.mxu0
      %v1224 = vadd.f32 %v1135, %v1223
      %v1225 = vpop.f32.mrf.mxu0
      %v1226 = vadd.f32 %v1137, %v1225
      %1227 = vmatmul.bf16.gmra.mxu0 %v731
      %v1228 = vpop.f32.mrf.mxu0
      %v1229 = vadd.f32 %v1140, %v1228
      %v1230 = vpop.f32.mrf.mxu0
      %v1231 = vadd.f32 %v1142, %v1230
      %1232 = vmatmul.bf16.gmra.mxu0 %v736
      %v1233 = vpop.f32.mrf.mxu0
      %v1234 = vadd.f32 %v1145, %v1233
      %v1235 = vpop.f32.mrf.mxu0
      %v1236 = vadd.f32 %v1147, %v1235
      %1237 = vmatmul.bf16.gmra.mxu0 %v741
      %v1238 = vpop.f32.mrf.mxu0
      %v1239 = vadd.f32 %v1150, %v1238
      %v1240 = vpop.f32.mrf.mxu0
      %v1241 = vadd.f32 %v1152, %v1240
      %1242 = vmatmul.bf16.gmra.mxu0 %v746
      %v1243 = vpop.f32.mrf.mxu0
      %v1244 = vadd.f32 %v1155, %v1243
      %v1245 = vpop.f32.mrf.mxu0
      %v1246 = vadd.f32 %v1157, %v1245
      %1247 = vmatmul.bf16.gmra.mxu0 %v751
      %v1248 = vpop.f32.mrf.mxu0
      %v1249 = vadd.f32 %v1160, %v1248
      %v1250 = vpop.f32.mrf.mxu0
      %v1251 = vadd.f32 %v1162, %v1250
      %1252 = vmatmul.bf16.gmra.mxu0 %v756
      %v1253 = vpop.f32.mrf.mxu0
      %v1254 = vadd.f32 %v1165, %v1253
      %v1255 = vpop.f32.mrf.mxu0
      %v1256 = vadd.f32 %v1167, %v1255
      %1257 = vmatmul.bf16.gmra.mxu0 %v761
      %v1258 = vpop.f32.mrf.mxu0
      %v1259 = vadd.f32 %v1170, %v1258
      %v1260 = vpop.f32.mrf.mxu0
      %v1261 = vadd.f32 %v1172, %v1260
      %1262 = vmatmul.bf16.gmra.mxu0 %v766
      %v1263 = vpop.f32.mrf.mxu0
      %v1264 = vadd.f32 %v1175, %v1263
      %v1265 = vpop.f32.mrf.mxu0
      %v1266 = vadd.f32 %v1177, %v1265
      %1267 = vmatmul.bf16.gmra.mxu0 %v771
      %v1268 = vpop.f32.mrf.mxu0
      %v1269 = vadd.f32 %v1180, %v1268
      %v1270 = vpop.f32.mrf.mxu0
      %v1271 = vadd.f32 %v1182, %v1270
      %1272 = vdwg.mxu0
      %1273 = vmatpush.bf16.msra.mxu0 %v1038
      %1274 = vmatpush.bf16.msra.mxu0 %v1037
      %1275 = vmatpush.bf16.msra.mxu0 %v1036
      %1276 = vmatpush.bf16.msra.mxu0 %v1035
      %1277 = vmatpush.bf16.msra.mxu0 %v1034
      %1278 = vmatpush.bf16.msra.mxu0 %v1033
      %1279 = vmatpush.bf16.msra.mxu0 %v1032
      %1280 = vmatpush.bf16.msra.mxu0 %v1031
      %1281 = vmatmul.bf16.gmra.mxu0 %v697
      %v1282 = vpop.f32.mrf.mxu0
      %v1283 = vadd.f32 %v1194, %v1282
      %v1284 = vpop.f32.mrf.mxu0
      %v1285 = vadd.f32 %v1196, %v1284
      %1286 = vmatmul.bf16.gmra.mxu0 %v702
      %v1287 = vpop.f32.mrf.mxu0
      %v1288 = vadd.f32 %v1199, %v1287
      %v1289 = vpop.f32.mrf.mxu0
      %v1290 = vadd.f32 %v1201, %v1289
      %1291 = vmatmul.bf16.gmra.mxu0 %v707
      %v1292 = vpop.f32.mrf.mxu0
      %v1293 = vadd.f32 %v1204, %v1292
      %v1294 = vpop.f32.mrf.mxu0
      %v1295 = vadd.f32 %v1206, %v1294
      %1296 = vmatmul.bf16.gmra.mxu0 %v712
      %v1297 = vpop.f32.mrf.mxu0
      %v1298 = vadd.f32 %v1209, %v1297
      %v1299 = vpop.f32.mrf.mxu0
      %v1300 = vadd.f32 %v1211, %v1299
      %1301 = vmatmul.bf16.gmra.mxu0 %v717
      %v1302 = vpop.f32.mrf.mxu0
      %v1303 = vadd.f32 %v1214, %v1302
      %v1304 = vpop.f32.mrf.mxu0
      %v1305 = vadd.f32 %v1216, %v1304
      %1306 = vmatmul.bf16.gmra.mxu0 %v722
      %v1307 = vpop.f32.mrf.mxu0
      %v1308 = vadd.f32 %v1219, %v1307
      %v1309 = vpop.f32.mrf.mxu0
      %v1310 = vadd.f32 %v1221, %v1309
      %1311 = vmatmul.bf16.gmra.mxu0 %v727
      %v1312 = vpop.f32.mrf.mxu0
      %v1313 = vadd.f32 %v1224, %v1312
      %v1314 = vpop.f32.mrf.mxu0
      %v1315 = vadd.f32 %v1226, %v1314
      %1316 = vmatmul.bf16.gmra.mxu0 %v732
      %v1317 = vpop.f32.mrf.mxu0
      %v1318 = vadd.f32 %v1229, %v1317
      %v1319 = vpop.f32.mrf.mxu0
      %v1320 = vadd.f32 %v1231, %v1319
      %1321 = vmatmul.bf16.gmra.mxu0 %v737
      %v1322 = vpop.f32.mrf.mxu0
      %v1323 = vadd.f32 %v1234, %v1322
      %v1324 = vpop.f32.mrf.mxu0
      %v1325 = vadd.f32 %v1236, %v1324
      %1326 = vmatmul.bf16.gmra.mxu0 %v742
      %v1327 = vpop.f32.mrf.mxu0
      %v1328 = vadd.f32 %v1239, %v1327
      %v1329 = vpop.f32.mrf.mxu0
      %v1330 = vadd.f32 %v1241, %v1329
      %1331 = vmatmul.bf16.gmra.mxu0 %v747
      %v1332 = vpop.f32.mrf.mxu0
      %v1333 = vadd.f32 %v1244, %v1332
      %v1334 = vpop.f32.mrf.mxu0
      %v1335 = vadd.f32 %v1246, %v1334
      %1336 = vmatmul.bf16.gmra.mxu0 %v752
      %v1337 = vpop.f32.mrf.mxu0
      %v1338 = vadd.f32 %v1249, %v1337
      %v1339 = vpop.f32.mrf.mxu0
      %v1340 = vadd.f32 %v1251, %v1339
      %1341 = vmatmul.bf16.gmra.mxu0 %v757
      %v1342 = vpop.f32.mrf.mxu0
      %v1343 = vadd.f32 %v1254, %v1342
      %v1344 = vpop.f32.mrf.mxu0
      %v1345 = vadd.f32 %v1256, %v1344
      %1346 = vmatmul.bf16.gmra.mxu0 %v762
      %v1347 = vpop.f32.mrf.mxu0
      %v1348 = vadd.f32 %v1259, %v1347
      %v1349 = vpop.f32.mrf.mxu0
      %v1350 = vadd.f32 %v1261, %v1349
      %1351 = vmatmul.bf16.gmra.mxu0 %v767
      %v1352 = vpop.f32.mrf.mxu0
      %v1353 = vadd.f32 %v1264, %v1352
      %v1354 = vpop.f32.mrf.mxu0
      %v1355 = vadd.f32 %v1266, %v1354
      %1356 = vmatmul.bf16.gmra.mxu0 %v772
      %v1357 = vpop.f32.mrf.mxu0
      %v1358 = vadd.f32 %v1269, %v1357
      %v1359 = vpop.f32.mrf.mxu0
      %v1360 = vadd.f32 %v1271, %v1359
      %1361 = vdwg.mxu0
      %1362 = vmatpush.bf16.msra.mxu0 %v1046
      %1363 = vmatpush.bf16.msra.mxu0 %v1045
      %1364 = vmatpush.bf16.msra.mxu0 %v1044
      %1365 = vmatpush.bf16.msra.mxu0 %v1043
      %1366 = vmatpush.bf16.msra.mxu0 %v1042
      %1367 = vmatpush.bf16.msra.mxu0 %v1041
      %1368 = vmatpush.bf16.msra.mxu0 %v1040
      %1369 = vmatpush.bf16.msra.mxu0 %v1039
      %1370 = vmatmul.bf16.gmra.mxu0 %v698
      %v1371 = vpop.f32.mrf.mxu0
      %v1372 = vadd.f32 %v1283, %v1371
      %v1373 = vpop.f32.mrf.mxu0
      %v1374 = vadd.f32 %v1285, %v1373
      %1375 = vmatmul.bf16.gmra.mxu0 %v703
      %v1376 = vpop.f32.mrf.mxu0
      %v1377 = vadd.f32 %v1288, %v1376
      %v1378 = vpop.f32.mrf.mxu0
      %v1379 = vadd.f32 %v1290, %v1378
      %1380 = vmatmul.bf16.gmra.mxu0 %v708
      %v1381 = vpop.f32.mrf.mxu0
      %v1382 = vadd.f32 %v1293, %v1381
      %v1383 = vpop.f32.mrf.mxu0
      %v1384 = vadd.f32 %v1295, %v1383
      %1385 = vmatmul.bf16.gmra.mxu0 %v713
      %v1386 = vpop.f32.mrf.mxu0
      %v1387 = vadd.f32 %v1298, %v1386
      %v1388 = vpop.f32.mrf.mxu0
      %v1389 = vadd.f32 %v1300, %v1388
      %1390 = vmatmul.bf16.gmra.mxu0 %v718
      %v1391 = vpop.f32.mrf.mxu0
      %v1392 = vadd.f32 %v1303, %v1391
      %v1393 = vpop.f32.mrf.mxu0
      %v1394 = vadd.f32 %v1305, %v1393
      %1395 = vmatmul.bf16.gmra.mxu0 %v723
      %v1396 = vpop.f32.mrf.mxu0
      %v1397 = vadd.f32 %v1308, %v1396
      %v1398 = vpop.f32.mrf.mxu0
      %v1399 = vadd.f32 %v1310, %v1398
      %1400 = vmatmul.bf16.gmra.mxu0 %v728
      %v1401 = vpop.f32.mrf.mxu0
      %v1402 = vadd.f32 %v1313, %v1401
      %v1403 = vpop.f32.mrf.mxu0
      %v1404 = vadd.f32 %v1315, %v1403
      %1405 = vmatmul.bf16.gmra.mxu0 %v733
      %v1406 = vpop.f32.mrf.mxu0
      %v1407 = vadd.f32 %v1318, %v1406
      %v1408 = vpop.f32.mrf.mxu0
      %v1409 = vadd.f32 %v1320, %v1408
      %1410 = vmatmul.bf16.gmra.mxu0 %v738
      %v1411 = vpop.f32.mrf.mxu0
      %v1412 = vadd.f32 %v1323, %v1411
      %v1413 = vpop.f32.mrf.mxu0
      %v1414 = vadd.f32 %v1325, %v1413
      %1415 = vmatmul.bf16.gmra.mxu0 %v743
      %v1416 = vpop.f32.mrf.mxu0
      %v1417 = vadd.f32 %v1328, %v1416
      %v1418 = vpop.f32.mrf.mxu0
      %v1419 = vadd.f32 %v1330, %v1418
      %1420 = vmatmul.bf16.gmra.mxu0 %v748
      %v1421 = vpop.f32.mrf.mxu0
      %v1422 = vadd.f32 %v1333, %v1421
      %v1423 = vpop.f32.mrf.mxu0
      %v1424 = vadd.f32 %v1335, %v1423
      %1425 = vmatmul.bf16.gmra.mxu0 %v753
      %v1426 = vpop.f32.mrf.mxu0
      %v1427 = vadd.f32 %v1338, %v1426
      %v1428 = vpop.f32.mrf.mxu0
      %v1429 = vadd.f32 %v1340, %v1428
      %1430 = vmatmul.bf16.gmra.mxu0 %v758
      %v1431 = vpop.f32.mrf.mxu0
      %v1432 = vadd.f32 %v1343, %v1431
      %v1433 = vpop.f32.mrf.mxu0
      %v1434 = vadd.f32 %v1345, %v1433
      %1435 = vmatmul.bf16.gmra.mxu0 %v763
      %v1436 = vpop.f32.mrf.mxu0
      %v1437 = vadd.f32 %v1348, %v1436
      %v1438 = vpop.f32.mrf.mxu0
      %v1439 = vadd.f32 %v1350, %v1438
      %1440 = vmatmul.bf16.gmra.mxu0 %v768
      %v1441 = vpop.f32.mrf.mxu0
      %v1442 = vadd.f32 %v1353, %v1441
      %v1443 = vpop.f32.mrf.mxu0
      %v1444 = vadd.f32 %v1355, %v1443
      %1445 = vmatmul.bf16.gmra.mxu0 %v773
      %v1446 = vpop.f32.mrf.mxu0
      %v1447 = vadd.f32 %v1358, %v1446
      %v1448 = vpop.f32.mrf.mxu0
      %v1449 = vadd.f32 %v1360, %v1448
      %1450 = vdwg.mxu0
      %1451 = vmatpush.bf16.msra.mxu0 %v1054
      %1452 = vmatpush.bf16.msra.mxu0 %v1053
      %1453 = vmatpush.bf16.msra.mxu0 %v1052
      %1454 = vmatpush.bf16.msra.mxu0 %v1051
      %1455 = vmatpush.bf16.msra.mxu0 %v1050
      %1456 = vmatpush.bf16.msra.mxu0 %v1049
      %1457 = vmatpush.bf16.msra.mxu0 %v1048
      %1458 = vmatpush.bf16.msra.mxu0 %v1047
      %1459 = vmatmul.bf16.gmra.mxu0 %v699
      %v1460 = vpop.f32.mrf.mxu0
      %v1461 = vadd.f32 %v1372, %v1460
      %v1462 = vpop.f32.mrf.mxu0
      %v1463 = vadd.f32 %v1374, %v1462
      %1464 = vmatmul.bf16.gmra.mxu0 %v704
      %v1465 = vpop.f32.mrf.mxu0
      %v1466 = vadd.f32 %v1377, %v1465
      %v1467 = vpop.f32.mrf.mxu0
      %v1468 = vadd.f32 %v1379, %v1467
      %1469 = vmatmul.bf16.gmra.mxu0 %v709
      %v1470 = vpop.f32.mrf.mxu0
      %v1471 = vadd.f32 %v1382, %v1470
      %v1472 = vpop.f32.mrf.mxu0
      %v1473 = vadd.f32 %v1384, %v1472
      %1474 = vmatmul.bf16.gmra.mxu0 %v714
      %v1475 = vpop.f32.mrf.mxu0
      %v1476 = vadd.f32 %v1387, %v1475
      %v1477 = vpop.f32.mrf.mxu0
      %v1478 = vadd.f32 %v1389, %v1477
      %1479 = vmatmul.bf16.gmra.mxu0 %v719
      %v1480 = vpop.f32.mrf.mxu0
      %v1481 = vadd.f32 %v1392, %v1480
      %v1482 = vpop.f32.mrf.mxu0
      %v1483 = vadd.f32 %v1394, %v1482
      %1484 = vmatmul.bf16.gmra.mxu0 %v724
      %v1485 = vpop.f32.mrf.mxu0
      %v1486 = vadd.f32 %v1397, %v1485
      %v1487 = vpop.f32.mrf.mxu0
      %v1488 = vadd.f32 %v1399, %v1487
      %1489 = vmatmul.bf16.gmra.mxu0 %v729
      %v1490 = vpop.f32.mrf.mxu0
      %v1491 = vadd.f32 %v1402, %v1490
      %v1492 = vpop.f32.mrf.mxu0
      %v1493 = vadd.f32 %v1404, %v1492
      %1494 = vmatmul.bf16.gmra.mxu0 %v734
      %v1495 = vpop.f32.mrf.mxu0
      %v1496 = vadd.f32 %v1407, %v1495
      %v1497 = vpop.f32.mrf.mxu0
      %v1498 = vadd.f32 %v1409, %v1497
      %1499 = vmatmul.bf16.gmra.mxu0 %v739
      %v1500 = vpop.f32.mrf.mxu0
      %v1501 = vadd.f32 %v1412, %v1500
      %v1502 = vpop.f32.mrf.mxu0
      %v1503 = vadd.f32 %v1414, %v1502
      %1504 = vmatmul.bf16.gmra.mxu0 %v744
      %v1505 = vpop.f32.mrf.mxu0
      %v1506 = vadd.f32 %v1417, %v1505
      %v1507 = vpop.f32.mrf.mxu0
      %v1508 = vadd.f32 %v1419, %v1507
      %1509 = vmatmul.bf16.gmra.mxu0 %v749
      %v1510 = vpop.f32.mrf.mxu0
      %v1511 = vadd.f32 %v1422, %v1510
      %v1512 = vpop.f32.mrf.mxu0
      %v1513 = vadd.f32 %v1424, %v1512
      %1514 = vmatmul.bf16.gmra.mxu0 %v754
      %v1515 = vpop.f32.mrf.mxu0
      %v1516 = vadd.f32 %v1427, %v1515
      %v1517 = vpop.f32.mrf.mxu0
      %v1518 = vadd.f32 %v1429, %v1517
      %1519 = vmatmul.bf16.gmra.mxu0 %v759
      %v1520 = vpop.f32.mrf.mxu0
      %v1521 = vadd.f32 %v1432, %v1520
      %v1522 = vpop.f32.mrf.mxu0
      %v1523 = vadd.f32 %v1434, %v1522
      %1524 = vmatmul.bf16.gmra.mxu0 %v764
      %v1525 = vpop.f32.mrf.mxu0
      %v1526 = vadd.f32 %v1437, %v1525
      %v1527 = vpop.f32.mrf.mxu0
      %v1528 = vadd.f32 %v1439, %v1527
      %1529 = vmatmul.bf16.gmra.mxu0 %v769
      %v1530 = vpop.f32.mrf.mxu0
      %v1531 = vadd.f32 %v1442, %v1530
      %v1532 = vpop.f32.mrf.mxu0
      %v1533 = vadd.f32 %v1444, %v1532
      %1534 = vmatmul.bf16.gmra.mxu0 %v774
      %v1535 = vpop.f32.mrf.mxu0
      %v1536 = vadd.f32 %v1447, %v1535
      %v1537 = vpop.f32.mrf.mxu0
      %v1538 = vadd.f32 %v1449, %v1537
      %1539 = vdwg.mxu0
      %v1540 = vmax.f32 %v1461, 0.0
      %v1541 = vmax.f32 %v1463, 0.0
      %v1542 = vmax.f32 %v1466, 0.0
      %v1543 = vmax.f32 %v1468, 0.0
      %v1544 = vmax.f32 %v1471, 0.0
      %v1545 = vmax.f32 %v1473, 0.0
      %v1546 = vmax.f32 %v1476, 0.0
      %v1547 = vmax.f32 %v1478, 0.0
      %v1548 = vmax.f32 %v1481, 0.0
      %v1549 = vmax.f32 %v1483, 0.0
      %v1550 = vmax.f32 %v1486, 0.0
      %v1551 = vmax.f32 %v1488, 0.0
      %v1552 = vmax.f32 %v1491, 0.0
      %v1553 = vmax.f32 %v1493, 0.0
      %v1554 = vmax.f32 %v1496, 0.0
      %v1555 = vmax.f32 %v1498, 0.0
      %v1556 = vmax.f32 %v1501, 0.0
      %v1557 = vmax.f32 %v1503, 0.0
      %v1558 = vmax.f32 %v1506, 0.0
      %v1559 = vmax.f32 %v1508, 0.0
      %v1560 = vmax.f32 %v1511, 0.0
      %v1561 = vmax.f32 %v1513, 0.0
      %v1562 = vmax.f32 %v1516, 0.0
      %v1563 = vmax.f32 %v1518, 0.0
      %v1564 = vmax.f32 %v1521, 0.0
      %v1565 = vmax.f32 %v1523, 0.0
      %v1566 = vmax.f32 %v1526, 0.0
      %v1567 = vmax.f32 %v1528, 0.0
      %v1568 = vmax.f32 %v1531, 0.0
      %v1569 = vmax.f32 %v1533, 0.0
      %v1570 = vmax.f32 %v1536, 0.0
      %v1571 = vmax.f32 %v1538, 0.0
      %v1572 = vpack.c.bf16 %v1540, %v1540
      %v1573 = vpack.c.bf16 %v1541, %v1541
      %v1574 = vpack.c.bf16 %v1542, %v1542
      %v1575 = vpack.c.bf16 %v1543, %v1543
      %v1576 = vpack.c.bf16 %v1544, %v1544
      %v1577 = vpack.c.bf16 %v1545, %v1545
      %v1578 = vpack.c.bf16 %v1546, %v1546
      %v1579 = vpack.c.bf16 %v1547, %v1547
      %v1580 = vpack.c.bf16 %v1548, %v1548
      %v1581 = vpack.c.bf16 %v1549, %v1549
      %v1582 = vpack.c.bf16 %v1550, %v1550
      %v1583 = vpack.c.bf16 %v1551, %v1551
      %v1584 = vpack.c.bf16 %v1552, %v1552
      %v1585 = vpack.c.bf16 %v1553, %v1553
      %v1586 = vpack.c.bf16 %v1554, %v1554
      %v1587 = vpack.c.bf16 %v1555, %v1555
      %v1588 = vpack.c.bf16 %v1556, %v1556
      %v1589 = vpack.c.bf16 %v1557, %v1557
      %v1590 = vpack.c.bf16 %v1558, %v1558
      %v1591 = vpack.c.bf16 %v1559, %v1559
      %v1592 = vpack.c.bf16 %v1560, %v1560
      %v1593 = vpack.c.bf16 %v1561, %v1561
      %v1594 = vpack.c.bf16 %v1562, %v1562
      %v1595 = vpack.c.bf16 %v1563, %v1563
      %v1596 = vpack.c.bf16 %v1564, %v1564
      %v1597 = vpack.c.bf16 %v1565, %v1565
      %v1598 = vpack.c.bf16 %v1566, %v1566
      %v1599 = vpack.c.bf16 %v1567, %v1567
      %v1600 = vpack.c.bf16 %v1568, %v1568
      %v1601 = vpack.c.bf16 %v1569, %v1569
      %v1602 = vpack.c.bf16 %v1570, %v1570
      %v1603 = vpack.c.bf16 %v1571, %v1571
      %1604 = vst [vmem:[%s257] sm:$0xf] %v1572
      %1605 = vst [vmem:[%s257 + $0x4] sm:$0xf] %v1573
      %1606 = vst [vmem:[%s257 + $0x8] sm:$0xf] %v1574
      %1607 = vst [vmem:[%s257 + $0xc] sm:$0xf] %v1575
      %1608 = vst [vmem:[%s257 + $0x10] sm:$0xf] %v1576
      %1609 = vst [vmem:[%s257 + $0x14] sm:$0xf] %v1577
      %1610 = vst [vmem:[%s257 + $0x18] sm:$0xf] %v1578
      %1611 = vst [vmem:[%s257 + $0x1c] sm:$0xf] %v1579
      %1612 = vst [vmem:[%s257 + $0x20] sm:$0xf] %v1580
      %1613 = vst [vmem:[%s257 + $0x24] sm:$0xf] %v1581
      %1614 = vst [vmem:[%s257 + $0x28] sm:$0xf] %v1582
      %1615 = vst [vmem:[%s257 + $0x2c] sm:$0xf] %v1583
      %1616 = vst [vmem:[%s257 + $0x30] sm:$0xf] %v1584
      %1617 = vst [vmem:[%s257 + $0x34] sm:$0xf] %v1585
      %1618 = vst [vmem:[%s257 + $0x38] sm:$0xf] %v1586
      %1619 = vst [vmem:[%s257 + $0x3c] sm:$0xf] %v1587
      %1620 = vst [vmem:[%s257 + $0x40] sm:$0xf] %v1588
      %1621 = vst [vmem:[%s257 + $0x44] sm:$0xf] %v1589
      %1622 = vst [vmem:[%s257 + $0x48] sm:$0xf] %v1590
      %1623 = vst [vmem:[%s257 + $0x4c] sm:$0xf] %v1591
      %1624 = vst [vmem:[%s257 + $0x50] sm:$0xf] %v1592
      %1625 = vst [vmem:[%s257 + $0x54] sm:$0xf] %v1593
      %1626 = vst [vmem:[%s257 + $0x58] sm:$0xf] %v1594
      %1627 = vst [vmem:[%s257 + $0x5c] sm:$0xf] %v1595
      %1628 = vst [vmem:[%s257 + $0x60] sm:$0xf] %v1596
      %1629 = vst [vmem:[%s257 + $0x64] sm:$0xf] %v1597
      %1630 = vst [vmem:[%s257 + $0x68] sm:$0xf] %v1598
      %1631 = vst [vmem:[%s257 + $0x6c] sm:$0xf] %v1599
      %1632 = vst [vmem:[%s257 + $0x70] sm:$0xf] %v1600
      %1633 = vst [vmem:[%s257 + $0x74] sm:$0xf] %v1601
      %1634 = vst [vmem:[%s257 + $0x78] sm:$0xf] %v1602
      %1635 = vst [vmem:[%s257 + $0x7c] sm:$0xf] %v1603
      %s1636 = smul.u32 32, %s21
      %p1637 = scmp.lt.s32.totalorder %s19, 1
      %s1638 = scalar_select %p1637, %s19, 1
      %p1639 = scmp.lt.s32.totalorder %s1636, 31
      %s1640 = scalar_select %p1639, %s1636, 31
      %p1641 = scmp.lt.s32.totalorder %s20, 0
      %s1642 = scalar_select %p1641, %s20, 0
      %s1643 = sadd.s32 %s1642, %s1640
      %s1644 = smul.addr %s1638, 32
      %s1645 = sadd.s32 %s1643, %s1644
      %s1646 = smul.addr %s1645, 4
      %s1647 = scalar_lea.vmem %s3, %s1646
      // Predicated region
      $region33: #{_lambda_.4} parent=31 // pred_check
        %p1648 = pneg %p135
      $region34: #{_lambda_.4} parent=31 // pred_check_branch
        %1650 = sbr.rel (%p1648) target = $region36
      $region35: #{_lambda_.4} parent=31 // pred_region
        %s1651 = smul.u32 32, %s21
      $region36: #{_lambda_.4} parent=31 // pred_fallthru
        _
    $region32: #{_lambda_.4} parent=5 // pred_fallthru
      _
    %p1652 = scmp.le.s32.totalorder 2, %s9
    // Predicated region
    $region37: #{_lambda_.4} parent=5 // pred_check
      %p1653 = pneg %p1652
    $region38: #{_lambda_.4} parent=5 // pred_check_branch
      %1655 = sbr.rel (%p1653) target = $region40
    $region39: #{_lambda_.4} parent=5 // pred_region
      %s1656 = ssub.s32 %s9, 2
      // Predicated region
      $region41: #{_lambda_.4} parent=39 // pred_check
        %p1657 = pneg %p141
      $region42: #{_lambda_.4} parent=39 // pred_check_branch
        %1659 = sbr.rel (%p1657) target = $region44
      $region43: #{_lambda_.4} parent=39 // pred_region
        %s1660 = smul.u32 32, %s24
        %p1661 = scmp.lt.s32.totalorder %s22, 1
        %s1662 = scalar_select %p1661, %s22, 1
        %p1663 = scmp.lt.s32.totalorder %s1660, 31
        %s1664 = scalar_select %p1663, %s1660, 31
        %p1665 = scmp.lt.s32.totalorder %s23, 0
        %s1666 = scalar_select %p1665, %s23, 0
        %s1667 = sadd.s32 %s1666, %s1664
        %s1668 = smul.addr %s1662, 32
        %s1669 = sadd.s32 %s1667, %s1668
        %s1670 = smul.addr %s1669, 4
        %s1671 = scalar_lea.vmem %s3, %s1670
      $region44: #{_lambda_.4} parent=39 // pred_fallthru
        _
    $region40: #{_lambda_.4} parent=5 // pred_fallthru
      _
  $region6: #{_lambda_.4} parent=0 // loop_footer
    %s13 = sadd.s32 1, %s9
  $region7: #{_lambda_.4} parent=0 // loop_footer_branch
    %8 = sbr.rel target = $region3
  $region8: #{_lambda_.4} parent=0 // loop_exit
    _

// kernel: _lambda_.5
$region0: #{_lambda_.5}
  #allocation0 [shape = 'u32[]', space=smem, size = 0x4, offset = 0x4, fixed_abs, tag = 'smem constant byte address 0x4 - core index']
  #allocation1 [shape = 'u32[72,128]{1,0:T(1,128)}', space=vmem, size = 0x9000, scoped, tag = 'internal scratch']
  %s0 = inlined_call_operand.vmem [shape: bf16[2,64,1152], index: 0, kind: input, shape index: {}]
  %s1 = inlined_call_operand.vmem [shape: bf16[1152,256], index: 1, kind: input, shape index: {}]
  %s2 = inlined_call_operand.vmem [shape: f32[1,256], index: 2, kind: input, shape index: {}]
  %s3 = inlined_call_operand.vmem [shape: bf16[2,64,256], index: 3, kind: output, shape index: {}]
  %s4 = sld [smem:[#allocation0]]
  $region45: #{_lambda_.5} parent=0
    _
  %s6 = ssub.s32 1, %s4
  %s7 = scalar_select 0, %s6, %s4
  loop: start=0, step=1, limit=4
  $region2: #{_lambda_.5} parent=0 // loop_pre_header
    _
  $region3: #{_lambda_.5} parent=0 // loop_header
    %s9 = sphi 0, %s13
    %p10 = scmp.ge.s32.totalorder %s9, 4
    %s16 = sphi 0, %s35
    %s17 = sphi 0, %s31
    %s18 = sphi 0, %s27
    %s19 = sphi 0, %s16
    %s20 = sphi 0, %s17
    %s21 = sphi 0, %s18
    %s22 = sphi 0, %s19
    %s23 = sphi 0, %s20
    %s24 = sphi 0, %s21
    %s40 = sphi 0, %s42
    %s43 = sphi 0, %s40
    %s44 = sphi 0, %s43
    %s60 = sphi 0, %s44
    %s66 = sphi 0, %s68
    %s69 = sphi 0, %s66
    %s70 = sphi 0, %s69
    %s86 = sphi 0, %s70
    %s92 = sphi 0, %s94
    %s95 = sphi 0, %s92
    %s96 = sphi 0, %s95
    %s112 = sphi 0, %s96
    %s122 = sphi 0, %s124
    %s125 = sphi 0, %s122
    %s126 = sphi 0, %s125
    %s142 = sphi 0, %s126
  $region4: #{_lambda_.5} parent=0 // loop_header_branch
    %12 = sbr.rel (%p10) target = $region8
  $region5: #{_lambda_.5} parent=0 // loop_body
    %s14 = ssub.s32 %s9, 1
    %s15 = ssub.s32 %s9, 2
    %s25 = sadd.s32 1, %s18
    %p26 = scmp.ge.s32.totalorder %s25, 1
    %s27 = scalar_select %p26, 0, %s25
    %s28 = sadd.s32 1, %s17
    %s29 = scalar_select %p26, %s28, %s17
    %p30 = scmp.ge.s32.totalorder %s29, 1
    %s31 = scalar_select %p30, 0, %s29
    %s32 = sadd.s32 1, %s16
    %s33 = scalar_select %p30, %s32, %s16
    %p34 = scmp.ge.s32.totalorder %s33, 2
    %s35 = scalar_select %p34, 0, %s33
    %s36 = ssub.s32 %s16, %s35
    %s37 = ssub.s32 %s18, %s27
    %s38 = sor.u32 %s36, %s37
    %p39 = scmp.eq.s32.totalorder %s38, 0
    %s41 = sadd.s32 %s40, 1
    %s42 = scalar_select %p39, %s40, %s41
    %p45 = pneg %p39
    %p46 = scmp.eq.s32.totalorder %s9, 1
    %p47 = por %p45, %p46
    %p48 = scmp.ne.s32.totalorder %s40, %s43
    %p49 = scmp.eq.s32.totalorder %s9, 0
    %p50 = por %p48, %p49
    %p51 = scmp.ne.s32.totalorder %s40, %s43
    %p52 = scmp.eq.s32.totalorder %s14, 1
    %p53 = por %p51, %p52
    %p54 = scmp.ne.s32.totalorder %s43, %s44
    %p55 = scmp.eq.s32.totalorder %s14, 0
    %p56 = por %p54, %p55
    %p57 = scmp.ne.s32.totalorder %s43, %s44
    %p58 = scmp.eq.s32.totalorder %s15, 1
    %p59 = por %p57, %p58
    %p61 = scmp.ne.s32.totalorder %s44, %s60
    %p62 = scmp.eq.s32.totalorder %s15, 0
    %p63 = por %p61, %p62
    %s64 = ssub.s32 %s17, %s31
    %p65 = scmp.eq.s32.totalorder %s64, 0
    %s67 = sadd.s32 %s66, 1
    %s68 = scalar_select %p65, %s66, %s67
    %p71 = pneg %p65
    %p72 = scmp.eq.s32.totalorder %s9, 1
    %p73 = por %p71, %p72
    %p74 = scmp.ne.s32.totalorder %s66, %s69
    %p75 = scmp.eq.s32.totalorder %s9, 0
    %p76 = por %p74, %p75
    %p77 = scmp.ne.s32.totalorder %s66, %s69
    %p78 = scmp.eq.s32.totalorder %s14, 1
    %p79 = por %p77, %p78
    %p80 = scmp.ne.s32.totalorder %s69, %s70
    %p81 = scmp.eq.s32.totalorder %s14, 0
    %p82 = por %p80, %p81
    %p83 = scmp.ne.s32.totalorder %s69, %s70
    %p84 = scmp.eq.s32.totalorder %s15, 1
    %p85 = por %p83, %p84
    %p87 = scmp.ne.s32.totalorder %s70, %s86
    %p88 = scmp.eq.s32.totalorder %s15, 0
    %p89 = por %p87, %p88
    %s90 = ssub.s32 %s17, %s31
    %p91 = scmp.eq.s32.totalorder %s90, 0
    %s93 = sadd.s32 %s92, 1
    %s94 = scalar_select %p91, %s92, %s93
    %p97 = pneg %p91
    %p98 = scmp.eq.s32.totalorder %s9, 1
    %p99 = por %p97, %p98
    %p100 = scmp.ne.s32.totalorder %s92, %s95
    %p101 = scmp.eq.s32.totalorder %s9, 0
    %p102 = por %p100, %p101
    %p103 = scmp.ne.s32.totalorder %s92, %s95
    %p104 = scmp.eq.s32.totalorder %s14, 1
    %p105 = por %p103, %p104
    %p106 = scmp.ne.s32.totalorder %s95, %s96
    %p107 = scmp.eq.s32.totalorder %s14, 0
    %p108 = por %p106, %p107
    %p109 = scmp.ne.s32.totalorder %s95, %s96
    %p110 = scmp.eq.s32.totalorder %s15, 1
    %p111 = por %p109, %p110
    %p113 = scmp.ne.s32.totalorder %s96, %s112
    %p114 = scmp.eq.s32.totalorder %s15, 0
    %p115 = por %p113, %p114
    %s116 = ssub.s32 %s16, %s35
    %s117 = ssub.s32 %s18, %s27
    %s118 = sor.u32 %s116, %s117
    %s119 = ssub.s32 %s17, %s31
    %s120 = sor.u32 %s118, %s119
    %p121 = scmp.eq.s32.totalorder %s120, 0
    %s123 = sadd.s32 %s122, 1
    %s124 = scalar_select %p121, %s122, %s123
    %p127 = pneg %p121
    %p128 = scmp.eq.s32.totalorder %s9, 1
    %p129 = por %p127, %p128
    %p130 = scmp.ne.s32.totalorder %s122, %s125
    %p131 = scmp.eq.s32.totalorder %s9, 0
    %p132 = por %p130, %p131
    %p133 = scmp.ne.s32.totalorder %s122, %s125
    %p134 = scmp.eq.s32.totalorder %s14, 1
    %p135 = por %p133, %p134
    %p136 = scmp.ne.s32.totalorder %s125, %s126
    %p137 = scmp.eq.s32.totalorder %s14, 0
    %p138 = por %p136, %p137
    %p139 = scmp.ne.s32.totalorder %s125, %s126
    %p140 = scmp.eq.s32.totalorder %s15, 1
    %p141 = por %p139, %p140
    %p143 = scmp.ne.s32.totalorder %s126, %s142
    %p144 = scmp.eq.s32.totalorder %s15, 0
    %p145 = por %p143, %p144
    %p146 = scmp.le.s32.totalorder 1, %s9
    %p147 = scmp.lt.s32.totalorder %s9, 3
    %p148 = pnand %p146, %p147
    %p149 = pneg %p148
    // Predicated region
    $region9: #{_lambda_.5} parent=5 // pred_check
      _
    $region10: #{_lambda_.5} parent=5 // pred_check_branch
      %151 = sbr.rel (%p148) target = $region12
    $region11: #{_lambda_.5} parent=5 // pred_region
      %s152 = ssub.s32 %s9, 1
      // Predicated region
      $region13: #{_lambda_.5} parent=11 // pred_check
        %p153 = pneg %p82
      $region14: #{_lambda_.5} parent=11 // pred_check_branch
        %155 = sbr.rel (%p153) target = $region16
      $region15: #{_lambda_.5} parent=11 // pred_region
        %s156 = smul.u32 2, %s20
        %p157 = scmp.lt.s32.totalorder %s156, 1
        %s158 = scalar_select %p157, %s156, 1
        %s159 = smul.addr %s158, 4
        %s160 = scalar_lea.vmem %s1, %s159
        %s161 = smul.u32 2, %s20
      $region16: #{_lambda_.5} parent=11 // pred_fallthru
        _
      // Predicated region
      $region17: #{_lambda_.5} parent=11 // pred_check
        %p162 = pneg %p108
      $region18: #{_lambda_.5} parent=11 // pred_check_branch
        %164 = sbr.rel (%p162) target = $region20
      $region19: #{_lambda_.5} parent=11 // pred_region
        %s165 = smul.u32 2, %s20
        %p166 = scmp.lt.s32.totalorder %s165, 1
        %s167 = scalar_select %p166, %s165, 1
        %s168 = scalar_lea.vmem %s2, %s167
        %s169 = smul.u32 2, %s20
      $region20: #{_lambda_.5} parent=11 // pred_fallthru
        _
    $region12: #{_lambda_.5} parent=5 // pred_fallthru
      _
    %p170 = scmp.lt.s32.totalorder %s9, 2
    // Predicated region
    $region21: #{_lambda_.5} parent=5 // pred_check
      %p171 = pneg %p170
    $region22: #{_lambda_.5} parent=5 // pred_check_branch
      %173 = sbr.rel (%p171) target = $region24
    $region23: #{_lambda_.5} parent=5 // pred_region
      // Predicated region
      $region25: #{_lambda_.5} parent=23 // pred_check
        %p174 = pneg %p50
      $region26: #{_lambda_.5} parent=23 // pred_check_branch
        %176 = sbr.rel (%p174) target = $region28
      $region27: #{_lambda_.5} parent=23 // pred_region
        %s177 = smul.u32 8, %s18
        %p178 = scmp.lt.s32.totalorder %s16, 1
        %s179 = scalar_select %p178, %s16, 1
        %p180 = scmp.lt.s32.totalorder %s177, 7
        %s181 = scalar_select %p180, %s177, 7
        %s182 = smul.addr %s181, 9
        %s183 = smul.addr %s179, 72
        %s184 = sadd.s32 %s182, %s183
        %s185 = smul.addr %s184, 4
        %s186 = scalar_lea.vmem %s0, %s185
        %s187 = smul.u32 8, %s18
      $region28: #{_lambda_.5} parent=23 // pred_fallthru
        _
    $region24: #{_lambda_.5} parent=5 // pred_fallthru
      _
    %p188 = scmp.le.s32.totalorder 1, %s9
    %p189 = scmp.lt.s32.totalorder %s9, 3
    %p190 = pnand %p188, %p189
    %p191 = pneg %p190
    // Predicated region
    $region29: #{_lambda_.5} parent=5 // pred_check
      _
    $region30: #{_lambda_.5} parent=5 // pred_check_branch
      %193 = sbr.rel (%p190) target = $region32
    $region31: #{_lambda_.5} parent=5 // pred_region
      %s194 = ssub.s32 %s9, 1
      %s195 = smul.u32 8, %s21
      %p196 = scmp.lt.s32.totalorder %s19, 1
      %s197 = scalar_select %p196, %s19, 1
      %p198 = scmp.lt.s32.totalorder %s195, 7
      %s199 = scalar_select %p198, %s195, 7
      %s200 = smul.addr %s199, 9
      %s201 = smul.addr %s197, 72
      %s202 = sadd.s32 %s200, %s201
      %s203 = smul.addr %s202, 4
      %s204 = scalar_lea.vmem %s0, %s203
      %p205 = pneg %p56
      %p206 = pneg %p53
      %s207 = smul.u32 2, %s20
      %p208 = scmp.lt.s32.totalorder %s207, 1
      %s209 = scalar_select %p208, %s207, 1
      %s210 = smul.addr %s209, 4
      %s211 = scalar_lea.vmem %s1, %s210
      %p212 = pneg %p82
      %p213 = pneg %p79
      %s214 = smul.u32 2, %s20
      %p215 = scmp.lt.s32.totalorder %s214, 1
      %s216 = scalar_select %p215, %s214, 1
      %s217 = scalar_lea.vmem %s2, %s216
      %p218 = pneg %p108
      %p219 = pneg %p105
      %p220 = pneg %p138
      %p221 = pneg %p135
      %s222 = smul.u32 8, %s21
      %s223 = smul.u32 2, %s20
      %p224 = scmp.lt.s32.totalorder %s19, 1
      %s225 = scalar_select %p224, %s19, 1
      %p226 = scmp.lt.s32.totalorder %s222, 7
      %s227 = scalar_select %p226, %s222, 7
      %p228 = scmp.lt.s32.totalorder %s223, 1
      %s229 = scalar_select %p228, %s223, 1
      %s230 = smul.addr %s227, 2
      %s231 = sadd.s32 %s229, %s230
      %s232 = smul.addr %s225, 16
      %s233 = sadd.s32 %s231, %s232
      %s234 = smul.addr %s233, 4
      %s235 = scalar_lea.vmem %s3, %s234
      %s236 = smul.u32 8, %s21
      %p237 = scmp.lt.s32.totalorder %s19, 1
      %s238 = scalar_select %p237, %s19, 1
      %p239 = scmp.lt.s32.totalorder %s236, 7
      %s240 = scalar_select %p239, %s236, 7
      %s241 = smul.addr %s240, 9
      %s242 = smul.addr %s238, 72
      %s243 = sadd.s32 %s241, %s242
      %s244 = smul.addr %s243, 4
      %s245 = scalar_lea.vmem %s0, %s244
      %s246 = smul.u32 8, %s21
      %s247 = smul.u32 2, %s20
      %p248 = scmp.lt.s32.totalorder %s247, 1
      %s249 = scalar_select %p248, %s247, 1
      %s250 = smul.addr %s249, 4
      %s251 = scalar_lea.vmem %s1, %s250
      %s252 = smul.u32 2, %s20
      %s253 = smul.u32 2, %s20
      %p254 = scmp.lt.s32.totalorder %s253, 1
      %s255 = scalar_select %p254, %s253, 1
      %s256 = scalar_lea.vmem %s2, %s255
      %s257 = smul.u32 2, %s20
      %s258 = smul.u32 8, %s21
      %s259 = smul.u32 2, %s20
      %p260 = scmp.lt.s32.totalorder %s19, 1
      %s261 = scalar_select %p260, %s19, 1
      %p262 = scmp.lt.s32.totalorder %s258, 7
      %s263 = scalar_select %p262, %s258, 7
      %p264 = scmp.lt.s32.totalorder %s259, 1
      %s265 = scalar_select %p264, %s259, 1
      %s266 = smul.addr %s263, 2
      %s267 = sadd.s32 %s265, %s266
      %s268 = smul.addr %s261, 16
      %s269 = sadd.s32 %s267, %s268
      %s270 = smul.addr %s269, 4
      %s271 = scalar_lea.vmem %s3, %s270
      %s272 = smul.u32 8, %s21
      %s273 = smul.u32 2, %s20
      %v274 = vld [vmem:[%s245] sm:$0xff]
      %v275 = vld [vmem:[%s245 + $0x8] sm:$0xff]
      %v276 = vld [vmem:[%s245 + $0x10] sm:$0xff]
      %v277 = vld [vmem:[%s245 + $0x18] sm:$0xff]
      %v278 = vld [vmem:[%s245 + $0x20] sm:$0xf]
      %v279 = vld [vmem:[%s245 + $0x24] sm:$0xff]
      %v280 = vld [vmem:[%s245 + $0x2c] sm:$0xff]
      %v281 = vld [vmem:[%s245 + $0x34] sm:$0xff]
      %v282 = vld [vmem:[%s245 + $0x3c] sm:$0xff]
      %v283 = vld [vmem:[%s245 + $0x44] sm:$0xf]
      %v284 = vld [vmem:[%s245 + $0x48] sm:$0xff]
      %v285 = vld [vmem:[%s245 + $0x50] sm:$0xff]
      %v286 = vld [vmem:[%s245 + $0x58] sm:$0xff]
      %v287 = vld [vmem:[%s245 + $0x60] sm:$0xff]
      %v288 = vld [vmem:[%s245 + $0x68] sm:$0xf]
      %v289 = vld [vmem:[%s245 + $0x6c] sm:$0xff]
      %v290 = vld [vmem:[%s245 + $0x74] sm:$0xff]
      %v291 = vld [vmem:[%s245 + $0x7c] sm:$0xff]
      %v292 = vld [vmem:[%s245 + $0x84] sm:$0xff]
      %v293 = vld [vmem:[%s245 + $0x8c] sm:$0xf]
      %v294 = vld [vmem:[%s245 + $0x90] sm:$0xff]
      %v295 = vld [vmem:[%s245 + $0x98] sm:$0xff]
      %v296 = vld [vmem:[%s245 + $0xa0] sm:$0xff]
      %v297 = vld [vmem:[%s245 + $0xa8] sm:$0xff]
      %v298 = vld [vmem:[%s245 + $0xb0] sm:$0xf]
      %v299 = vld [vmem:[%s245 + $0xb4] sm:$0xff]
      %v300 = vld [vmem:[%s245 + $0xbc] sm:$0xff]
      %v301 = vld [vmem:[%s245 + $0xc4] sm:$0xff]
      %v302 = vld [vmem:[%s245 + $0xcc] sm:$0xff]
      %v303 = vld [vmem:[%s245 + $0xd4] sm:$0xf]
      %v304 = vld [vmem:[%s245 + $0xd8] sm:$0xff]
      %v305 = vld [vmem:[%s245 + $0xe0] sm:$0xff]
      %v306 = vld [vmem:[%s245 + $0xe8] sm:$0xff]
      %v307 = vld [vmem:[%s245 + $0xf0] sm:$0xff]
      %v308 = vld [vmem:[%s245 + $0xf8] sm:$0xf]
      %v309 = vld [vmem:[%s245 + $0xfc] sm:$0xff]
      %v310 = vld [vmem:[%s245 + $0x104] sm:$0xff]
      %v311 = vld [vmem:[%s245 + $0x10c] sm:$0xff]
      %v312 = vld [vmem:[%s245 + $0x114] sm:$0xff]
      %v313 = vld [vmem:[%s245 + $0x11c] sm:$0xf]
      %v314 = vld [vmem:[%s251] sm:$0xff]
      %v315 = vld [vmem:[%s251 + $0x8] sm:$0xff]
      %v316 = vld [vmem:[%s251 + $0x10] sm:$0xff]
      %v317 = vld [vmem:[%s251 + $0x18] sm:$0xff]
      %v318 = vld [vmem:[%s251 + $0x20] sm:$0xff]
      %v319 = vld [vmem:[%s251 + $0x28] sm:$0xff]
      %v320 = vld [vmem:[%s251 + $0x30] sm:$0xff]
      %v321 = vld [vmem:[%s251 + $0x38] sm:$0xff]
      %v322 = vld [vmem:[%s251 + $0x40] sm:$0xff]
      %v323 = vld [vmem:[%s251 + $0x48] sm:$0xff]
      %v324 = vld [vmem:[%s251 + $0x50] sm:$0xff]
      %v325 = vld [vmem:[%s251 + $0x58] sm:$0xff]
      %v326 = vld [vmem:[%s251 + $0x60] sm:$0xff]
      %v327 = vld [vmem:[%s251 + $0x68] sm:$0xff]
      %v328 = vld [vmem:[%s251 + $0x70] sm:$0xff]
      %v329 = vld [vmem:[%s251 + $0x78] sm:$0xff]
      %v330 = vld [vmem:[%s251 + $0x80] sm:$0xff]
      %v331 = vld [vmem:[%s251 + $0x88] sm:$0xff]
      %v332 = vld [vmem:[%s251 + $0x90] sm:$0xff]
      %v333 = vld [vmem:[%s251 + $0x98] sm:$0xff]
      %v334 = vld [vmem:[%s251 + $0xa0] sm:$0xff]
      %v335 = vld [vmem:[%s251 + $0xa8] sm:$0xff]
      %v336 = vld [vmem:[%s251 + $0xb0] sm:$0xff]
      %v337 = vld [vmem:[%s251 + $0xb8] sm:$0xff]
      %v338 = vld [vmem:[%s251 + $0xc0] sm:$0xff]
      %v339 = vld [vmem:[%s251 + $0xc8] sm:$0xff]
      %v340 = vld [vmem:[%s251 + $0xd0] sm:$0xff]
      %v341 = vld [vmem:[%s251 + $0xd8] sm:$0xff]
      %v342 = vld [vmem:[%s251 + $0xe0] sm:$0xff]
      %v343 = vld [vmem:[%s251 + $0xe8] sm:$0xff]
      %v344 = vld [vmem:[%s251 + $0xf0] sm:$0xff]
      %v345 = vld [vmem:[%s251 + $0xf8] sm:$0xff]
      %v346 = vld [vmem:[%s251 + $0x100] sm:$0xff]
      %v347 = vld [vmem:[%s251 + $0x108] sm:$0xff]
      %v348 = vld [vmem:[%s251 + $0x110] sm:$0xff]
      %v349 = vld [vmem:[%s251 + $0x118] sm:$0xff]
      %v350 = vld [vmem:[%s251 + $0x120] sm:$0xff]
      %v351 = vld [vmem:[%s251 + $0x128] sm:$0xff]
      %v352 = vld [vmem:[%s251 + $0x130] sm:$0xff]
      %v353 = vld [vmem:[%s251 + $0x138] sm:$0xff]
      %v354 = vld [vmem:[%s251 + $0x140] sm:$0xff]
      %v355 = vld [vmem:[%s251 + $0x148] sm:$0xff]
      %v356 = vld [vmem:[%s251 + $0x150] sm:$0xff]
      %v357 = vld [vmem:[%s251 + $0x158] sm:$0xff]
      %v358 = vld [vmem:[%s251 + $0x160] sm:$0xff]
      %v359 = vld [vmem:[%s251 + $0x168] sm:$0xff]
      %v360 = vld [vmem:[%s251 + $0x170] sm:$0xff]
      %v361 = vld [vmem:[%s251 + $0x178] sm:$0xff]
      %v362 = vld [vmem:[%s251 + $0x180] sm:$0xff]
      %v363 = vld [vmem:[%s251 + $0x188] sm:$0xff]
      %v364 = vld [vmem:[%s251 + $0x190] sm:$0xff]
      %v365 = vld [vmem:[%s251 + $0x198] sm:$0xff]
      %v366 = vld [vmem:[%s251 + $0x1a0] sm:$0xff]
      %v367 = vld [vmem:[%s251 + $0x1a8] sm:$0xff]
      %v368 = vld [vmem:[%s251 + $0x1b0] sm:$0xff]
      %v369 = vld [vmem:[%s251 + $0x1b8] sm:$0xff]
      %v370 = vld [vmem:[%s251 + $0x1c0] sm:$0xff]
      %v371 = vld [vmem:[%s251 + $0x1c8] sm:$0xff]
      %v372 = vld [vmem:[%s251 + $0x1d0] sm:$0xff]
      %v373 = vld [vmem:[%s251 + $0x1d8] sm:$0xff]
      %v374 = vld [vmem:[%s251 + $0x1e0] sm:$0xff]
      %v375 = vld [vmem:[%s251 + $0x1e8] sm:$0xff]
      %v376 = vld [vmem:[%s251 + $0x1f0] sm:$0xff]
      %v377 = vld [vmem:[%s251 + $0x1f8] sm:$0xff]
      %v378 = vld [vmem:[%s251 + $0x200] sm:$0xff]
      %v379 = vld [vmem:[%s251 + $0x208] sm:$0xff]
      %v380 = vld [vmem:[%s251 + $0x210] sm:$0xff]
      %v381 = vld [vmem:[%s251 + $0x218] sm:$0xff]
      %v382 = vld [vmem:[%s251 + $0x220] sm:$0xff]
      %v383 = vld [vmem:[%s251 + $0x228] sm:$0xff]
      %v384 = vld [vmem:[%s251 + $0x230] sm:$0xff]
      %v385 = vld [vmem:[%s251 + $0x238] sm:$0xff]
      %v386 = vld [vmem:[%s251 + $0x240] sm:$0xff]
      %v387 = vld [vmem:[%s251 + $0x248] sm:$0xff]
      %v388 = vld [vmem:[%s251 + $0x250] sm:$0xff]
      %v389 = vld [vmem:[%s251 + $0x258] sm:$0xff]
      %v390 = vld [vmem:[%s251 + $0x260] sm:$0xff]
      %v391 = vld [vmem:[%s251 + $0x268] sm:$0xff]
      %v392 = vld [vmem:[%s251 + $0x270] sm:$0xff]
      %v393 = vld [vmem:[%s251 + $0x278] sm:$0xff]
      %v394 = vld [vmem:[%s251 + $0x280] sm:$0xff]
      %v395 = vld [vmem:[%s251 + $0x288] sm:$0xff]
      %v396 = vld [vmem:[%s251 + $0x290] sm:$0xff]
      %v397 = vld [vmem:[%s251 + $0x298] sm:$0xff]
      %v398 = vld [vmem:[%s251 + $0x2a0] sm:$0xff]
      %v399 = vld [vmem:[%s251 + $0x2a8] sm:$0xff]
      %v400 = vld [vmem:[%s251 + $0x2b0] sm:$0xff]
      %v401 = vld [vmem:[%s251 + $0x2b8] sm:$0xff]
      %v402 = vld [vmem:[%s251 + $0x2c0] sm:$0xff]
      %v403 = vld [vmem:[%s251 + $0x2c8] sm:$0xff]
      %v404 = vld [vmem:[%s251 + $0x2d0] sm:$0xff]
      %v405 = vld [vmem:[%s251 + $0x2d8] sm:$0xff]
      %v406 = vld [vmem:[%s251 + $0x2e0] sm:$0xff]
      %v407 = vld [vmem:[%s251 + $0x2e8] sm:$0xff]
      %v408 = vld [vmem:[%s251 + $0x2f0] sm:$0xff]
      %v409 = vld [vmem:[%s251 + $0x2f8] sm:$0xff]
      %v410 = vld [vmem:[%s251 + $0x300] sm:$0xff]
      %v411 = vld [vmem:[%s251 + $0x308] sm:$0xff]
      %v412 = vld [vmem:[%s251 + $0x310] sm:$0xff]
      %v413 = vld [vmem:[%s251 + $0x318] sm:$0xff]
      %v414 = vld [vmem:[%s251 + $0x320] sm:$0xff]
      %v415 = vld [vmem:[%s251 + $0x328] sm:$0xff]
      %v416 = vld [vmem:[%s251 + $0x330] sm:$0xff]
      %v417 = vld [vmem:[%s251 + $0x338] sm:$0xff]
      %v418 = vld [vmem:[%s251 + $0x340] sm:$0xff]
      %v419 = vld [vmem:[%s251 + $0x348] sm:$0xff]
      %v420 = vld [vmem:[%s251 + $0x350] sm:$0xff]
      %v421 = vld [vmem:[%s251 + $0x358] sm:$0xff]
      %v422 = vld [vmem:[%s251 + $0x360] sm:$0xff]
      %v423 = vld [vmem:[%s251 + $0x368] sm:$0xff]
      %v424 = vld [vmem:[%s251 + $0x370] sm:$0xff]
      %v425 = vld [vmem:[%s251 + $0x378] sm:$0xff]
      %v426 = vld [vmem:[%s251 + $0x380] sm:$0xff]
      %v427 = vld [vmem:[%s251 + $0x388] sm:$0xff]
      %v428 = vld [vmem:[%s251 + $0x390] sm:$0xff]
      %v429 = vld [vmem:[%s251 + $0x398] sm:$0xff]
      %v430 = vld [vmem:[%s251 + $0x3a0] sm:$0xff]
      %v431 = vld [vmem:[%s251 + $0x3a8] sm:$0xff]
      %v432 = vld [vmem:[%s251 + $0x3b0] sm:$0xff]
      %v433 = vld [vmem:[%s251 + $0x3b8] sm:$0xff]
      %v434 = vld [vmem:[%s251 + $0x3c0] sm:$0xff]
      %v435 = vld [vmem:[%s251 + $0x3c8] sm:$0xff]
      %v436 = vld [vmem:[%s251 + $0x3d0] sm:$0xff]
      %v437 = vld [vmem:[%s251 + $0x3d8] sm:$0xff]
      %v438 = vld [vmem:[%s251 + $0x3e0] sm:$0xff]
      %v439 = vld [vmem:[%s251 + $0x3e8] sm:$0xff]
      %v440 = vld [vmem:[%s251 + $0x3f0] sm:$0xff]
      %v441 = vld [vmem:[%s251 + $0x3f8] sm:$0xff]
      %v442 = vld [vmem:[%s251 + $0x400] sm:$0xff]
      %v443 = vld [vmem:[%s251 + $0x408] sm:$0xff]
      %v444 = vld [vmem:[%s251 + $0x410] sm:$0xff]
      %v445 = vld [vmem:[%s251 + $0x418] sm:$0xff]
      %v446 = vld [vmem:[%s251 + $0x420] sm:$0xff]
      %v447 = vld [vmem:[%s251 + $0x428] sm:$0xff]
      %v448 = vld [vmem:[%s251 + $0x430] sm:$0xff]
      %v449 = vld [vmem:[%s251 + $0x438] sm:$0xff]
      %v450 = vld [vmem:[%s251 + $0x440] sm:$0xff]
      %v451 = vld [vmem:[%s251 + $0x448] sm:$0xff]
      %v452 = vld [vmem:[%s251 + $0x450] sm:$0xff]
      %v453 = vld [vmem:[%s251 + $0x458] sm:$0xff]
      %v454 = vld [vmem:[%s251 + $0x460] sm:$0xff]
      %v455 = vld [vmem:[%s251 + $0x468] sm:$0xff]
      %v456 = vld [vmem:[%s251 + $0x470] sm:$0xff]
      %v457 = vld [vmem:[%s251 + $0x478] sm:$0xff]
      %v458 = vld [vmem:[%s256] sm:$0x3]
      %v460 = vperm.slane %v458, 0
      %v461 = vperm.slane %v458, 1
      %v504 = vunpack.c.l.b16 %v274
      %v505 = vunpack.c.h.b16 %v274
      %v506 = vunpack.c.l.b16 %v275
      %v507 = vunpack.c.h.b16 %v275
      %v508 = vunpack.c.l.b16 %v276
      %v509 = vunpack.c.h.b16 %v276
      %v510 = vunpack.c.l.b16 %v277
      %v511 = vunpack.c.h.b16 %v277
      %v512 = vunpack.c.l.b16 %v278
      %v513 = vunpack.c.l.b16 %v279
      %v514 = vunpack.c.h.b16 %v279
      %v515 = vunpack.c.l.b16 %v280
      %v516 = vunpack.c.h.b16 %v280
      %v517 = vunpack.c.l.b16 %v281
      %v518 = vunpack.c.h.b16 %v281
      %v519 = vunpack.c.l.b16 %v282
      %v520 = vunpack.c.h.b16 %v282
      %v521 = vunpack.c.l.b16 %v283
      %v522 = vunpack.c.l.b16 %v284
      %v523 = vunpack.c.h.b16 %v284
      %v524 = vunpack.c.l.b16 %v285
      %v525 = vunpack.c.h.b16 %v285
      %v526 = vunpack.c.l.b16 %v286
      %v527 = vunpack.c.h.b16 %v286
      %v528 = vunpack.c.l.b16 %v287
      %v529 = vunpack.c.h.b16 %v287
      %v530 = vunpack.c.l.b16 %v288
      %v531 = vunpack.c.l.b16 %v289
      %v532 = vunpack.c.h.b16 %v289
      %v533 = vunpack.c.l.b16 %v290
      %v534 = vunpack.c.h.b16 %v290
      %v535 = vunpack.c.l.b16 %v291
      %v536 = vunpack.c.h.b16 %v291
      %v537 = vunpack.c.l.b16 %v292
      %v538 = vunpack.c.h.b16 %v292
      %v539 = vunpack.c.l.b16 %v293
      %v540 = vunpack.c.l.b16 %v294
      %v541 = vunpack.c.h.b16 %v294
      %v542 = vunpack.c.l.b16 %v295
      %v543 = vunpack.c.h.b16 %v295
      %v544 = vunpack.c.l.b16 %v296
      %v545 = vunpack.c.h.b16 %v296
      %v546 = vunpack.c.l.b16 %v297
      %v547 = vunpack.c.h.b16 %v297
      %v548 = vunpack.c.l.b16 %v298
      %v549 = vunpack.c.l.b16 %v299
      %v550 = vunpack.c.h.b16 %v299
      %v551 = vunpack.c.l.b16 %v300
      %v552 = vunpack.c.h.b16 %v300
      %v553 = vunpack.c.l.b16 %v301
      %v554 = vunpack.c.h.b16 %v301
      %v555 = vunpack.c.l.b16 %v302
      %v556 = vunpack.c.h.b16 %v302
      %v557 = vunpack.c.l.b16 %v303
      %v558 = vunpack.c.l.b16 %v304
      %v559 = vunpack.c.h.b16 %v304
      %v560 = vunpack.c.l.b16 %v305
      %v561 = vunpack.c.h.b16 %v305
      %v562 = vunpack.c.l.b16 %v306
      %v563 = vunpack.c.h.b16 %v306
      %v564 = vunpack.c.l.b16 %v307
      %v565 = vunpack.c.h.b16 %v307
      %v566 = vunpack.c.l.b16 %v308
      %v567 = vunpack.c.l.b16 %v309
      %v568 = vunpack.c.h.b16 %v309
      %v569 = vunpack.c.l.b16 %v310
      %v570 = vunpack.c.h.b16 %v310
      %v571 = vunpack.c.l.b16 %v311
      %v572 = vunpack.c.h.b16 %v311
      %v573 = vunpack.c.l.b16 %v312
      %v574 = vunpack.c.h.b16 %v312
      %v575 = vunpack.c.l.b16 %v313
      %v576 = vpack.c.b16 %v513, %v504
      %v577 = vpack.c.b16 %v514, %v505
      %v578 = vpack.c.b16 %v515, %v506
      %v579 = vpack.c.b16 %v516, %v507
      %v580 = vpack.c.b16 %v517, %v508
      %v581 = vpack.c.b16 %v518, %v509
      %v582 = vpack.c.b16 %v519, %v510
      %v583 = vpack.c.b16 %v520, %v511
      %v584 = vpack.c.b16 %v521, %v512
      %v585 = vpack.c.b16 %v531, %v522
      %v586 = vpack.c.b16 %v532, %v523
      %v587 = vpack.c.b16 %v533, %v524
      %v588 = vpack.c.b16 %v534, %v525
      %v589 = vpack.c.b16 %v535, %v526
      %v590 = vpack.c.b16 %v536, %v527
      %v591 = vpack.c.b16 %v537, %v528
      %v592 = vpack.c.b16 %v538, %v529
      %v593 = vpack.c.b16 %v539, %v530
      %v594 = vpack.c.b16 %v549, %v540
      %v595 = vpack.c.b16 %v550, %v541
      %v596 = vpack.c.b16 %v551, %v542
      %v597 = vpack.c.b16 %v552, %v543
      %v598 = vpack.c.b16 %v553, %v544
      %v599 = vpack.c.b16 %v554, %v545
      %v600 = vpack.c.b16 %v555, %v546
      %v601 = vpack.c.b16 %v556, %v547
      %v602 = vpack.c.b16 %v557, %v548
      %v603 = vpack.c.b16 %v567, %v558
      %v604 = vpack.c.b16 %v568, %v559
      %v605 = vpack.c.b16 %v569, %v560
      %v606 = vpack.c.b16 %v570, %v561
      %v607 = vpack.c.b16 %v571, %v562
      %v608 = vpack.c.b16 %v572, %v563
      %v609 = vpack.c.b16 %v573, %v564
      %v610 = vpack.c.b16 %v574, %v565
      %v611 = vpack.c.b16 %v575, %v566
      %v792 = vunpack.c.l.b16 %v314
      %v793 = vunpack.c.h.b16 %v314
      %v794 = vunpack.c.l.b16 %v315
      %v795 = vunpack.c.h.b16 %v315
      %v796 = vunpack.c.l.b16 %v316
      %v797 = vunpack.c.h.b16 %v316
      %v798 = vunpack.c.l.b16 %v317
      %v799 = vunpack.c.h.b16 %v317
      %v800 = vunpack.c.l.b16 %v318
      %v801 = vunpack.c.h.b16 %v318
      %v802 = vunpack.c.l.b16 %v319
      %v803 = vunpack.c.h.b16 %v319
      %v804 = vunpack.c.l.b16 %v320
      %v805 = vunpack.c.h.b16 %v320
      %v806 = vunpack.c.l.b16 %v321
      %v807 = vunpack.c.h.b16 %v321
      %v808 = vunpack.c.l.b16 %v322
      %v809 = vunpack.c.h.b16 %v322
      %v810 = vunpack.c.l.b16 %v323
      %v811 = vunpack.c.h.b16 %v323
      %v812 = vunpack.c.l.b16 %v324
      %v813 = vunpack.c.h.b16 %v324
      %v814 = vunpack.c.l.b16 %v325
      %v815 = vunpack.c.h.b16 %v325
      %v816 = vunpack.c.l.b16 %v326
      %v817 = vunpack.c.h.b16 %v326
      %v818 = vunpack.c.l.b16 %v327
      %v819 = vunpack.c.h.b16 %v327
      %v820 = vunpack.c.l.b16 %v328
      %v821 = vunpack.c.h.b16 %v328
      %v822 = vunpack.c.l.b16 %v329
      %v823 = vunpack.c.h.b16 %v329
      %v824 = vunpack.c.l.b16 %v330
      %v825 = vunpack.c.h.b16 %v330
      %v826 = vunpack.c.l.b16 %v331
      %v827 = vunpack.c.h.b16 %v331
      %v828 = vunpack.c.l.b16 %v332
      %v829 = vunpack.c.h.b16 %v332
      %v830 = vunpack.c.l.b16 %v333
      %v831 = vunpack.c.h.b16 %v333
      %v832 = vunpack.c.l.b16 %v334
      %v833 = vunpack.c.h.b16 %v334
      %v834 = vunpack.c.l.b16 %v335
      %v835 = vunpack.c.h.b16 %v335
      %v836 = vunpack.c.l.b16 %v336
      %v837 = vunpack.c.h.b16 %v336
      %v838 = vunpack.c.l.b16 %v337
      %v839 = vunpack.c.h.b16 %v337
      %v840 = vunpack.c.l.b16 %v338
      %v841 = vunpack.c.h.b16 %v338
      %v842 = vunpack.c.l.b16 %v339
      %v843 = vunpack.c.h.b16 %v339
      %v844 = vunpack.c.l.b16 %v340
      %v845 = vunpack.c.h.b16 %v340
      %v846 = vunpack.c.l.b16 %v341
      %v847 = vunpack.c.h.b16 %v341
      %v848 = vunpack.c.l.b16 %v342
      %v849 = vunpack.c.h.b16 %v342
      %v850 = vunpack.c.l.b16 %v343
      %v851 = vunpack.c.h.b16 %v343
      %v852 = vunpack.c.l.b16 %v344
      %v853 = vunpack.c.h.b16 %v344
      %v854 = vunpack.c.l.b16 %v345
      %v855 = vunpack.c.h.b16 %v345
      %v856 = vunpack.c.l.b16 %v346
      %v857 = vunpack.c.h.b16 %v346
      %v858 = vunpack.c.l.b16 %v347
      %v859 = vunpack.c.h.b16 %v347
      %v860 = vunpack.c.l.b16 %v348
      %v861 = vunpack.c.h.b16 %v348
      %v862 = vunpack.c.l.b16 %v349
      %v863 = vunpack.c.h.b16 %v349
      %v864 = vunpack.c.l.b16 %v350
      %v865 = vunpack.c.h.b16 %v350
      %v866 = vunpack.c.l.b16 %v351
      %v867 = vunpack.c.h.b16 %v351
      %v868 = vunpack.c.l.b16 %v352
      %v869 = vunpack.c.h.b16 %v352
      %v870 = vunpack.c.l.b16 %v353
      %v871 = vunpack.c.h.b16 %v353
      %v872 = vunpack.c.l.b16 %v354
      %v873 = vunpack.c.h.b16 %v354
      %v874 = vunpack.c.l.b16 %v355
      %v875 = vunpack.c.h.b16 %v355
      %v876 = vunpack.c.l.b16 %v356
      %v877 = vunpack.c.h.b16 %v356
      %v878 = vunpack.c.l.b16 %v357
      %v879 = vunpack.c.h.b16 %v357
      %v880 = vunpack.c.l.b16 %v358
      %v881 = vunpack.c.h.b16 %v358
      %v882 = vunpack.c.l.b16 %v359
      %v883 = vunpack.c.h.b16 %v359
      %v884 = vunpack.c.l.b16 %v360
      %v885 = vunpack.c.h.b16 %v360
      %v886 = vunpack.c.l.b16 %v361
      %v887 = vunpack.c.h.b16 %v361
      %v888 = vunpack.c.l.b16 %v362
      %v889 = vunpack.c.h.b16 %v362
      %v890 = vunpack.c.l.b16 %v363
      %v891 = vunpack.c.h.b16 %v363
      %v892 = vunpack.c.l.b16 %v364
      %v893 = vunpack.c.h.b16 %v364
      %v894 = vunpack.c.l.b16 %v365
      %v895 = vunpack.c.h.b16 %v365
      %v896 = vunpack.c.l.b16 %v366
      %v897 = vunpack.c.h.b16 %v366
      %v898 = vunpack.c.l.b16 %v367
      %v899 = vunpack.c.h.b16 %v367
      %v900 = vunpack.c.l.b16 %v368
      %v901 = vunpack.c.h.b16 %v368
      %v902 = vunpack.c.l.b16 %v369
      %v903 = vunpack.c.h.b16 %v369
      %v904 = vunpack.c.l.b16 %v370
      %v905 = vunpack.c.h.b16 %v370
      %v906 = vunpack.c.l.b16 %v371
      %v907 = vunpack.c.h.b16 %v371
      %v908 = vunpack.c.l.b16 %v372
      %v909 = vunpack.c.h.b16 %v372
      %v910 = vunpack.c.l.b16 %v373
      %v911 = vunpack.c.h.b16 %v373
      %v912 = vunpack.c.l.b16 %v374
      %v913 = vunpack.c.h.b16 %v374
      %v914 = vunpack.c.l.b16 %v375
      %v915 = vunpack.c.h.b16 %v375
      %v916 = vunpack.c.l.b16 %v376
      %v917 = vunpack.c.h.b16 %v376
      %v918 = vunpack.c.l.b16 %v377
      %v919 = vunpack.c.h.b16 %v377
      %v920 = vunpack.c.l.b16 %v378
      %v921 = vunpack.c.h.b16 %v378
      %v922 = vunpack.c.l.b16 %v379
      %v923 = vunpack.c.h.b16 %v379
      %v924 = vunpack.c.l.b16 %v380
      %v925 = vunpack.c.h.b16 %v380
      %v926 = vunpack.c.l.b16 %v381
      %v927 = vunpack.c.h.b16 %v381
      %v928 = vunpack.c.l.b16 %v382
      %v929 = vunpack.c.h.b16 %v382
      %v930 = vunpack.c.l.b16 %v383
      %v931 = vunpack.c.h.b16 %v383
      %v932 = vunpack.c.l.b16 %v384
      %v933 = vunpack.c.h.b16 %v384
      %v934 = vunpack.c.l.b16 %v385
      %v935 = vunpack.c.h.b16 %v385
      %v936 = vunpack.c.l.b16 %v386
      %v937 = vunpack.c.h.b16 %v386
      %v938 = vunpack.c.l.b16 %v387
      %v939 = vunpack.c.h.b16 %v387
      %v940 = vunpack.c.l.b16 %v388
      %v941 = vunpack.c.h.b16 %v388
      %v942 = vunpack.c.l.b16 %v389
      %v943 = vunpack.c.h.b16 %v389
      %v944 = vunpack.c.l.b16 %v390
      %v945 = vunpack.c.h.b16 %v390
      %v946 = vunpack.c.l.b16 %v391
      %v947 = vunpack.c.h.b16 %v391
      %v948 = vunpack.c.l.b16 %v392
      %v949 = vunpack.c.h.b16 %v392
      %v950 = vunpack.c.l.b16 %v393
      %v951 = vunpack.c.h.b16 %v393
      %v952 = vunpack.c.l.b16 %v394
      %v953 = vunpack.c.h.b16 %v394
      %v954 = vunpack.c.l.b16 %v395
      %v955 = vunpack.c.h.b16 %v395
      %v956 = vunpack.c.l.b16 %v396
      %v957 = vunpack.c.h.b16 %v396
      %v958 = vunpack.c.l.b16 %v397
      %v959 = vunpack.c.h.b16 %v397
      %v960 = vunpack.c.l.b16 %v398
      %v961 = vunpack.c.h.b16 %v398
      %v962 = vunpack.c.l.b16 %v399
      %v963 = vunpack.c.h.b16 %v399
      %v964 = vunpack.c.l.b16 %v400
      %v965 = vunpack.c.h.b16 %v400
      %v966 = vunpack.c.l.b16 %v401
      %v967 = vunpack.c.h.b16 %v401
      %v968 = vunpack.c.l.b16 %v402
      %v969 = vunpack.c.h.b16 %v402
      %v970 = vunpack.c.l.b16 %v403
      %v971 = vunpack.c.h.b16 %v403
      %v972 = vunpack.c.l.b16 %v404
      %v973 = vunpack.c.h.b16 %v404
      %v974 = vunpack.c.l.b16 %v405
      %v975 = vunpack.c.h.b16 %v405
      %v976 = vunpack.c.l.b16 %v406
      %v977 = vunpack.c.h.b16 %v406
      %v978 = vunpack.c.l.b16 %v407
      %v979 = vunpack.c.h.b16 %v407
      %v980 = vunpack.c.l.b16 %v408
      %v981 = vunpack.c.h.b16 %v408
      %v982 = vunpack.c.l.b16 %v409
      %v983 = vunpack.c.h.b16 %v409
      %v984 = vunpack.c.l.b16 %v410
      %v985 = vunpack.c.h.b16 %v410
      %v986 = vunpack.c.l.b16 %v411
      %v987 = vunpack.c.h.b16 %v411
      %v988 = vunpack.c.l.b16 %v412
      %v989 = vunpack.c.h.b16 %v412
      %v990 = vunpack.c.l.b16 %v413
      %v991 = vunpack.c.h.b16 %v413
      %v992 = vunpack.c.l.b16 %v414
      %v993 = vunpack.c.h.b16 %v414
      %v994 = vunpack.c.l.b16 %v415
      %v995 = vunpack.c.h.b16 %v415
      %v996 = vunpack.c.l.b16 %v416
      %v997 = vunpack.c.h.b16 %v416
      %v998 = vunpack.c.l.b16 %v417
      %v999 = vunpack.c.h.b16 %v417
      %v1000 = vunpack.c.l.b16 %v418
      %v1001 = vunpack.c.h.b16 %v418
      %v1002 = vunpack.c.l.b16 %v419
      %v1003 = vunpack.c.h.b16 %v419
      %v1004 = vunpack.c.l.b16 %v420
      %v1005 = vunpack.c.h.b16 %v420
      %v1006 = vunpack.c.l.b16 %v421
      %v1007 = vunpack.c.h.b16 %v421
      %v1008 = vunpack.c.l.b16 %v422
      %v1009 = vunpack.c.h.b16 %v422
      %v1010 = vunpack.c.l.b16 %v423
      %v1011 = vunpack.c.h.b16 %v423
      %v1012 = vunpack.c.l.b16 %v424
      %v1013 = vunpack.c.h.b16 %v424
      %v1014 = vunpack.c.l.b16 %v425
      %v1015 = vunpack.c.h.b16 %v425
      %v1016 = vunpack.c.l.b16 %v426
      %v1017 = vunpack.c.h.b16 %v426
      %v1018 = vunpack.c.l.b16 %v427
      %v1019 = vunpack.c.h.b16 %v427
      %v1020 = vunpack.c.l.b16 %v428
      %v1021 = vunpack.c.h.b16 %v428
      %v1022 = vunpack.c.l.b16 %v429
      %v1023 = vunpack.c.h.b16 %v429
      %v1024 = vunpack.c.l.b16 %v430
      %v1025 = vunpack.c.h.b16 %v430
      %v1026 = vunpack.c.l.b16 %v431
      %v1027 = vunpack.c.h.b16 %v431
      %v1028 = vunpack.c.l.b16 %v432
      %v1029 = vunpack.c.h.b16 %v432
      %v1030 = vunpack.c.l.b16 %v433
      %v1031 = vunpack.c.h.b16 %v433
      %v1032 = vunpack.c.l.b16 %v434
      %v1033 = vunpack.c.h.b16 %v434
      %v1034 = vunpack.c.l.b16 %v435
      %v1035 = vunpack.c.h.b16 %v435
      %v1036 = vunpack.c.l.b16 %v436
      %v1037 = vunpack.c.h.b16 %v436
      %v1038 = vunpack.c.l.b16 %v437
      %v1039 = vunpack.c.h.b16 %v437
      %v1040 = vunpack.c.l.b16 %v438
      %v1041 = vunpack.c.h.b16 %v438
      %v1042 = vunpack.c.l.b16 %v439
      %v1043 = vunpack.c.h.b16 %v439
      %v1044 = vunpack.c.l.b16 %v440
      %v1045 = vunpack.c.h.b16 %v440
      %v1046 = vunpack.c.l.b16 %v441
      %v1047 = vunpack.c.h.b16 %v441
      %v1048 = vunpack.c.l.b16 %v442
      %v1049 = vunpack.c.h.b16 %v442
      %v1050 = vunpack.c.l.b16 %v443
      %v1051 = vunpack.c.h.b16 %v443
      %v1052 = vunpack.c.l.b16 %v444
      %v1053 = vunpack.c.h.b16 %v444
      %v1054 = vunpack.c.l.b16 %v445
      %v1055 = vunpack.c.h.b16 %v445
      %v1056 = vunpack.c.l.b16 %v446
      %v1057 = vunpack.c.h.b16 %v446
      %v1058 = vunpack.c.l.b16 %v447
      %v1059 = vunpack.c.h.b16 %v447
      %v1060 = vunpack.c.l.b16 %v448
      %v1061 = vunpack.c.h.b16 %v448
      %v1062 = vunpack.c.l.b16 %v449
      %v1063 = vunpack.c.h.b16 %v449
      %v1064 = vunpack.c.l.b16 %v450
      %v1065 = vunpack.c.h.b16 %v450
      %v1066 = vunpack.c.l.b16 %v451
      %v1067 = vunpack.c.h.b16 %v451
      %v1068 = vunpack.c.l.b16 %v452
      %v1069 = vunpack.c.h.b16 %v452
      %v1070 = vunpack.c.l.b16 %v453
      %v1071 = vunpack.c.h.b16 %v453
      %v1072 = vunpack.c.l.b16 %v454
      %v1073 = vunpack.c.h.b16 %v454
      %v1074 = vunpack.c.l.b16 %v455
      %v1075 = vunpack.c.h.b16 %v455
      %v1076 = vunpack.c.l.b16 %v456
      %v1077 = vunpack.c.h.b16 %v456
      %v1078 = vunpack.c.l.b16 %v457
      %v1079 = vunpack.c.h.b16 %v457
      %v1080 = vpack.c.b16 %v794, %v792
      %v1081 = vpack.c.b16 %v795, %v793
      %v1082 = vpack.c.b16 %v798, %v796
      %v1083 = vpack.c.b16 %v799, %v797
      %v1084 = vpack.c.b16 %v802, %v800
      %v1085 = vpack.c.b16 %v803, %v801
      %v1086 = vpack.c.b16 %v806, %v804
      %v1087 = vpack.c.b16 %v807, %v805
      %v1088 = vpack.c.b16 %v810, %v808
      %v1089 = vpack.c.b16 %v811, %v809
      %v1090 = vpack.c.b16 %v814, %v812
      %v1091 = vpack.c.b16 %v815, %v813
      %v1092 = vpack.c.b16 %v818, %v816
      %v1093 = vpack.c.b16 %v819, %v817
      %v1094 = vpack.c.b16 %v822, %v820
      %v1095 = vpack.c.b16 %v823, %v821
      %v1096 = vpack.c.b16 %v826, %v824
      %v1097 = vpack.c.b16 %v827, %v825
      %v1098 = vpack.c.b16 %v830, %v828
      %v1099 = vpack.c.b16 %v831, %v829
      %v1100 = vpack.c.b16 %v834, %v832
      %v1101 = vpack.c.b16 %v835, %v833
      %v1102 = vpack.c.b16 %v838, %v836
      %v1103 = vpack.c.b16 %v839, %v837
      %v1104 = vpack.c.b16 %v842, %v840
      %v1105 = vpack.c.b16 %v843, %v841
      %v1106 = vpack.c.b16 %v846, %v844
      %v1107 = vpack.c.b16 %v847, %v845
      %v1108 = vpack.c.b16 %v850, %v848
      %v1109 = vpack.c.b16 %v851, %v849
      %v1110 = vpack.c.b16 %v854, %v852
      %v1111 = vpack.c.b16 %v855, %v853
      %v1112 = vpack.c.b16 %v858, %v856
      %v1113 = vpack.c.b16 %v859, %v857
      %v1114 = vpack.c.b16 %v862, %v860
      %v1115 = vpack.c.b16 %v863, %v861
      %v1116 = vpack.c.b16 %v866, %v864
      %v1117 = vpack.c.b16 %v867, %v865
      %v1118 = vpack.c.b16 %v870, %v868
      %v1119 = vpack.c.b16 %v871, %v869
      %v1120 = vpack.c.b16 %v874, %v872
      %v1121 = vpack.c.b16 %v875, %v873
      %v1122 = vpack.c.b16 %v878, %v876
      %v1123 = vpack.c.b16 %v879, %v877
      %v1124 = vpack.c.b16 %v882, %v880
      %v1125 = vpack.c.b16 %v883, %v881
      %v1126 = vpack.c.b16 %v886, %v884
      %v1127 = vpack.c.b16 %v887, %v885
      %v1128 = vpack.c.b16 %v890, %v888
      %v1129 = vpack.c.b16 %v891, %v889
      %v1130 = vpack.c.b16 %v894, %v892
      %v1131 = vpack.c.b16 %v895, %v893
      %v1132 = vpack.c.b16 %v898, %v896
      %v1133 = vpack.c.b16 %v899, %v897
      %v1134 = vpack.c.b16 %v902, %v900
      %v1135 = vpack.c.b16 %v903, %v901
      %v1136 = vpack.c.b16 %v906, %v904
      %v1137 = vpack.c.b16 %v907, %v905
      %v1138 = vpack.c.b16 %v910, %v908
      %v1139 = vpack.c.b16 %v911, %v909
      %v1140 = vpack.c.b16 %v914, %v912
      %v1141 = vpack.c.b16 %v915, %v913
      %v1142 = vpack.c.b16 %v918, %v916
      %v1143 = vpack.c.b16 %v919, %v917
      %v1144 = vpack.c.b16 %v922, %v920
      %v1145 = vpack.c.b16 %v923, %v921
      %v1146 = vpack.c.b16 %v926, %v924
      %v1147 = vpack.c.b16 %v927, %v925
      %v1148 = vpack.c.b16 %v930, %v928
      %v1149 = vpack.c.b16 %v931, %v929
      %v1150 = vpack.c.b16 %v934, %v932
      %v1151 = vpack.c.b16 %v935, %v933
      %v1152 = vpack.c.b16 %v938, %v936
      %v1153 = vpack.c.b16 %v939, %v937
      %v1154 = vpack.c.b16 %v942, %v940
      %v1155 = vpack.c.b16 %v943, %v941
      %v1156 = vpack.c.b16 %v946, %v944
      %v1157 = vpack.c.b16 %v947, %v945
      %v1158 = vpack.c.b16 %v950, %v948
      %v1159 = vpack.c.b16 %v951, %v949
      %v1160 = vpack.c.b16 %v954, %v952
      %v1161 = vpack.c.b16 %v955, %v953
      %v1162 = vpack.c.b16 %v958, %v956
      %v1163 = vpack.c.b16 %v959, %v957
      %v1164 = vpack.c.b16 %v962, %v960
      %v1165 = vpack.c.b16 %v963, %v961
      %v1166 = vpack.c.b16 %v966, %v964
      %v1167 = vpack.c.b16 %v967, %v965
      %v1168 = vpack.c.b16 %v970, %v968
      %v1169 = vpack.c.b16 %v971, %v969
      %v1170 = vpack.c.b16 %v974, %v972
      %v1171 = vpack.c.b16 %v975, %v973
      %v1172 = vpack.c.b16 %v978, %v976
      %v1173 = vpack.c.b16 %v979, %v977
      %v1174 = vpack.c.b16 %v982, %v980
      %v1175 = vpack.c.b16 %v983, %v981
      %v1176 = vpack.c.b16 %v986, %v984
      %v1177 = vpack.c.b16 %v987, %v985
      %v1178 = vpack.c.b16 %v990, %v988
      %v1179 = vpack.c.b16 %v991, %v989
      %v1180 = vpack.c.b16 %v994, %v992
      %v1181 = vpack.c.b16 %v995, %v993
      %v1182 = vpack.c.b16 %v998, %v996
      %v1183 = vpack.c.b16 %v999, %v997
      %v1184 = vpack.c.b16 %v1002, %v1000
      %v1185 = vpack.c.b16 %v1003, %v1001
      %v1186 = vpack.c.b16 %v1006, %v1004
      %v1187 = vpack.c.b16 %v1007, %v1005
      %v1188 = vpack.c.b16 %v1010, %v1008
      %v1189 = vpack.c.b16 %v1011, %v1009
      %v1190 = vpack.c.b16 %v1014, %v1012
      %v1191 = vpack.c.b16 %v1015, %v1013
      %v1192 = vpack.c.b16 %v1018, %v1016
      %v1193 = vpack.c.b16 %v1019, %v1017
      %v1194 = vpack.c.b16 %v1022, %v1020
      %v1195 = vpack.c.b16 %v1023, %v1021
      %v1196 = vpack.c.b16 %v1026, %v1024
      %v1197 = vpack.c.b16 %v1027, %v1025
      %v1198 = vpack.c.b16 %v1030, %v1028
      %v1199 = vpack.c.b16 %v1031, %v1029
      %v1200 = vpack.c.b16 %v1034, %v1032
      %v1201 = vpack.c.b16 %v1035, %v1033
      %v1202 = vpack.c.b16 %v1038, %v1036
      %v1203 = vpack.c.b16 %v1039, %v1037
      %v1204 = vpack.c.b16 %v1042, %v1040
      %v1205 = vpack.c.b16 %v1043, %v1041
      %v1206 = vpack.c.b16 %v1046, %v1044
      %v1207 = vpack.c.b16 %v1047, %v1045
      %v1208 = vpack.c.b16 %v1050, %v1048
      %v1209 = vpack.c.b16 %v1051, %v1049
      %v1210 = vpack.c.b16 %v1054, %v1052
      %v1211 = vpack.c.b16 %v1055, %v1053
      %v1212 = vpack.c.b16 %v1058, %v1056
      %v1213 = vpack.c.b16 %v1059, %v1057
      %v1214 = vpack.c.b16 %v1062, %v1060
      %v1215 = vpack.c.b16 %v1063, %v1061
      %v1216 = vpack.c.b16 %v1066, %v1064
      %v1217 = vpack.c.b16 %v1067, %v1065
      %v1218 = vpack.c.b16 %v1070, %v1068
      %v1219 = vpack.c.b16 %v1071, %v1069
      %v1220 = vpack.c.b16 %v1074, %v1072
      %v1221 = vpack.c.b16 %v1075, %v1073
      %v1222 = vpack.c.b16 %v1078, %v1076
      %v1223 = vpack.c.b16 %v1079, %v1077
      %1368 = vmatpush.bf16.msra.mxu0 %v1094
      %1369 = vmatpush.bf16.msra.mxu0 %v1092
      %1370 = vmatpush.bf16.msra.mxu0 %v1090
      %1371 = vmatpush.bf16.msra.mxu0 %v1088
      %1372 = vmatpush.bf16.msra.mxu0 %v1086
      %1373 = vmatpush.bf16.msra.mxu0 %v1084
      %1374 = vmatpush.bf16.msra.mxu0 %v1082
      %1375 = vmatpush.bf16.msra.mxu0 %v1080
      %1376 = vmatmul.bf16.gmra.mxu0 %v576
      %v1377 = vpop.f32.mrf.mxu0
      %v1378 = vadd.f32 %v460, %v1377
      %v1379 = vpop.f32.mrf.mxu0
      %v1380 = vadd.f32 %v460, %v1379
      %1381 = vmatmul.bf16.gmra.mxu0 %v585
      %v1382 = vpop.f32.mrf.mxu0
      %v1383 = vadd.f32 %v460, %v1382
      %v1384 = vpop.f32.mrf.mxu0
      %v1385 = vadd.f32 %v460, %v1384
      %1386 = vmatmul.bf16.gmra.mxu0 %v594
      %v1387 = vpop.f32.mrf.mxu0
      %v1388 = vadd.f32 %v460, %v1387
      %v1389 = vpop.f32.mrf.mxu0
      %v1390 = vadd.f32 %v460, %v1389
      %1391 = vmatmul.bf16.gmra.mxu0 %v603
      %v1392 = vpop.f32.mrf.mxu0
      %v1393 = vadd.f32 %v460, %v1392
      %v1394 = vpop.f32.mrf.mxu0
      %v1395 = vadd.f32 %v460, %v1394
      %1396 = vdwg.mxu0
      %1397 = vmatpush.bf16.msra.mxu0 %v1110
      %1398 = vmatpush.bf16.msra.mxu0 %v1108
      %1399 = vmatpush.bf16.msra.mxu0 %v1106
      %1400 = vmatpush.bf16.msra.mxu0 %v1104
      %1401 = vmatpush.bf16.msra.mxu0 %v1102
      %1402 = vmatpush.bf16.msra.mxu0 %v1100
      %1403 = vmatpush.bf16.msra.mxu0 %v1098
      %1404 = vmatpush.bf16.msra.mxu0 %v1096
      %1405 = vmatmul.bf16.gmra.mxu0 %v577
      %v1406 = vpop.f32.mrf.mxu0
      %v1407 = vadd.f32 %v1378, %v1406
      %v1408 = vpop.f32.mrf.mxu0
      %v1409 = vadd.f32 %v1380, %v1408
      %1410 = vmatmul.bf16.gmra.mxu0 %v586
      %v1411 = vpop.f32.mrf.mxu0
      %v1412 = vadd.f32 %v1383, %v1411
      %v1413 = vpop.f32.mrf.mxu0
      %v1414 = vadd.f32 %v1385, %v1413
      %1415 = vmatmul.bf16.gmra.mxu0 %v595
      %v1416 = vpop.f32.mrf.mxu0
      %v1417 = vadd.f32 %v1388, %v1416
      %v1418 = vpop.f32.mrf.mxu0
      %v1419 = vadd.f32 %v1390, %v1418
      %1420 = vmatmul.bf16.gmra.mxu0 %v604
      %v1421 = vpop.f32.mrf.mxu0
      %v1422 = vadd.f32 %v1393, %v1421
      %v1423 = vpop.f32.mrf.mxu0
      %v1424 = vadd.f32 %v1395, %v1423
      %1425 = vdwg.mxu0
      %1426 = vmatpush.bf16.msra.mxu0 %v1126
      %1427 = vmatpush.bf16.msra.mxu0 %v1124
      %1428 = vmatpush.bf16.msra.mxu0 %v1122
      %1429 = vmatpush.bf16.msra.mxu0 %v1120
      %1430 = vmatpush.bf16.msra.mxu0 %v1118
      %1431 = vmatpush.bf16.msra.mxu0 %v1116
      %1432 = vmatpush.bf16.msra.mxu0 %v1114
      %1433 = vmatpush.bf16.msra.mxu0 %v1112
      %1434 = vmatmul.bf16.gmra.mxu0 %v578
      %v1435 = vpop.f32.mrf.mxu0
      %v1436 = vadd.f32 %v1407, %v1435
      %v1437 = vpop.f32.mrf.mxu0
      %v1438 = vadd.f32 %v1409, %v1437
      %1439 = vmatmul.bf16.gmra.mxu0 %v587
      %v1440 = vpop.f32.mrf.mxu0
      %v1441 = vadd.f32 %v1412, %v1440
      %v1442 = vpop.f32.mrf.mxu0
      %v1443 = vadd.f32 %v1414, %v1442
      %1444 = vmatmul.bf16.gmra.mxu0 %v596
      %v1445 = vpop.f32.mrf.mxu0
      %v1446 = vadd.f32 %v1417, %v1445
      %v1447 = vpop.f32.mrf.mxu0
      %v1448 = vadd.f32 %v1419, %v1447
      %1449 = vmatmul.bf16.gmra.mxu0 %v605
      %v1450 = vpop.f32.mrf.mxu0
      %v1451 = vadd.f32 %v1422, %v1450
      %v1452 = vpop.f32.mrf.mxu0
      %v1453 = vadd.f32 %v1424, %v1452
      %1454 = vdwg.mxu0
      %1455 = vmatpush.bf16.msra.mxu0 %v1142
      %1456 = vmatpush.bf16.msra.mxu0 %v1140
      %1457 = vmatpush.bf16.msra.mxu0 %v1138
      %1458 = vmatpush.bf16.msra.mxu0 %v1136
      %1459 = vmatpush.bf16.msra.mxu0 %v1134
      %1460 = vmatpush.bf16.msra.mxu0 %v1132
      %1461 = vmatpush.bf16.msra.mxu0 %v1130
      %1462 = vmatpush.bf16.msra.mxu0 %v1128
      %1463 = vmatmul.bf16.gmra.mxu0 %v579
      %v1464 = vpop.f32.mrf.mxu0
      %v1465 = vadd.f32 %v1436, %v1464
      %v1466 = vpop.f32.mrf.mxu0
      %v1467 = vadd.f32 %v1438, %v1466
      %1468 = vmatmul.bf16.gmra.mxu0 %v588
      %v1469 = vpop.f32.mrf.mxu0
      %v1470 = vadd.f32 %v1441, %v1469
      %v1471 = vpop.f32.mrf.mxu0
      %v1472 = vadd.f32 %v1443, %v1471
      %1473 = vmatmul.bf16.gmra.mxu0 %v597
      %v1474 = vpop.f32.mrf.mxu0
      %v1475 = vadd.f32 %v1446, %v1474
      %v1476 = vpop.f32.mrf.mxu0
      %v1477 = vadd.f32 %v1448, %v1476
      %1478 = vmatmul.bf16.gmra.mxu0 %v606
      %v1479 = vpop.f32.mrf.mxu0
      %v1480 = vadd.f32 %v1451, %v1479
      %v1481 = vpop.f32.mrf.mxu0
      %v1482 = vadd.f32 %v1453, %v1481
      %1483 = vdwg.mxu0
      %1484 = vmatpush.bf16.msra.mxu0 %v1158
      %1485 = vmatpush.bf16.msra.mxu0 %v1156
      %1486 = vmatpush.bf16.msra.mxu0 %v1154
      %1487 = vmatpush.bf16.msra.mxu0 %v1152
      %1488 = vmatpush.bf16.msra.mxu0 %v1150
      %1489 = vmatpush.bf16.msra.mxu0 %v1148
      %1490 = vmatpush.bf16.msra.mxu0 %v1146
      %1491 = vmatpush.bf16.msra.mxu0 %v1144
      %1492 = vmatmul.bf16.gmra.mxu0 %v580
      %v1493 = vpop.f32.mrf.mxu0
      %v1494 = vadd.f32 %v1465, %v1493
      %v1495 = vpop.f32.mrf.mxu0
      %v1496 = vadd.f32 %v1467, %v1495
      %1497 = vmatmul.bf16.gmra.mxu0 %v589
      %v1498 = vpop.f32.mrf.mxu0
      %v1499 = vadd.f32 %v1470, %v1498
      %v1500 = vpop.f32.mrf.mxu0
      %v1501 = vadd.f32 %v1472, %v1500
      %1502 = vmatmul.bf16.gmra.mxu0 %v598
      %v1503 = vpop.f32.mrf.mxu0
      %v1504 = vadd.f32 %v1475, %v1503
      %v1505 = vpop.f32.mrf.mxu0
      %v1506 = vadd.f32 %v1477, %v1505
      %1507 = vmatmul.bf16.gmra.mxu0 %v607
      %v1508 = vpop.f32.mrf.mxu0
      %v1509 = vadd.f32 %v1480, %v1508
      %v1510 = vpop.f32.mrf.mxu0
      %v1511 = vadd.f32 %v1482, %v1510
      %1512 = vdwg.mxu0
      %1513 = vmatpush.bf16.msra.mxu0 %v1174
      %1514 = vmatpush.bf16.msra.mxu0 %v1172
      %1515 = vmatpush.bf16.msra.mxu0 %v1170
      %1516 = vmatpush.bf16.msra.mxu0 %v1168
      %1517 = vmatpush.bf16.msra.mxu0 %v1166
      %1518 = vmatpush.bf16.msra.mxu0 %v1164
      %1519 = vmatpush.bf16.msra.mxu0 %v1162
      %1520 = vmatpush.bf16.msra.mxu0 %v1160
      %1521 = vmatmul.bf16.gmra.mxu0 %v581
      %v1522 = vpop.f32.mrf.mxu0
      %v1523 = vadd.f32 %v1494, %v1522
      %v1524 = vpop.f32.mrf.mxu0
      %v1525 = vadd.f32 %v1496, %v1524
      %1526 = vmatmul.bf16.gmra.mxu0 %v590
      %v1527 = vpop.f32.mrf.mxu0
      %v1528 = vadd.f32 %v1499, %v1527
      %v1529 = vpop.f32.mrf.mxu0
      %v1530 = vadd.f32 %v1501, %v1529
      %1531 = vmatmul.bf16.gmra.mxu0 %v599
      %v1532 = vpop.f32.mrf.mxu0
      %v1533 = vadd.f32 %v1504, %v1532
      %v1534 = vpop.f32.mrf.mxu0
      %v1535 = vadd.f32 %v1506, %v1534
      %1536 = vmatmul.bf16.gmra.mxu0 %v608
      %v1537 = vpop.f32.mrf.mxu0
      %v1538 = vadd.f32 %v1509, %v1537
      %v1539 = vpop.f32.mrf.mxu0
      %v1540 = vadd.f32 %v1511, %v1539
      %1541 = vdwg.mxu0
      %1542 = vmatpush.bf16.msra.mxu0 %v1190
      %1543 = vmatpush.bf16.msra.mxu0 %v1188
      %1544 = vmatpush.bf16.msra.mxu0 %v1186
      %1545 = vmatpush.bf16.msra.mxu0 %v1184
      %1546 = vmatpush.bf16.msra.mxu0 %v1182
      %1547 = vmatpush.bf16.msra.mxu0 %v1180
      %1548 = vmatpush.bf16.msra.mxu0 %v1178
      %1549 = vmatpush.bf16.msra.mxu0 %v1176
      %1550 = vmatmul.bf16.gmra.mxu0 %v582
      %v1551 = vpop.f32.mrf.mxu0
      %v1552 = vadd.f32 %v1523, %v1551
      %v1553 = vpop.f32.mrf.mxu0
      %v1554 = vadd.f32 %v1525, %v1553
      %1555 = vmatmul.bf16.gmra.mxu0 %v591
      %v1556 = vpop.f32.mrf.mxu0
      %v1557 = vadd.f32 %v1528, %v1556
      %v1558 = vpop.f32.mrf.mxu0
      %v1559 = vadd.f32 %v1530, %v1558
      %1560 = vmatmul.bf16.gmra.mxu0 %v600
      %v1561 = vpop.f32.mrf.mxu0
      %v1562 = vadd.f32 %v1533, %v1561
      %v1563 = vpop.f32.mrf.mxu0
      %v1564 = vadd.f32 %v1535, %v1563
      %1565 = vmatmul.bf16.gmra.mxu0 %v609
      %v1566 = vpop.f32.mrf.mxu0
      %v1567 = vadd.f32 %v1538, %v1566
      %v1568 = vpop.f32.mrf.mxu0
      %v1569 = vadd.f32 %v1540, %v1568
      %1570 = vdwg.mxu0
      %1571 = vmatpush.bf16.msra.mxu0 %v1206
      %1572 = vmatpush.bf16.msra.mxu0 %v1204
      %1573 = vmatpush.bf16.msra.mxu0 %v1202
      %1574 = vmatpush.bf16.msra.mxu0 %v1200
      %1575 = vmatpush.bf16.msra.mxu0 %v1198
      %1576 = vmatpush.bf16.msra.mxu0 %v1196
      %1577 = vmatpush.bf16.msra.mxu0 %v1194
      %1578 = vmatpush.bf16.msra.mxu0 %v1192
      %1579 = vmatmul.bf16.gmra.mxu0 %v583
      %v1580 = vpop.f32.mrf.mxu0
      %v1581 = vadd.f32 %v1552, %v1580
      %v1582 = vpop.f32.mrf.mxu0
      %v1583 = vadd.f32 %v1554, %v1582
      %1584 = vmatmul.bf16.gmra.mxu0 %v592
      %v1585 = vpop.f32.mrf.mxu0
      %v1586 = vadd.f32 %v1557, %v1585
      %v1587 = vpop.f32.mrf.mxu0
      %v1588 = vadd.f32 %v1559, %v1587
      %1589 = vmatmul.bf16.gmra.mxu0 %v601
      %v1590 = vpop.f32.mrf.mxu0
      %v1591 = vadd.f32 %v1562, %v1590
      %v1592 = vpop.f32.mrf.mxu0
      %v1593 = vadd.f32 %v1564, %v1592
      %1594 = vmatmul.bf16.gmra.mxu0 %v610
      %v1595 = vpop.f32.mrf.mxu0
      %v1596 = vadd.f32 %v1567, %v1595
      %v1597 = vpop.f32.mrf.mxu0
      %v1598 = vadd.f32 %v1569, %v1597
      %1599 = vdwg.mxu0
      %1600 = vmatpush.bf16.msra.mxu0 %v1222
      %1601 = vmatpush.bf16.msra.mxu0 %v1220
      %1602 = vmatpush.bf16.msra.mxu0 %v1218
      %1603 = vmatpush.bf16.msra.mxu0 %v1216
      %1604 = vmatpush.bf16.msra.mxu0 %v1214
      %1605 = vmatpush.bf16.msra.mxu0 %v1212
      %1606 = vmatpush.bf16.msra.mxu0 %v1210
      %1607 = vmatpush.bf16.msra.mxu0 %v1208
      %1608 = vmatmul.bf16.gmra.mxu0 %v584
      %v1609 = vpop.f32.mrf.mxu0
      %v1610 = vadd.f32 %v1581, %v1609
      %v1611 = vpop.f32.mrf.mxu0
      %v1612 = vadd.f32 %v1583, %v1611
      %1613 = vmatmul.bf16.gmra.mxu0 %v593
      %v1614 = vpop.f32.mrf.mxu0
      %v1615 = vadd.f32 %v1586, %v1614
      %v1616 = vpop.f32.mrf.mxu0
      %v1617 = vadd.f32 %v1588, %v1616
      %1618 = vmatmul.bf16.gmra.mxu0 %v602
      %v1619 = vpop.f32.mrf.mxu0
      %v1620 = vadd.f32 %v1591, %v1619
      %v1621 = vpop.f32.mrf.mxu0
      %v1622 = vadd.f32 %v1593, %v1621
      %1623 = vmatmul.bf16.gmra.mxu0 %v611
      %v1624 = vpop.f32.mrf.mxu0
      %v1625 = vadd.f32 %v1596, %v1624
      %v1626 = vpop.f32.mrf.mxu0
      %v1627 = vadd.f32 %v1598, %v1626
      %1628 = vdwg.mxu0
      %1629 = vmatpush.bf16.msra.mxu0 %v1095
      %1630 = vmatpush.bf16.msra.mxu0 %v1093
      %1631 = vmatpush.bf16.msra.mxu0 %v1091
      %1632 = vmatpush.bf16.msra.mxu0 %v1089
      %1633 = vmatpush.bf16.msra.mxu0 %v1087
      %1634 = vmatpush.bf16.msra.mxu0 %v1085
      %1635 = vmatpush.bf16.msra.mxu0 %v1083
      %1636 = vmatpush.bf16.msra.mxu0 %v1081
      %1637 = vmatmul.bf16.gmra.mxu0 %v576
      %v1638 = vpop.f32.mrf.mxu0
      %v1639 = vadd.f32 %v461, %v1638
      %v1640 = vpop.f32.mrf.mxu0
      %v1641 = vadd.f32 %v461, %v1640
      %1642 = vmatmul.bf16.gmra.mxu0 %v585
      %v1643 = vpop.f32.mrf.mxu0
      %v1644 = vadd.f32 %v461, %v1643
      %v1645 = vpop.f32.mrf.mxu0
      %v1646 = vadd.f32 %v461, %v1645
      %1647 = vmatmul.bf16.gmra.mxu0 %v594
      %v1648 = vpop.f32.mrf.mxu0
      %v1649 = vadd.f32 %v461, %v1648
      %v1650 = vpop.f32.mrf.mxu0
      %v1651 = vadd.f32 %v461, %v1650
      %1652 = vmatmul.bf16.gmra.mxu0 %v603
      %v1653 = vpop.f32.mrf.mxu0
      %v1654 = vadd.f32 %v461, %v1653
      %v1655 = vpop.f32.mrf.mxu0
      %v1656 = vadd.f32 %v461, %v1655
      %1657 = vdwg.mxu0
      %1658 = vmatpush.bf16.msra.mxu0 %v1111
      %1659 = vmatpush.bf16.msra.mxu0 %v1109
      %1660 = vmatpush.bf16.msra.mxu0 %v1107
      %1661 = vmatpush.bf16.msra.mxu0 %v1105
      %1662 = vmatpush.bf16.msra.mxu0 %v1103
      %1663 = vmatpush.bf16.msra.mxu0 %v1101
      %1664 = vmatpush.bf16.msra.mxu0 %v1099
      %1665 = vmatpush.bf16.msra.mxu0 %v1097
      %1666 = vmatmul.bf16.gmra.mxu0 %v577
      %v1667 = vpop.f32.mrf.mxu0
      %v1668 = vadd.f32 %v1639, %v1667
      %v1669 = vpop.f32.mrf.mxu0
      %v1670 = vadd.f32 %v1641, %v1669
      %1671 = vmatmul.bf16.gmra.mxu0 %v586
      %v1672 = vpop.f32.mrf.mxu0
      %v1673 = vadd.f32 %v1644, %v1672
      %v1674 = vpop.f32.mrf.mxu0
      %v1675 = vadd.f32 %v1646, %v1674
      %1676 = vmatmul.bf16.gmra.mxu0 %v595
      %v1677 = vpop.f32.mrf.mxu0
      %v1678 = vadd.f32 %v1649, %v1677
      %v1679 = vpop.f32.mrf.mxu0
      %v1680 = vadd.f32 %v1651, %v1679
      %1681 = vmatmul.bf16.gmra.mxu0 %v604
      %v1682 = vpop.f32.mrf.mxu0
      %v1683 = vadd.f32 %v1654, %v1682
      %v1684 = vpop.f32.mrf.mxu0
      %v1685 = vadd.f32 %v1656, %v1684
      %1686 = vdwg.mxu0
      %1687 = vmatpush.bf16.msra.mxu0 %v1127
      %1688 = vmatpush.bf16.msra.mxu0 %v1125
      %1689 = vmatpush.bf16.msra.mxu0 %v1123
      %1690 = vmatpush.bf16.msra.mxu0 %v1121
      %1691 = vmatpush.bf16.msra.mxu0 %v1119
      %1692 = vmatpush.bf16.msra.mxu0 %v1117
      %1693 = vmatpush.bf16.msra.mxu0 %v1115
      %1694 = vmatpush.bf16.msra.mxu0 %v1113
      %1695 = vmatmul.bf16.gmra.mxu0 %v578
      %v1696 = vpop.f32.mrf.mxu0
      %v1697 = vadd.f32 %v1668, %v1696
      %v1698 = vpop.f32.mrf.mxu0
      %v1699 = vadd.f32 %v1670, %v1698
      %1700 = vmatmul.bf16.gmra.mxu0 %v587
      %v1701 = vpop.f32.mrf.mxu0
      %v1702 = vadd.f32 %v1673, %v1701
      %v1703 = vpop.f32.mrf.mxu0
      %v1704 = vadd.f32 %v1675, %v1703
      %1705 = vmatmul.bf16.gmra.mxu0 %v596
      %v1706 = vpop.f32.mrf.mxu0
      %v1707 = vadd.f32 %v1678, %v1706
      %v1708 = vpop.f32.mrf.mxu0
      %v1709 = vadd.f32 %v1680, %v1708
      %1710 = vmatmul.bf16.gmra.mxu0 %v605
      %v1711 = vpop.f32.mrf.mxu0
      %v1712 = vadd.f32 %v1683, %v1711
      %v1713 = vpop.f32.mrf.mxu0
      %v1714 = vadd.f32 %v1685, %v1713
      %1715 = vdwg.mxu0
      %1716 = vmatpush.bf16.msra.mxu0 %v1143
      %1717 = vmatpush.bf16.msra.mxu0 %v1141
      %1718 = vmatpush.bf16.msra.mxu0 %v1139
      %1719 = vmatpush.bf16.msra.mxu0 %v1137
      %1720 = vmatpush.bf16.msra.mxu0 %v1135
      %1721 = vmatpush.bf16.msra.mxu0 %v1133
      %1722 = vmatpush.bf16.msra.mxu0 %v1131
      %1723 = vmatpush.bf16.msra.mxu0 %v1129
      %1724 = vmatmul.bf16.gmra.mxu0 %v579
      %v1725 = vpop.f32.mrf.mxu0
      %v1726 = vadd.f32 %v1697, %v1725
      %v1727 = vpop.f32.mrf.mxu0
      %v1728 = vadd.f32 %v1699, %v1727
      %1729 = vmatmul.bf16.gmra.mxu0 %v588
      %v1730 = vpop.f32.mrf.mxu0
      %v1731 = vadd.f32 %v1702, %v1730
      %v1732 = vpop.f32.mrf.mxu0
      %v1733 = vadd.f32 %v1704, %v1732
      %1734 = vmatmul.bf16.gmra.mxu0 %v597
      %v1735 = vpop.f32.mrf.mxu0
      %v1736 = vadd.f32 %v1707, %v1735
      %v1737 = vpop.f32.mrf.mxu0
      %v1738 = vadd.f32 %v1709, %v1737
      %1739 = vmatmul.bf16.gmra.mxu0 %v606
      %v1740 = vpop.f32.mrf.mxu0
      %v1741 = vadd.f32 %v1712, %v1740
      %v1742 = vpop.f32.mrf.mxu0
      %v1743 = vadd.f32 %v1714, %v1742
      %1744 = vdwg.mxu0
      %1745 = vmatpush.bf16.msra.mxu0 %v1159
      %1746 = vmatpush.bf16.msra.mxu0 %v1157
      %1747 = vmatpush.bf16.msra.mxu0 %v1155
      %1748 = vmatpush.bf16.msra.mxu0 %v1153
      %1749 = vmatpush.bf16.msra.mxu0 %v1151
      %1750 = vmatpush.bf16.msra.mxu0 %v1149
      %1751 = vmatpush.bf16.msra.mxu0 %v1147
      %1752 = vmatpush.bf16.msra.mxu0 %v1145
      %1753 = vmatmul.bf16.gmra.mxu0 %v580
      %v1754 = vpop.f32.mrf.mxu0
      %v1755 = vadd.f32 %v1726, %v1754
      %v1756 = vpop.f32.mrf.mxu0
      %v1757 = vadd.f32 %v1728, %v1756
      %1758 = vmatmul.bf16.gmra.mxu0 %v589
      %v1759 = vpop.f32.mrf.mxu0
      %v1760 = vadd.f32 %v1731, %v1759
      %v1761 = vpop.f32.mrf.mxu0
      %v1762 = vadd.f32 %v1733, %v1761
      %1763 = vmatmul.bf16.gmra.mxu0 %v598
      %v1764 = vpop.f32.mrf.mxu0
      %v1765 = vadd.f32 %v1736, %v1764
      %v1766 = vpop.f32.mrf.mxu0
      %v1767 = vadd.f32 %v1738, %v1766
      %1768 = vmatmul.bf16.gmra.mxu0 %v607
      %v1769 = vpop.f32.mrf.mxu0
      %v1770 = vadd.f32 %v1741, %v1769
      %v1771 = vpop.f32.mrf.mxu0
      %v1772 = vadd.f32 %v1743, %v1771
      %1773 = vdwg.mxu0
      %1774 = vmatpush.bf16.msra.mxu0 %v1175
      %1775 = vmatpush.bf16.msra.mxu0 %v1173
      %1776 = vmatpush.bf16.msra.mxu0 %v1171
      %1777 = vmatpush.bf16.msra.mxu0 %v1169
      %1778 = vmatpush.bf16.msra.mxu0 %v1167
      %1779 = vmatpush.bf16.msra.mxu0 %v1165
      %1780 = vmatpush.bf16.msra.mxu0 %v1163
      %1781 = vmatpush.bf16.msra.mxu0 %v1161
      %1782 = vmatmul.bf16.gmra.mxu0 %v581
      %v1783 = vpop.f32.mrf.mxu0
      %v1784 = vadd.f32 %v1755, %v1783
      %v1785 = vpop.f32.mrf.mxu0
      %v1786 = vadd.f32 %v1757, %v1785
      %1787 = vmatmul.bf16.gmra.mxu0 %v590
      %v1788 = vpop.f32.mrf.mxu0
      %v1789 = vadd.f32 %v1760, %v1788
      %v1790 = vpop.f32.mrf.mxu0
      %v1791 = vadd.f32 %v1762, %v1790
      %1792 = vmatmul.bf16.gmra.mxu0 %v599
      %v1793 = vpop.f32.mrf.mxu0
      %v1794 = vadd.f32 %v1765, %v1793
      %v1795 = vpop.f32.mrf.mxu0
      %v1796 = vadd.f32 %v1767, %v1795
      %1797 = vmatmul.bf16.gmra.mxu0 %v608
      %v1798 = vpop.f32.mrf.mxu0
      %v1799 = vadd.f32 %v1770, %v1798
      %v1800 = vpop.f32.mrf.mxu0
      %v1801 = vadd.f32 %v1772, %v1800
      %1802 = vdwg.mxu0
      %1803 = vmatpush.bf16.msra.mxu0 %v1191
      %1804 = vmatpush.bf16.msra.mxu0 %v1189
      %1805 = vmatpush.bf16.msra.mxu0 %v1187
      %1806 = vmatpush.bf16.msra.mxu0 %v1185
      %1807 = vmatpush.bf16.msra.mxu0 %v1183
      %1808 = vmatpush.bf16.msra.mxu0 %v1181
      %1809 = vmatpush.bf16.msra.mxu0 %v1179
      %1810 = vmatpush.bf16.msra.mxu0 %v1177
      %1811 = vmatmul.bf16.gmra.mxu0 %v582
      %v1812 = vpop.f32.mrf.mxu0
      %v1813 = vadd.f32 %v1784, %v1812
      %v1814 = vpop.f32.mrf.mxu0
      %v1815 = vadd.f32 %v1786, %v1814
      %1816 = vmatmul.bf16.gmra.mxu0 %v591
      %v1817 = vpop.f32.mrf.mxu0
      %v1818 = vadd.f32 %v1789, %v1817
      %v1819 = vpop.f32.mrf.mxu0
      %v1820 = vadd.f32 %v1791, %v1819
      %1821 = vmatmul.bf16.gmra.mxu0 %v600
      %v1822 = vpop.f32.mrf.mxu0
      %v1823 = vadd.f32 %v1794, %v1822
      %v1824 = vpop.f32.mrf.mxu0
      %v1825 = vadd.f32 %v1796, %v1824
      %1826 = vmatmul.bf16.gmra.mxu0 %v609
      %v1827 = vpop.f32.mrf.mxu0
      %v1828 = vadd.f32 %v1799, %v1827
      %v1829 = vpop.f32.mrf.mxu0
      %v1830 = vadd.f32 %v1801, %v1829
      %1831 = vdwg.mxu0
      %1832 = vmatpush.bf16.msra.mxu0 %v1207
      %1833 = vmatpush.bf16.msra.mxu0 %v1205
      %1834 = vmatpush.bf16.msra.mxu0 %v1203
      %1835 = vmatpush.bf16.msra.mxu0 %v1201
      %1836 = vmatpush.bf16.msra.mxu0 %v1199
      %1837 = vmatpush.bf16.msra.mxu0 %v1197
      %1838 = vmatpush.bf16.msra.mxu0 %v1195
      %1839 = vmatpush.bf16.msra.mxu0 %v1193
      %1840 = vmatmul.bf16.gmra.mxu0 %v583
      %v1841 = vpop.f32.mrf.mxu0
      %v1842 = vadd.f32 %v1813, %v1841
      %v1843 = vpop.f32.mrf.mxu0
      %v1844 = vadd.f32 %v1815, %v1843
      %1845 = vmatmul.bf16.gmra.mxu0 %v592
      %v1846 = vpop.f32.mrf.mxu0
      %v1847 = vadd.f32 %v1818, %v1846
      %v1848 = vpop.f32.mrf.mxu0
      %v1849 = vadd.f32 %v1820, %v1848
      %1850 = vmatmul.bf16.gmra.mxu0 %v601
      %v1851 = vpop.f32.mrf.mxu0
      %v1852 = vadd.f32 %v1823, %v1851
      %v1853 = vpop.f32.mrf.mxu0
      %v1854 = vadd.f32 %v1825, %v1853
      %1855 = vmatmul.bf16.gmra.mxu0 %v610
      %v1856 = vpop.f32.mrf.mxu0
      %v1857 = vadd.f32 %v1828, %v1856
      %v1858 = vpop.f32.mrf.mxu0
      %v1859 = vadd.f32 %v1830, %v1858
      %1860 = vdwg.mxu0
      %1861 = vmatpush.bf16.msra.mxu0 %v1223
      %1862 = vmatpush.bf16.msra.mxu0 %v1221
      %1863 = vmatpush.bf16.msra.mxu0 %v1219
      %1864 = vmatpush.bf16.msra.mxu0 %v1217
      %1865 = vmatpush.bf16.msra.mxu0 %v1215
      %1866 = vmatpush.bf16.msra.mxu0 %v1213
      %1867 = vmatpush.bf16.msra.mxu0 %v1211
      %1868 = vmatpush.bf16.msra.mxu0 %v1209
      %1869 = vmatmul.bf16.gmra.mxu0 %v584
      %v1870 = vpop.f32.mrf.mxu0
      %v1871 = vadd.f32 %v1842, %v1870
      %v1872 = vpop.f32.mrf.mxu0
      %v1873 = vadd.f32 %v1844, %v1872
      %1874 = vmatmul.bf16.gmra.mxu0 %v593
      %v1875 = vpop.f32.mrf.mxu0
      %v1876 = vadd.f32 %v1847, %v1875
      %v1877 = vpop.f32.mrf.mxu0
      %v1878 = vadd.f32 %v1849, %v1877
      %1879 = vmatmul.bf16.gmra.mxu0 %v602
      %v1880 = vpop.f32.mrf.mxu0
      %v1881 = vadd.f32 %v1852, %v1880
      %v1882 = vpop.f32.mrf.mxu0
      %v1883 = vadd.f32 %v1854, %v1882
      %1884 = vmatmul.bf16.gmra.mxu0 %v611
      %v1885 = vpop.f32.mrf.mxu0
      %v1886 = vadd.f32 %v1857, %v1885
      %v1887 = vpop.f32.mrf.mxu0
      %v1888 = vadd.f32 %v1859, %v1887
      %1889 = vdwg.mxu0
      %v1890 = vmax.f32 %v1610, 0.0
      %v1891 = vmax.f32 %v1871, 0.0
      %v1892 = vmax.f32 %v1612, 0.0
      %v1893 = vmax.f32 %v1873, 0.0
      %v1894 = vmax.f32 %v1615, 0.0
      %v1895 = vmax.f32 %v1876, 0.0
      %v1896 = vmax.f32 %v1617, 0.0
      %v1897 = vmax.f32 %v1878, 0.0
      %v1898 = vmax.f32 %v1620, 0.0
      %v1899 = vmax.f32 %v1881, 0.0
      %v1900 = vmax.f32 %v1622, 0.0
      %v1901 = vmax.f32 %v1883, 0.0
      %v1902 = vmax.f32 %v1625, 0.0
      %v1903 = vmax.f32 %v1886, 0.0
      %v1904 = vmax.f32 %v1627, 0.0
      %v1905 = vmax.f32 %v1888, 0.0
      %v1906 = vpack.c.bf16 %v1891, %v1890
      %v1907 = vpack.c.bf16 %v1893, %v1892
      %v1908 = vpack.c.bf16 %v1895, %v1894
      %v1909 = vpack.c.bf16 %v1897, %v1896
      %v1910 = vpack.c.bf16 %v1899, %v1898
      %v1911 = vpack.c.bf16 %v1901, %v1900
      %v1912 = vpack.c.bf16 %v1903, %v1902
      %v1913 = vpack.c.bf16 %v1905, %v1904
      %1914 = vst [vmem:[%s271] sm:$0xff] %v1906
      %1915 = vst [vmem:[%s271 + $0x8] sm:$0xff] %v1907
      %1916 = vst [vmem:[%s271 + $0x10] sm:$0xff] %v1908
      %1917 = vst [vmem:[%s271 + $0x18] sm:$0xff] %v1909
      %1918 = vst [vmem:[%s271 + $0x20] sm:$0xff] %v1910
      %1919 = vst [vmem:[%s271 + $0x28] sm:$0xff] %v1911
      %1920 = vst [vmem:[%s271 + $0x30] sm:$0xff] %v1912
      %1921 = vst [vmem:[%s271 + $0x38] sm:$0xff] %v1913
      %s1922 = smul.u32 8, %s21
      %s1923 = smul.u32 2, %s20
      %p1924 = scmp.lt.s32.totalorder %s19, 1
      %s1925 = scalar_select %p1924, %s19, 1
      %p1926 = scmp.lt.s32.totalorder %s1922, 7
      %s1927 = scalar_select %p1926, %s1922, 7
      %p1928 = scmp.lt.s32.totalorder %s1923, 1
      %s1929 = scalar_select %p1928, %s1923, 1
      %s1930 = smul.addr %s1927, 2
      %s1931 = sadd.s32 %s1929, %s1930
      %s1932 = smul.addr %s1925, 16
      %s1933 = sadd.s32 %s1931, %s1932
      %s1934 = smul.addr %s1933, 4
      %s1935 = scalar_lea.vmem %s3, %s1934
      // Predicated region
      $region33: #{_lambda_.5} parent=31 // pred_check
        %p1936 = pneg %p135
      $region34: #{_lambda_.5} parent=31 // pred_check_branch
        %1938 = sbr.rel (%p1936) target = $region36
      $region35: #{_lambda_.5} parent=31 // pred_region
        %s1939 = smul.u32 8, %s21
        %s1940 = smul.u32 2, %s20
      $region36: #{_lambda_.5} parent=31 // pred_fallthru
        _
    $region32: #{_lambda_.5} parent=5 // pred_fallthru
      _
    %p1941 = scmp.le.s32.totalorder 2, %s9
    // Predicated region
    $region37: #{_lambda_.5} parent=5 // pred_check
      %p1942 = pneg %p1941
    $region38: #{_lambda_.5} parent=5 // pred_check_branch
      %1944 = sbr.rel (%p1942) target = $region40
    $region39: #{_lambda_.5} parent=5 // pred_region
      %s1945 = ssub.s32 %s9, 2
      // Predicated region
      $region41: #{_lambda_.5} parent=39 // pred_check
        %p1946 = pneg %p141
      $region42: #{_lambda_.5} parent=39 // pred_check_branch
        %1948 = sbr.rel (%p1946) target = $region44
      $region43: #{_lambda_.5} parent=39 // pred_region
        %s1949 = smul.u32 8, %s24
        %s1950 = smul.u32 2, %s23
        %p1951 = scmp.lt.s32.totalorder %s22, 1
        %s1952 = scalar_select %p1951, %s22, 1
        %p1953 = scmp.lt.s32.totalorder %s1949, 7
        %s1954 = scalar_select %p1953, %s1949, 7
        %p1955 = scmp.lt.s32.totalorder %s1950, 1
        %s1956 = scalar_select %p1955, %s1950, 1
        %s1957 = smul.addr %s1954, 2
        %s1958 = sadd.s32 %s1956, %s1957
        %s1959 = smul.addr %s1952, 16
        %s1960 = sadd.s32 %s1958, %s1959
        %s1961 = smul.addr %s1960, 4
        %s1962 = scalar_lea.vmem %s3, %s1961
      $region44: #{_lambda_.5} parent=39 // pred_fallthru
        _
    $region40: #{_lambda_.5} parent=5 // pred_fallthru
      _
  $region6: #{_lambda_.5} parent=0 // loop_footer
    %s13 = sadd.s32 1, %s9
  $region7: #{_lambda_.5} parent=0 // loop_footer_branch
    %8 = sbr.rel target = $region3
  $region8: #{_lambda_.5} parent=0 // loop_exit
    _

</llo_original>
